<compile_context>
chip_gen: v6e
topology: v6e:2x2x1
jax: 0.10.0
libtpu: 0.0.40
codegen_flags: <defaults>
</compile_context>

<pallas_src>
import functools

import jax
import jax.numpy as jnp
from jax.experimental import pallas as pl
from jax.experimental.pallas import tpu as pltpu


# -----------------------------------------------------------------------------
# Pallas kernel: everything after the embeddings / LSTM contexts are available.
# One grid step handles TB batch elements (default TB = B, grid=(1,)).
# -----------------------------------------------------------------------------
def _positdrmm_kernel(q_cat_ref, d_cat_ref, q_tok_ref, d_tok_ref,
                      q_idf_ref, extra_ref,
                      w_q1_ref, b_q1_ref, w_g_ref, b_g_ref,
                      out_ref, *, emb_dim, doc_len, pad_token):
    f32 = jnp.float32
    TB, QL, K = q_cat_ref.shape            # K = 3E  (emb E + ctx 2E)
    E = emb_dim
    DL = doc_len
    TBDL = d_cat_ref.shape[1]              # TB * DL (lane-flattened doc axis)

    # ---- LHS: normalized [query_emb || query_ctx], flattened to (TB*QL, 3E) --
    qcat = q_cat_ref[...]                                          # (TB, QL, 3E)
    lane_k = jax.lax.broadcasted_iota(jnp.int32, (TB, QL, K), 2)
    is_emb_k = lane_k < E
    qsq = qcat * qcat
    ss_emb = jnp.sum(jnp.where(is_emb_k, qsq, 0.0), axis=2, keepdims=True)
    ss_ctx = jnp.sum(jnp.where(is_emb_k, 0.0, qsq), axis=2, keepdims=True)
    inv_emb = 1.0 / (jnp.sqrt(ss_emb) + 1e-7)      # torch: x / (norm + 1e-7)
    inv_ctx = jax.lax.rsqrt(ss_ctx)                # torch: x / norm   (no eps)
    lhs = (qcat * jnp.where(is_emb_k, inv_emb, inv_ctx)).reshape(TB * QL, K)

    # ---- RHS: block-diagonal [dn | 0 ; 0 | dcn] -> (3E, 2*TB*DL) --------------
    dcat = d_cat_ref[...]                                          # (3E, TBDL)
    row_k = jax.lax.broadcasted_iota(jnp.int32, (K, TBDL), 0)
    is_emb_row = row_k < E
    dsq = dcat * dcat
    dss_emb = jnp.sum(jnp.where(is_emb_row, dsq, 0.0), axis=0, keepdims=True)
    dss_ctx = jnp.sum(jnp.where(is_emb_row, 0.0, dsq), axis=0, keepdims=True)
    dinv_emb = 1.0 / (jnp.sqrt(dss_emb) + 1e-7)
    dinv_ctx = jax.lax.rsqrt(dss_ctx)
    dn_part = jnp.where(is_emb_row, dcat * dinv_emb, 0.0)          # emb rows only
    dcn_part = jnp.where(is_emb_row, 0.0, dcat * dinv_ctx)         # ctx rows only
    rhs = jnp.concatenate([dn_part, dcn_part], axis=1)             # lane-aligned

    # ---- single fused MXU contraction -----------------------------------------
    s = jnp.dot(lhs, rhs, preferred_element_type=jnp.float32)      # (TB*QL, 2*TBDL)
    s_cos = s[:, :TBDL].reshape(TB, QL, TBDL)
    s_ctx = s[:, TBDL:].reshape(TB, QL, TBDL)

    # ---- mask cross-batch columns (shared iota, no integer division) ----------
    lane_d = jax.lax.broadcasted_iota(jnp.int32, (TB, QL, TBDL), 2)
    row_b = jax.lax.broadcasted_iota(jnp.int32, (TB, QL, TBDL), 0)
    lo = row_b * DL
    valid = jnp.logical_and(lane_d >= lo, lane_d < lo + DL)
    neg = f32(-jnp.inf)
    s_cos = jnp.where(valid, s_cos, neg)
    s_ctx = jnp.where(valid, s_ctx, neg)

    # ---- max + mean-of-top-5 along the flattened doc (lane) axis ---------------
    def max_and_top5_mean(mat):
        vals = mat
        m0 = acc = None
        for t in range(5):
            mk = jnp.max(vals, axis=2, keepdims=True)              # (TB, QL, 1)
            mf = mk[:, :, 0]                                       # (TB, QL)
            if t == 0:
                m0 = mf
                acc = mf
            else:
                acc = acc + mf
            if t < 4:                                              # skip last mask
                first = jnp.min(jnp.where(vals == mk, lane_d, TBDL),
                                axis=2, keepdims=True)
                vals = jnp.where(lane_d == first, neg, vals)
        return m0, acc * (1.0 / 5.0)

    f0, f1 = max_and_top5_mean(s_cos)
    f2, f3 = max_and_top5_mean(s_ctx)

    # ---- exact-match ("XOR") features in closed form ---------------------------
    qt = q_tok_ref[...]                                            # (TB, QL, 1)
    dt = d_tok_ref[...]                                            # (TB, 1, DL)
    match = jnp.logical_and(qt == dt, qt != pad_token)             # (TB, QL, DL)
    cnt = jnp.sum(match.astype(f32), axis=2)                       # (TB, QL)
    f4 = (cnt > 0).astype(f32)                                     # == max over DL
    f5 = jnp.minimum(cnt, 5.0) * (1.0 / 5.0)                       # == top-5 mean

    # ---- Q1 linear (6 -> 1) + LeakyReLU, lane-major (TB, QL) -------------------
    z = (w_q1_ref[0] * f0 + w_q1_ref[1] * f1 + w_q1_ref[2] * f2 +
         w_q1_ref[3] * f3 + w_q1_ref[4] * f4 + w_q1_ref[5] * f5 + b_q1_ref[0])
    m_res = jnp.where(z >= 0, z, 0.01 * z)                         # (TB, QL)

    # ---- softmax(idf)-weighted sum (lane reductions over QL) -------------------
    idf = q_idf_ref[...][:, 0, :]                                  # (TB, QL)
    mx = jnp.max(idf, axis=1, keepdims=True)
    ex = jnp.exp(idf - mx)
    r = ex / jnp.sum(ex, axis=1, keepdims=True)                    # exact (tiny tile)
    ans = jnp.sum(r * m_res, axis=1, keepdims=True)                # (TB, 1)

    # ---- Wg linear (5 -> 1) over [ans, extra] ----------------------------------
    e = extra_ref[...][:, 0, :]                                    # (TB, 4)
    score = (w_g_ref[0] * ans +
             w_g_ref[1] * e[:, 0:1] + w_g_ref[2] * e[:, 1:2] +
             w_g_ref[3] * e[:, 2:3] + w_g_ref[4] * e[:, 3:4] + b_g_ref[0])
    out_ref[0] = jnp.transpose(score)                              # lane row (1, TB)


# -----------------------------------------------------------------------------
# Plain-JAX glue: embedding lookup + 2-layer bidirectional LSTM (recurrent).
# Query and document contexts share one scan per layer (query padded along
# time, concatenated on the batch axis) -> 2*max(QL,DL) sequential steps total.
# -----------------------------------------------------------------------------
def _run_bidir_scan(xs, w_ih, w_hh, b):
    # xs: (L, 2, N, In); w_ih: (2, 4E, In); w_hh: (2, 4E, E); b: (2, 1, 4E)
    _, _, N, _ = xs.shape
    E = w_hh.shape[2]

    def step(carry, xt):
        h, c = carry                                               # (2, N, E)
        gates = (jnp.einsum('dni,dgi->dng', xt, w_ih) +
                 jnp.einsum('dne,dge->dng', h, w_hh) + b)
        i, f, g, o = jnp.split(gates, 4, axis=-1)                  # torch order i,f,g,o
        i = jax.nn.sigmoid(i)
        f = jax.nn.sigmoid(f)
        g = jnp.tanh(g)
        o = jax.nn.sigmoid(o)
        c = f * c + i * g
        h = o * jnp.tanh(c)
        return (h, c), h

    h0 = jnp.zeros((2, N, E), jnp.float32)
    c0 = jnp.zeros((2, N, E), jnp.float32)
    _, ys = jax.lax.scan(step, (h0, c0), xs)                       # (L, 2, N, E)
    return ys


def _contexts_fused(qx_bfe, dx_bfe, lstm_params):
    # qx_bfe: (B, QL, E), dx_bfe: (B, DL, E).  Returns (B, QL, 2E), (B, DL, 2E).
    B, QL, E = qx_bfe.shape
    DL = dx_bfe.shape[1]
    L = max(QL, DL)
    xq = jnp.transpose(qx_bfe, (1, 0, 2)).astype(jnp.float32)      # (QL, B, E)
    xd = jnp.transpose(dx_bfe, (1, 0, 2)).astype(jnp.float32)      # (DL, B, E)

    def pad_t(x):
        return jnp.pad(x, ((0, L - x.shape[0]), (0, 0), (0, 0)))

    q_seq, d_seq = xq, xd
    for layer in lstm_params:
        fwd_p, bwd_p = layer["fwd"], layer["bwd"]
        w_ih = jnp.stack([fwd_p[0], bwd_p[0]])                     # (2, 4E, In)
        w_hh = jnp.stack([fwd_p[1], bwd_p[1]])                     # (2, 4E, E)
        b = jnp.stack([fwd_p[2] + fwd_p[3], bwd_p[2] + bwd_p[3]])[:, None, :]
        # Doc and query streams share the batch axis; padded query steps are
        # sliced away, so causality per direction is preserved exactly.
        x_f = jnp.concatenate([pad_t(d_seq), pad_t(q_seq)], axis=1)        # (L, 2B, In)
        x_b = jnp.concatenate([pad_t(d_seq[::-1]), pad_t(q_seq[::-1])], axis=1)
        xs = jnp.stack([x_f, x_b], axis=1)                                  # (L, 2, 2B, In)
        ys = _run_bidir_scan(xs, w_ih, w_hh, b)                             # (L, 2, 2B, E)
        d_fwd = ys[:DL, 0, :B]
        d_bwd = ys[:DL, 1, :B][::-1]
        q_fwd = ys[:QL, 0, B:]
        q_bwd = ys[:QL, 1, B:][::-1]
        d_seq = jnp.concatenate([d_fwd, d_bwd], axis=-1)                    # (DL, B, 2E)
        q_seq = jnp.concatenate([q_fwd, q_bwd], axis=-1)                    # (QL, B, 2E)

    q_ctx = jnp.concatenate([q_seq[..., :E] + xq, q_seq[..., E:] + xq], axis=-1)
    d_ctx = jnp.concatenate([d_seq[..., :E] + xd, d_seq[..., E:] + xd], axis=-1)
    return jnp.transpose(q_ctx, (1, 0, 2)), jnp.transpose(d_ctx, (1, 0, 2))


def _resolve_batch_tile(B, QL, DL, batch_tile):
    # Default: whole batch in one grid step (grid=(1,)).  At these shapes the
    # kernel is overhead/latency bound; v5e/v6e are single-TC and on v7x a
    # 2-step split of a ~us body rarely beats its fixed per-step cost.
    if batch_tile is None or batch_tile >= B:
        return B
    tb = batch_tile
    if B % tb != 0:
        raise ValueError("batch_tile must divide the batch size")
    if (tb * DL) % 128 != 0:
        raise ValueError("batch_tile * doc_len must be a multiple of 128 when tiling")
    if (tb * QL) % 8 != 0:
        raise ValueError("batch_tile * query_len must be a multiple of 8 when tiling")
    return tb


def positdrmm_forward(sentence, query_sentence, query_idf, extra, params,
                      pad_token, batch_tile=None):
    emb = params["embedding"]                                      # (V, E)
    E = emb.shape[1]
    x = emb[sentence]                                              # (B, DL, E)
    qx = emb[query_sentence]                                       # (B, QL, E)

    q_ctx, d_ctx = _contexts_fused(qx, x, params["lstm"])          # (B,QL,2E), (B,DL,2E)

    B, QL = query_sentence.shape
    DL = sentence.shape[1]

    # Query operand: [emb || ctx] along features -> (B, QL, 3E).
    q_cat = jnp.concatenate([qx, q_ctx], axis=2)

    # Doc operand: features-major, batch flattened along lanes -> (3E, B*DL).
    d_cat = jnp.concatenate(
        [jnp.transpose(x, (2, 0, 1)).reshape(E, B * DL),
         jnp.transpose(d_ctx, (2, 0, 1)).reshape(2 * E, B * DL)], axis=0)

    q_tok3 = query_sentence.astype(jnp.int32).reshape(B, QL, 1)
    d_tok3 = sentence.astype(jnp.int32).reshape(B, 1, DL)
    q_idf3 = query_idf.astype(jnp.float32).reshape(B, 1, QL)
    extra3 = extra.astype(jnp.float32).reshape(B, 1, 4)

    tb = _resolve_batch_tile(B, QL, DL, batch_tile)
    nb = B // tb

    kernel = functools.partial(_positdrmm_kernel, emb_dim=E, doc_len=DL,
                               pad_token=pad_token)
    smem_spec = pl.BlockSpec(memory_space=pltpu.MemorySpace.SMEM)

    out = pl.pallas_call(
        kernel,
        out_shape=jax.ShapeDtypeStruct((nb, 1, tb), jnp.float32),
        grid=(nb,),
        in_specs=[
            pl.BlockSpec((tb, QL, 3 * E), lambda b: (b, 0, 0)),    # q_cat
            pl.BlockSpec((3 * E, tb * DL), lambda b: (0, b)),      # d_cat (lane blocks)
            pl.BlockSpec((tb, QL, 1), lambda b: (b, 0, 0)),        # q_tok
            pl.BlockSpec((tb, 1, DL), lambda b: (b, 0, 0)),        # d_tok
            pl.BlockSpec((tb, 1, QL), lambda b: (b, 0, 0)),        # q_idf
            pl.BlockSpec((tb, 1, 4), lambda b: (b, 0, 0)),         # extra
            smem_spec,                                             # w_q1 (6,)
            smem_spec,                                             # b_q1 (1,)
            smem_spec,                                             # w_g  (5,)
            smem_spec,                                             # b_g  (1,)
        ],
        out_specs=pl.BlockSpec((1, 1, tb), lambda b: (b, 0, 0)),   # lane-dense row
        compiler_params=pltpu.CompilerParams(
            dimension_semantics=("parallel",) if nb > 1 else ("arbitrary",),
            vmem_limit_bytes=32 * 1024 * 1024),
    )(q_cat, d_cat, q_tok3, d_tok3, q_idf3, extra3,
      params["w_q1"], params["b_q1"], params["w_g"], params["b_g"])

    return out.reshape(-1)                                         # (B,)


# -----------------------------------------------------------------------------
# Deterministic parameter initialization (shapes per POSITDRMM_basic.__init__).
# -----------------------------------------------------------------------------
def init_params(key, vocab, embed_dim):
    E = embed_dim
    keys = jax.random.split(key, 32)
    ki = iter(keys)

    def u(k, shape, bound):
        return jax.random.uniform(k, shape, jnp.float32, -bound, bound)

    params = {"embedding": jax.random.normal(next(ki), (vocab, E), jnp.float32)}

    # 2-layer bidirectional LSTM, hidden = E; layer-1 input = 2E.
    lstm = []
    bound = 1.0 / float(jnp.sqrt(jnp.float32(E)))
    for layer in range(2):
        in_dim = E if layer == 0 else 2 * E
        layer_p = {}
        for d in ("fwd", "bwd"):
            layer_p[d] = (
                u(next(ki), (4 * E, in_dim), bound),   # W_ih
                u(next(ki), (4 * E, E), bound),        # W_hh
                u(next(ki), (4 * E,), bound),          # b_ih
                u(next(ki), (4 * E,), bound),          # b_hh
            )
        lstm.append(layer_p)
    params["lstm"] = lstm

    # Q1: Linear(6, 1), Wg: Linear(5, 1)
    params["w_q1"] = u(next(ki), (6,), 1.0 / float(jnp.sqrt(jnp.float32(6.0))))
    params["b_q1"] = u(next(ki), (1,), 1.0 / float(jnp.sqrt(jnp.float32(6.0))))
    params["w_g"] = u(next(ki), (5,), 1.0 / float(jnp.sqrt(jnp.float32(5.0))))
    params["b_g"] = u(next(ki), (1,), 1.0 / float(jnp.sqrt(jnp.float32(5.0))))
    return params


if __name__ == "__main__":
    key = jax.random.PRNGKey(0)
    B, QLEN, DOCLEN, E, VOCAB = 8, 8, 16, 32, 50
    PAD_TOKEN = 0

    k1, k2, k3, k4, k5 = jax.random.split(key, 5)
    params = init_params(k1, VOCAB, E)

    sentence = jax.random.randint(k2, (B, DOCLEN), 1, VOCAB, jnp.int32)
    query_sentence = jax.random.randint(k3, (B, QLEN), 1, VOCAB, jnp.int32)
    # pad the tail of the queries to exercise the pad-token masking path
    query_sentence = query_sentence.at[:, -2:].set(PAD_TOKEN)
    # plant a guaranteed exact match so the XOR features are non-trivial
    sentence = sentence.at[:, 3].set(query_sentence[:, 0])
    query_idf = jax.random.uniform(k4, (B, QLEN), jnp.float32)
    extra = jax.random.normal(k5, (B, 4), jnp.float32)

    fwd = jax.jit(functools.partial(positdrmm_forward, pad_token=PAD_TOKEN))
    result = fwd(sentence, query_sentence, query_idf, extra, params)
    result = jax.block_until_ready(result)
    assert result.shape == (B,)
    assert bool(jnp.all(jnp.isfinite(result)))
    print("KERNEL_OK")
</pallas_src>

<mosaic_0001>
module attributes {stable_mosaic.version = 11 : i64} {
  func.func @_positdrmm_kernel(%arg0: i32, %arg1: memref<8x8x96xf32, #tpu.memory_space<vmem>>, %arg2: memref<96x128xf32, #tpu.memory_space<vmem>>, %arg3: memref<8x8x1xi32, #tpu.memory_space<vmem>>, %arg4: memref<8x1x16xi32, #tpu.memory_space<vmem>>, %arg5: memref<8x1x8xf32, #tpu.memory_space<vmem>>, %arg6: memref<8x1x4xf32, #tpu.memory_space<vmem>>, %arg7: memref<6xf32, #tpu.memory_space<smem>>, %arg8: memref<1xf32, #tpu.memory_space<smem>>, %arg9: memref<5xf32, #tpu.memory_space<smem>>, %arg10: memref<1xf32, #tpu.memory_space<smem>>, %arg11: memref<1x1x8xf32, #tpu.memory_space<vmem>>) attributes {dimension_semantics = [#tpu.dimension_semantics<arbitrary>], iteration_bounds = array<i64: 1>, scalar_prefetch = 0 : i64, scratch_operands = 0 : i64, tpu.core_type = #tpu.core_type<tc>, window_params = [{transform_indices = @transform_0, window_bounds = array<i64: 8, 8, 96>}, {transform_indices = @transform_1, window_bounds = array<i64: 96, 128>}, {transform_indices = @transform_2, window_bounds = array<i64: 8, 8, 1>}, {transform_indices = @transform_3, window_bounds = array<i64: 8, 1, 16>}, {transform_indices = @transform_4, window_bounds = array<i64: 8, 1, 8>}, {transform_indices = @transform_5, window_bounds = array<i64: 8, 1, 4>}, {transform_indices = @transform_6, window_bounds = array<i64: 6>}, {transform_indices = @transform_7, window_bounds = array<i64: 1>}, {transform_indices = @transform_8, window_bounds = array<i64: 5>}, {transform_indices = @transform_9, window_bounds = array<i64: 1>}, {transform_indices = @transform_10, window_bounds = array<i64: 1, 1, 8>}]} {
    %c0 = arith.constant 0 : index
    %c0_0 = arith.constant 0 : index
    %c0_1 = arith.constant 0 : index
    %0 = vector.load %arg1[%c0, %c0_0, %c0_1] : memref<8x8x96xf32, #tpu.memory_space<vmem>>, vector<8x8x96xf32>
    %1 = tpu.iota {dimensions = array<i32: 2>} : vector<8x8x96xi32>
    %c32_i32 = arith.constant 32 : i32
    %2 = vector.broadcast %c32_i32 : i32 to vector<8x8x96xi32>
    %3 = arith.cmpi slt, %1, %2 : vector<8x8x96xi32>
    %4 = arith.mulf %0, %0 : vector<8x8x96xf32>
    %cst = arith.constant 0.000000e+00 : f32
    %5 = vector.broadcast %cst : f32 to vector<8x8x96xf32>
    %6 = arith.select %3, %4, %5 : vector<8x8x96xi1>, vector<8x8x96xf32>
    %cst_2 = arith.constant dense<0.000000e+00> : vector<8x8xf32>
    %7 = vector.multi_reduction <add>, %6, %cst_2 [2] : vector<8x8x96xf32> to vector<8x8xf32>
    %8 = vector.shape_cast %7 : vector<8x8xf32> to vector<8x8x1xf32>
    %cst_3 = arith.constant 0.000000e+00 : f32
    %9 = vector.broadcast %cst_3 : f32 to vector<8x8x96xf32>
    %10 = arith.select %3, %9, %4 : vector<8x8x96xi1>, vector<8x8x96xf32>
    %cst_4 = arith.constant dense<0.000000e+00> : vector<8x8xf32>
    %11 = vector.multi_reduction <add>, %10, %cst_4 [2] : vector<8x8x96xf32> to vector<8x8xf32>
    %12 = vector.shape_cast %11 : vector<8x8xf32> to vector<8x8x1xf32>
    %13 = math.sqrt %8 : vector<8x8x1xf32>
    %cst_5 = arith.constant 1.000000e-07 : f32
    %14 = vector.broadcast %cst_5 : f32 to vector<8x8x1xf32>
    %15 = arith.addf %13, %14 : vector<8x8x1xf32>
    %cst_6 = arith.constant 1.000000e+00 : f32
    %16 = vector.broadcast %cst_6 : f32 to vector<8x8x1xf32>
    %17 = arith.divf %16, %15 : vector<8x8x1xf32>
    %18 = math.rsqrt %12 : vector<8x8x1xf32>
    %19 = vector.shape_cast %17 : vector<8x8x1xf32> to vector<8x8x1xf32>
    %20 = vector.broadcast %19 : vector<8x8x1xf32> to vector<8x8x96xf32>
    %21 = vector.shape_cast %18 : vector<8x8x1xf32> to vector<8x8x1xf32>
    %22 = vector.broadcast %21 : vector<8x8x1xf32> to vector<8x8x96xf32>
    %23 = arith.select %3, %20, %22 : vector<8x8x96xi1>, vector<8x8x96xf32>
    %24 = arith.mulf %0, %23 : vector<8x8x96xf32>
    %25 = vector.shape_cast %24 : vector<8x8x96xf32> to vector<64x96xf32>
    %c0_7 = arith.constant 0 : index
    %c0_8 = arith.constant 0 : index
    %26 = vector.load %arg2[%c0_7, %c0_8] : memref<96x128xf32, #tpu.memory_space<vmem>>, vector<96x128xf32>
    %27 = tpu.iota {dimensions = array<i32: 0>} : vector<96x128xi32>
    %c32_i32_9 = arith.constant 32 : i32
    %28 = vector.broadcast %c32_i32_9 : i32 to vector<96x128xi32>
    %29 = arith.cmpi slt, %27, %28 : vector<96x128xi32>
    %30 = arith.mulf %26, %26 : vector<96x128xf32>
    %cst_10 = arith.constant 0.000000e+00 : f32
    %31 = vector.broadcast %cst_10 : f32 to vector<96x128xf32>
    %32 = arith.select %29, %30, %31 : vector<96x128xi1>, vector<96x128xf32>
    %cst_11 = arith.constant dense<0.000000e+00> : vector<128xf32>
    %33 = vector.multi_reduction <add>, %32, %cst_11 [0] : vector<96x128xf32> to vector<128xf32>
    %34 = vector.shape_cast %33 : vector<128xf32> to vector<1x128xf32>
    %cst_12 = arith.constant 0.000000e+00 : f32
    %35 = vector.broadcast %cst_12 : f32 to vector<96x128xf32>
    %36 = arith.select %29, %35, %30 : vector<96x128xi1>, vector<96x128xf32>
    %cst_13 = arith.constant dense<0.000000e+00> : vector<128xf32>
    %37 = vector.multi_reduction <add>, %36, %cst_13 [0] : vector<96x128xf32> to vector<128xf32>
    %38 = vector.shape_cast %37 : vector<128xf32> to vector<1x128xf32>
    %39 = math.sqrt %34 : vector<1x128xf32>
    %cst_14 = arith.constant 1.000000e-07 : f32
    %40 = vector.broadcast %cst_14 : f32 to vector<1x128xf32>
    %41 = arith.addf %39, %40 : vector<1x128xf32>
    %cst_15 = arith.constant 1.000000e+00 : f32
    %42 = vector.broadcast %cst_15 : f32 to vector<1x128xf32>
    %43 = arith.divf %42, %41 : vector<1x128xf32>
    %44 = math.rsqrt %38 : vector<1x128xf32>
    %45 = vector.broadcast %43 : vector<1x128xf32> to vector<96x128xf32>
    %46 = arith.mulf %26, %45 : vector<96x128xf32>
    %cst_16 = arith.constant 0.000000e+00 : f32
    %47 = vector.broadcast %cst_16 : f32 to vector<96x128xf32>
    %48 = arith.select %29, %46, %47 : vector<96x128xi1>, vector<96x128xf32>
    %49 = vector.broadcast %44 : vector<1x128xf32> to vector<96x128xf32>
    %50 = arith.mulf %26, %49 : vector<96x128xf32>
    %cst_17 = arith.constant 0.000000e+00 : f32
    %51 = vector.broadcast %cst_17 : f32 to vector<96x128xf32>
    %52 = arith.select %29, %51, %50 : vector<96x128xi1>, vector<96x128xf32>
    %53 = tpu.concatenate %48, %52 in 1 : vector<96x128xf32>, vector<96x128xf32> -> vector<96x256xf32>
    %cst_18 = arith.constant dense<0.000000e+00> : vector<64x256xf32>
    %54 = tpu.matmul %25, %53, %cst_18 {dimension_numbers = #tpu.dot_dimension_numbers<[1], [0], [0], [1], [0, 0, 1, 1], [], []>} : vector<64x96xf32>, vector<96x256xf32>, vector<64x256xf32> -> vector<64x256xf32>
    %55 = vector.extract_strided_slice %54 {offsets = [0, 0], sizes = [64, 128], strides = [1, 1]} : vector<64x256xf32> to vector<64x128xf32>
    %56 = vector.shape_cast %55 : vector<64x128xf32> to vector<8x8x128xf32>
    %57 = vector.extract_strided_slice %54 {offsets = [0, 128], sizes = [64, 128], strides = [1, 1]} : vector<64x256xf32> to vector<64x128xf32>
    %58 = vector.shape_cast %57 : vector<64x128xf32> to vector<8x8x128xf32>
    %59 = tpu.iota {dimensions = array<i32: 2>} : vector<8x8x128xi32>
    %60 = tpu.iota {dimensions = array<i32: 0>} : vector<8x8x128xi32>
    %c16_i32 = arith.constant 16 : i32
    %61 = vector.broadcast %c16_i32 : i32 to vector<8x8x128xi32>
    %62 = arith.muli %60, %61 : vector<8x8x128xi32>
    %63 = arith.cmpi sge, %59, %62 : vector<8x8x128xi32>
    %c16_i32_19 = arith.constant 16 : i32
    %64 = vector.broadcast %c16_i32_19 : i32 to vector<8x8x128xi32>
    %65 = arith.addi %62, %64 : vector<8x8x128xi32>
    %66 = arith.cmpi slt, %59, %65 : vector<8x8x128xi32>
    %67 = arith.andi %63, %66 : vector<8x8x128xi1>
    %cst_20 = arith.constant 0xFF800000 : f32
    %68 = vector.broadcast %cst_20 : f32 to vector<8x8x128xf32>
    %69 = arith.select %67, %56, %68 : vector<8x8x128xi1>, vector<8x8x128xf32>
    %cst_21 = arith.constant 0xFF800000 : f32
    %70 = vector.broadcast %cst_21 : f32 to vector<8x8x128xf32>
    %71 = arith.select %67, %58, %70 : vector<8x8x128xi1>, vector<8x8x128xf32>
    %cst_22 = arith.constant dense<0xFF800000> : vector<8x8xf32>
    %72 = vector.multi_reduction <maximumf>, %69, %cst_22 [2] : vector<8x8x128xf32> to vector<8x8xf32>
    %73 = vector.shape_cast %72 : vector<8x8xf32> to vector<8x8x1xf32>
    %74 = vector.shape_cast %73 : vector<8x8x1xf32> to vector<8x8xf32>
    %75 = vector.broadcast %73 : vector<8x8x1xf32> to vector<8x8x128xf32>
    %76 = arith.cmpf oeq, %69, %75 : vector<8x8x128xf32>
    %c128_i32 = arith.constant 128 : i32
    %77 = vector.broadcast %c128_i32 : i32 to vector<8x8x128xi32>
    %78 = arith.select %76, %59, %77 : vector<8x8x128xi1>, vector<8x8x128xi32>
    %cst_23 = arith.constant dense<2147483647> : vector<8x8xi32>
    %79 = vector.multi_reduction <minsi>, %78, %cst_23 [2] : vector<8x8x128xi32> to vector<8x8xi32>
    %80 = vector.shape_cast %79 : vector<8x8xi32> to vector<8x8x1xi32>
    %81 = vector.broadcast %80 : vector<8x8x1xi32> to vector<8x8x128xi32>
    %82 = arith.cmpi eq, %59, %81 : vector<8x8x128xi32>
    %cst_24 = arith.constant 0xFF800000 : f32
    %83 = vector.broadcast %cst_24 : f32 to vector<8x8x128xf32>
    %84 = arith.select %82, %83, %69 : vector<8x8x128xi1>, vector<8x8x128xf32>
    %cst_25 = arith.constant dense<0xFF800000> : vector<8x8xf32>
    %85 = vector.multi_reduction <maximumf>, %84, %cst_25 [2] : vector<8x8x128xf32> to vector<8x8xf32>
    %86 = vector.shape_cast %85 : vector<8x8xf32> to vector<8x8x1xf32>
    %87 = vector.shape_cast %86 : vector<8x8x1xf32> to vector<8x8xf32>
    %88 = arith.addf %74, %87 : vector<8x8xf32>
    %89 = vector.broadcast %86 : vector<8x8x1xf32> to vector<8x8x128xf32>
    %90 = arith.cmpf oeq, %84, %89 : vector<8x8x128xf32>
    %c128_i32_26 = arith.constant 128 : i32
    %91 = vector.broadcast %c128_i32_26 : i32 to vector<8x8x128xi32>
    %92 = arith.select %90, %59, %91 : vector<8x8x128xi1>, vector<8x8x128xi32>
    %cst_27 = arith.constant dense<2147483647> : vector<8x8xi32>
    %93 = vector.multi_reduction <minsi>, %92, %cst_27 [2] : vector<8x8x128xi32> to vector<8x8xi32>
    %94 = vector.shape_cast %93 : vector<8x8xi32> to vector<8x8x1xi32>
    %95 = vector.broadcast %94 : vector<8x8x1xi32> to vector<8x8x128xi32>
    %96 = arith.cmpi eq, %59, %95 : vector<8x8x128xi32>
    %cst_28 = arith.constant 0xFF800000 : f32
    %97 = vector.broadcast %cst_28 : f32 to vector<8x8x128xf32>
    %98 = arith.select %96, %97, %84 : vector<8x8x128xi1>, vector<8x8x128xf32>
    %cst_29 = arith.constant dense<0xFF800000> : vector<8x8xf32>
    %99 = vector.multi_reduction <maximumf>, %98, %cst_29 [2] : vector<8x8x128xf32> to vector<8x8xf32>
    %100 = vector.shape_cast %99 : vector<8x8xf32> to vector<8x8x1xf32>
    %101 = vector.shape_cast %100 : vector<8x8x1xf32> to vector<8x8xf32>
    %102 = arith.addf %88, %101 : vector<8x8xf32>
    %103 = vector.broadcast %100 : vector<8x8x1xf32> to vector<8x8x128xf32>
    %104 = arith.cmpf oeq, %98, %103 : vector<8x8x128xf32>
    %c128_i32_30 = arith.constant 128 : i32
    %105 = vector.broadcast %c128_i32_30 : i32 to vector<8x8x128xi32>
    %106 = arith.select %104, %59, %105 : vector<8x8x128xi1>, vector<8x8x128xi32>
    %cst_31 = arith.constant dense<2147483647> : vector<8x8xi32>
    %107 = vector.multi_reduction <minsi>, %106, %cst_31 [2] : vector<8x8x128xi32> to vector<8x8xi32>
    %108 = vector.shape_cast %107 : vector<8x8xi32> to vector<8x8x1xi32>
    %109 = vector.broadcast %108 : vector<8x8x1xi32> to vector<8x8x128xi32>
    %110 = arith.cmpi eq, %59, %109 : vector<8x8x128xi32>
    %cst_32 = arith.constant 0xFF800000 : f32
    %111 = vector.broadcast %cst_32 : f32 to vector<8x8x128xf32>
    %112 = arith.select %110, %111, %98 : vector<8x8x128xi1>, vector<8x8x128xf32>
    %cst_33 = arith.constant dense<0xFF800000> : vector<8x8xf32>
    %113 = vector.multi_reduction <maximumf>, %112, %cst_33 [2] : vector<8x8x128xf32> to vector<8x8xf32>
    %114 = vector.shape_cast %113 : vector<8x8xf32> to vector<8x8x1xf32>
    %115 = vector.shape_cast %114 : vector<8x8x1xf32> to vector<8x8xf32>
    %116 = arith.addf %102, %115 : vector<8x8xf32>
    %117 = vector.broadcast %114 : vector<8x8x1xf32> to vector<8x8x128xf32>
    %118 = arith.cmpf oeq, %112, %117 : vector<8x8x128xf32>
    %c128_i32_34 = arith.constant 128 : i32
    %119 = vector.broadcast %c128_i32_34 : i32 to vector<8x8x128xi32>
    %120 = arith.select %118, %59, %119 : vector<8x8x128xi1>, vector<8x8x128xi32>
    %cst_35 = arith.constant dense<2147483647> : vector<8x8xi32>
    %121 = vector.multi_reduction <minsi>, %120, %cst_35 [2] : vector<8x8x128xi32> to vector<8x8xi32>
    %122 = vector.shape_cast %121 : vector<8x8xi32> to vector<8x8x1xi32>
    %123 = vector.broadcast %122 : vector<8x8x1xi32> to vector<8x8x128xi32>
    %124 = arith.cmpi eq, %59, %123 : vector<8x8x128xi32>
    %cst_36 = arith.constant 0xFF800000 : f32
    %125 = vector.broadcast %cst_36 : f32 to vector<8x8x128xf32>
    %126 = arith.select %124, %125, %112 : vector<8x8x128xi1>, vector<8x8x128xf32>
    %cst_37 = arith.constant dense<0xFF800000> : vector<8x8xf32>
    %127 = vector.multi_reduction <maximumf>, %126, %cst_37 [2] : vector<8x8x128xf32> to vector<8x8xf32>
    %128 = vector.shape_cast %127 : vector<8x8xf32> to vector<8x8x1xf32>
    %129 = vector.shape_cast %128 : vector<8x8x1xf32> to vector<8x8xf32>
    %130 = arith.addf %116, %129 : vector<8x8xf32>
    %cst_38 = arith.constant 2.000000e-01 : f32
    %131 = vector.broadcast %cst_38 : f32 to vector<8x8xf32>
    %132 = arith.mulf %130, %131 : vector<8x8xf32>
    %cst_39 = arith.constant dense<0xFF800000> : vector<8x8xf32>
    %133 = vector.multi_reduction <maximumf>, %71, %cst_39 [2] : vector<8x8x128xf32> to vector<8x8xf32>
    %134 = vector.shape_cast %133 : vector<8x8xf32> to vector<8x8x1xf32>
    %135 = vector.shape_cast %134 : vector<8x8x1xf32> to vector<8x8xf32>
    %136 = vector.broadcast %134 : vector<8x8x1xf32> to vector<8x8x128xf32>
    %137 = arith.cmpf oeq, %71, %136 : vector<8x8x128xf32>
    %c128_i32_40 = arith.constant 128 : i32
    %138 = vector.broadcast %c128_i32_40 : i32 to vector<8x8x128xi32>
    %139 = arith.select %137, %59, %138 : vector<8x8x128xi1>, vector<8x8x128xi32>
    %cst_41 = arith.constant dense<2147483647> : vector<8x8xi32>
    %140 = vector.multi_reduction <minsi>, %139, %cst_41 [2] : vector<8x8x128xi32> to vector<8x8xi32>
    %141 = vector.shape_cast %140 : vector<8x8xi32> to vector<8x8x1xi32>
    %142 = vector.broadcast %141 : vector<8x8x1xi32> to vector<8x8x128xi32>
    %143 = arith.cmpi eq, %59, %142 : vector<8x8x128xi32>
    %cst_42 = arith.constant 0xFF800000 : f32
    %144 = vector.broadcast %cst_42 : f32 to vector<8x8x128xf32>
    %145 = arith.select %143, %144, %71 : vector<8x8x128xi1>, vector<8x8x128xf32>
    %cst_43 = arith.constant dense<0xFF800000> : vector<8x8xf32>
    %146 = vector.multi_reduction <maximumf>, %145, %cst_43 [2] : vector<8x8x128xf32> to vector<8x8xf32>
    %147 = vector.shape_cast %146 : vector<8x8xf32> to vector<8x8x1xf32>
    %148 = vector.shape_cast %147 : vector<8x8x1xf32> to vector<8x8xf32>
    %149 = arith.addf %135, %148 : vector<8x8xf32>
    %150 = vector.broadcast %147 : vector<8x8x1xf32> to vector<8x8x128xf32>
    %151 = arith.cmpf oeq, %145, %150 : vector<8x8x128xf32>
    %c128_i32_44 = arith.constant 128 : i32
    %152 = vector.broadcast %c128_i32_44 : i32 to vector<8x8x128xi32>
    %153 = arith.select %151, %59, %152 : vector<8x8x128xi1>, vector<8x8x128xi32>
    %cst_45 = arith.constant dense<2147483647> : vector<8x8xi32>
    %154 = vector.multi_reduction <minsi>, %153, %cst_45 [2] : vector<8x8x128xi32> to vector<8x8xi32>
    %155 = vector.shape_cast %154 : vector<8x8xi32> to vector<8x8x1xi32>
    %156 = vector.broadcast %155 : vector<8x8x1xi32> to vector<8x8x128xi32>
    %157 = arith.cmpi eq, %59, %156 : vector<8x8x128xi32>
    %cst_46 = arith.constant 0xFF800000 : f32
    %158 = vector.broadcast %cst_46 : f32 to vector<8x8x128xf32>
    %159 = arith.select %157, %158, %145 : vector<8x8x128xi1>, vector<8x8x128xf32>
    %cst_47 = arith.constant dense<0xFF800000> : vector<8x8xf32>
    %160 = vector.multi_reduction <maximumf>, %159, %cst_47 [2] : vector<8x8x128xf32> to vector<8x8xf32>
    %161 = vector.shape_cast %160 : vector<8x8xf32> to vector<8x8x1xf32>
    %162 = vector.shape_cast %161 : vector<8x8x1xf32> to vector<8x8xf32>
    %163 = arith.addf %149, %162 : vector<8x8xf32>
    %164 = vector.broadcast %161 : vector<8x8x1xf32> to vector<8x8x128xf32>
    %165 = arith.cmpf oeq, %159, %164 : vector<8x8x128xf32>
    %c128_i32_48 = arith.constant 128 : i32
    %166 = vector.broadcast %c128_i32_48 : i32 to vector<8x8x128xi32>
    %167 = arith.select %165, %59, %166 : vector<8x8x128xi1>, vector<8x8x128xi32>
    %cst_49 = arith.constant dense<2147483647> : vector<8x8xi32>
    %168 = vector.multi_reduction <minsi>, %167, %cst_49 [2] : vector<8x8x128xi32> to vector<8x8xi32>
    %169 = vector.shape_cast %168 : vector<8x8xi32> to vector<8x8x1xi32>
    %170 = vector.broadcast %169 : vector<8x8x1xi32> to vector<8x8x128xi32>
    %171 = arith.cmpi eq, %59, %170 : vector<8x8x128xi32>
    %cst_50 = arith.constant 0xFF800000 : f32
    %172 = vector.broadcast %cst_50 : f32 to vector<8x8x128xf32>
    %173 = arith.select %171, %172, %159 : vector<8x8x128xi1>, vector<8x8x128xf32>
    %cst_51 = arith.constant dense<0xFF800000> : vector<8x8xf32>
    %174 = vector.multi_reduction <maximumf>, %173, %cst_51 [2] : vector<8x8x128xf32> to vector<8x8xf32>
    %175 = vector.shape_cast %174 : vector<8x8xf32> to vector<8x8x1xf32>
    %176 = vector.shape_cast %175 : vector<8x8x1xf32> to vector<8x8xf32>
    %177 = arith.addf %163, %176 : vector<8x8xf32>
    %178 = vector.broadcast %175 : vector<8x8x1xf32> to vector<8x8x128xf32>
    %179 = arith.cmpf oeq, %173, %178 : vector<8x8x128xf32>
    %c128_i32_52 = arith.constant 128 : i32
    %180 = vector.broadcast %c128_i32_52 : i32 to vector<8x8x128xi32>
    %181 = arith.select %179, %59, %180 : vector<8x8x128xi1>, vector<8x8x128xi32>
    %cst_53 = arith.constant dense<2147483647> : vector<8x8xi32>
    %182 = vector.multi_reduction <minsi>, %181, %cst_53 [2] : vector<8x8x128xi32> to vector<8x8xi32>
    %183 = vector.shape_cast %182 : vector<8x8xi32> to vector<8x8x1xi32>
    %184 = vector.broadcast %183 : vector<8x8x1xi32> to vector<8x8x128xi32>
    %185 = arith.cmpi eq, %59, %184 : vector<8x8x128xi32>
    %cst_54 = arith.constant 0xFF800000 : f32
    %186 = vector.broadcast %cst_54 : f32 to vector<8x8x128xf32>
    %187 = arith.select %185, %186, %173 : vector<8x8x128xi1>, vector<8x8x128xf32>
    %cst_55 = arith.constant dense<0xFF800000> : vector<8x8xf32>
    %188 = vector.multi_reduction <maximumf>, %187, %cst_55 [2] : vector<8x8x128xf32> to vector<8x8xf32>
    %189 = vector.shape_cast %188 : vector<8x8xf32> to vector<8x8x1xf32>
    %190 = vector.shape_cast %189 : vector<8x8x1xf32> to vector<8x8xf32>
    %191 = arith.addf %177, %190 : vector<8x8xf32>
    %cst_56 = arith.constant 2.000000e-01 : f32
    %192 = vector.broadcast %cst_56 : f32 to vector<8x8xf32>
    %193 = arith.mulf %191, %192 : vector<8x8xf32>
    %c0_57 = arith.constant 0 : index
    %c0_58 = arith.constant 0 : index
    %c0_59 = arith.constant 0 : index
    %194 = vector.load %arg3[%c0_57, %c0_58, %c0_59] : memref<8x8x1xi32, #tpu.memory_space<vmem>>, vector<8x8x1xi32>
    %c0_60 = arith.constant 0 : index
    %c0_61 = arith.constant 0 : index
    %c0_62 = arith.constant 0 : index
    %195 = vector.load %arg4[%c0_60, %c0_61, %c0_62] : memref<8x1x16xi32, #tpu.memory_space<vmem>>, vector<8x1x16xi32>
    %196 = vector.broadcast %194 : vector<8x8x1xi32> to vector<8x8x16xi32>
    %197 = vector.broadcast %195 : vector<8x1x16xi32> to vector<8x8x16xi32>
    %198 = arith.cmpi eq, %196, %197 : vector<8x8x16xi32>
    %c0_i32 = arith.constant 0 : i32
    %199 = vector.broadcast %c0_i32 : i32 to vector<8x8x1xi32>
    %200 = arith.cmpi ne, %194, %199 : vector<8x8x1xi32>
    %201 = vector.broadcast %200 : vector<8x8x1xi1> to vector<8x8x16xi1>
    %202 = arith.andi %198, %201 : vector<8x8x16xi1>
    %203 = arith.extui %202 : vector<8x8x16xi1> to vector<8x8x16xi32>
    %204 = arith.sitofp %203 : vector<8x8x16xi32> to vector<8x8x16xf32>
    %cst_63 = arith.constant dense<0.000000e+00> : vector<8x8xf32>
    %205 = vector.multi_reduction <add>, %204, %cst_63 [2] : vector<8x8x16xf32> to vector<8x8xf32>
    %cst_64 = arith.constant 0.000000e+00 : f32
    %206 = vector.broadcast %cst_64 : f32 to vector<8x8xf32>
    %207 = arith.cmpf ogt, %205, %206 : vector<8x8xf32>
    %208 = arith.extui %207 : vector<8x8xi1> to vector<8x8xi32>
    %209 = arith.sitofp %208 : vector<8x8xi32> to vector<8x8xf32>
    %cst_65 = arith.constant 5.000000e+00 : f32
    %210 = vector.broadcast %cst_65 : f32 to vector<8x8xf32>
    %211 = arith.minimumf %205, %210 : vector<8x8xf32>
    %cst_66 = arith.constant 2.000000e-01 : f32
    %212 = vector.broadcast %cst_66 : f32 to vector<8x8xf32>
    %213 = arith.mulf %211, %212 : vector<8x8xf32>
    %c0_67 = arith.constant 0 : index
    %214 = memref.load %arg7[%c0_67] : memref<6xf32, #tpu.memory_space<smem>>
    %215 = vector.broadcast %214 : f32 to vector<8x8xf32>
    %216 = arith.mulf %215, %74 : vector<8x8xf32>
    %c1 = arith.constant 1 : index
    %217 = memref.load %arg7[%c1] : memref<6xf32, #tpu.memory_space<smem>>
    %218 = vector.broadcast %217 : f32 to vector<8x8xf32>
    %219 = arith.mulf %218, %132 : vector<8x8xf32>
    %220 = arith.addf %216, %219 : vector<8x8xf32>
    %c2 = arith.constant 2 : index
    %221 = memref.load %arg7[%c2] : memref<6xf32, #tpu.memory_space<smem>>
    %222 = vector.broadcast %221 : f32 to vector<8x8xf32>
    %223 = arith.mulf %222, %135 : vector<8x8xf32>
    %224 = arith.addf %220, %223 : vector<8x8xf32>
    %c3 = arith.constant 3 : index
    %225 = memref.load %arg7[%c3] : memref<6xf32, #tpu.memory_space<smem>>
    %226 = vector.broadcast %225 : f32 to vector<8x8xf32>
    %227 = arith.mulf %226, %193 : vector<8x8xf32>
    %228 = arith.addf %224, %227 : vector<8x8xf32>
    %c4 = arith.constant 4 : index
    %229 = memref.load %arg7[%c4] : memref<6xf32, #tpu.memory_space<smem>>
    %230 = vector.broadcast %229 : f32 to vector<8x8xf32>
    %231 = arith.mulf %230, %209 : vector<8x8xf32>
    %232 = arith.addf %228, %231 : vector<8x8xf32>
    %c5 = arith.constant 5 : index
    %233 = memref.load %arg7[%c5] : memref<6xf32, #tpu.memory_space<smem>>
    %234 = vector.broadcast %233 : f32 to vector<8x8xf32>
    %235 = arith.mulf %234, %213 : vector<8x8xf32>
    %236 = arith.addf %232, %235 : vector<8x8xf32>
    %c0_68 = arith.constant 0 : index
    %237 = memref.load %arg8[%c0_68] : memref<1xf32, #tpu.memory_space<smem>>
    %238 = vector.broadcast %237 : f32 to vector<8x8xf32>
    %239 = arith.addf %236, %238 : vector<8x8xf32>
    %cst_69 = arith.constant 0.000000e+00 : f32
    %240 = vector.broadcast %cst_69 : f32 to vector<8x8xf32>
    %241 = arith.cmpf oge, %239, %240 : vector<8x8xf32>
    %cst_70 = arith.constant 0.00999999977 : f32
    %242 = vector.broadcast %cst_70 : f32 to vector<8x8xf32>
    %243 = arith.mulf %242, %239 : vector<8x8xf32>
    %244 = arith.select %241, %239, %243 : vector<8x8xi1>, vector<8x8xf32>
    %c0_71 = arith.constant 0 : index
    %c0_72 = arith.constant 0 : index
    %c0_73 = arith.constant 0 : index
    %245 = vector.load %arg5[%c0_71, %c0_72, %c0_73] : memref<8x1x8xf32, #tpu.memory_space<vmem>>, vector<8x1x8xf32>
    %246 = vector.shape_cast %245 : vector<8x1x8xf32> to vector<8x8xf32>
    %cst_74 = arith.constant dense<0xFF800000> : vector<8xf32>
    %247 = vector.multi_reduction <maximumf>, %246, %cst_74 [1] : vector<8x8xf32> to vector<8xf32>
    %248 = vector.shape_cast %247 : vector<8xf32> to vector<8x1xf32>
    %249 = vector.broadcast %248 : vector<8x1xf32> to vector<8x8xf32>
    %250 = arith.subf %246, %249 : vector<8x8xf32>
    %251 = math.exp %250 : vector<8x8xf32>
    %cst_75 = arith.constant dense<0.000000e+00> : vector<8xf32>
    %252 = vector.multi_reduction <add>, %251, %cst_75 [1] : vector<8x8xf32> to vector<8xf32>
    %253 = vector.shape_cast %252 : vector<8xf32> to vector<8x1xf32>
    %254 = vector.broadcast %253 : vector<8x1xf32> to vector<8x8xf32>
    %255 = arith.divf %251, %254 : vector<8x8xf32>
    %256 = arith.mulf %255, %244 : vector<8x8xf32>
    %cst_76 = arith.constant dense<0.000000e+00> : vector<8xf32>
    %257 = vector.multi_reduction <add>, %256, %cst_76 [1] : vector<8x8xf32> to vector<8xf32>
    %258 = vector.shape_cast %257 : vector<8xf32> to vector<8x1xf32>
    %c0_77 = arith.constant 0 : index
    %c0_78 = arith.constant 0 : index
    %c0_79 = arith.constant 0 : index
    %259 = vector.load %arg6[%c0_77, %c0_78, %c0_79] : memref<8x1x4xf32, #tpu.memory_space<vmem>>, vector<8x1x4xf32>
    %260 = vector.shape_cast %259 : vector<8x1x4xf32> to vector<8x4xf32>
    %c0_80 = arith.constant 0 : index
    %261 = memref.load %arg9[%c0_80] : memref<5xf32, #tpu.memory_space<smem>>
    %262 = vector.broadcast %261 : f32 to vector<8x1xf32>
    %263 = arith.mulf %262, %258 : vector<8x1xf32>
    %c1_81 = arith.constant 1 : index
    %264 = memref.load %arg9[%c1_81] : memref<5xf32, #tpu.memory_space<smem>>
    %265 = vector.extract_strided_slice %260 {offsets = [0, 0], sizes = [8, 1], strides = [1, 1]} : vector<8x4xf32> to vector<8x1xf32>
    %266 = vector.broadcast %264 : f32 to vector<8x1xf32>
    %267 = arith.mulf %266, %265 : vector<8x1xf32>
    %268 = arith.addf %263, %267 : vector<8x1xf32>
    %c2_82 = arith.constant 2 : index
    %269 = memref.load %arg9[%c2_82] : memref<5xf32, #tpu.memory_space<smem>>
    %270 = vector.extract_strided_slice %260 {offsets = [0, 1], sizes = [8, 1], strides = [1, 1]} : vector<8x4xf32> to vector<8x1xf32>
    %271 = vector.broadcast %269 : f32 to vector<8x1xf32>
    %272 = arith.mulf %271, %270 : vector<8x1xf32>
    %273 = arith.addf %268, %272 : vector<8x1xf32>
    %c3_83 = arith.constant 3 : index
    %274 = memref.load %arg9[%c3_83] : memref<5xf32, #tpu.memory_space<smem>>
    %275 = vector.extract_strided_slice %260 {offsets = [0, 2], sizes = [8, 1], strides = [1, 1]} : vector<8x4xf32> to vector<8x1xf32>
    %276 = vector.broadcast %274 : f32 to vector<8x1xf32>
    %277 = arith.mulf %276, %275 : vector<8x1xf32>
    %278 = arith.addf %273, %277 : vector<8x1xf32>
    %c4_84 = arith.constant 4 : index
    %279 = memref.load %arg9[%c4_84] : memref<5xf32, #tpu.memory_space<smem>>
    %280 = vector.extract_strided_slice %260 {offsets = [0, 3], sizes = [8, 1], strides = [1, 1]} : vector<8x4xf32> to vector<8x1xf32>
    %281 = vector.broadcast %279 : f32 to vector<8x1xf32>
    %282 = arith.mulf %281, %280 : vector<8x1xf32>
    %283 = arith.addf %278, %282 : vector<8x1xf32>
    %c0_85 = arith.constant 0 : index
    %284 = memref.load %arg10[%c0_85] : memref<1xf32, #tpu.memory_space<smem>>
    %285 = vector.broadcast %284 : f32 to vector<8x1xf32>
    %286 = arith.addf %283, %285 : vector<8x1xf32>
    %287 = tpu.transpose %286, [1, 0] : vector<8x1xf32> -> vector<1x8xf32>
    %c0_86 = arith.constant 0 : index
    %c0_87 = arith.constant 0 : index
    %c0_88 = arith.constant 0 : index
    %288 = vector.load %arg11[%c0_86, %c0_87, %c0_88] : memref<1x1x8xf32, #tpu.memory_space<vmem>>, vector<1x1x8xf32>
    %289 = vector.shape_cast %288 : vector<1x1x8xf32> to vector<1x8xf32>
    %290 = vector.shape_cast %287 : vector<1x8xf32> to vector<1x1x8xf32>
    tpu.vector_store %arg11[%c0_86, %c0_87, %c0_88], %290 {strides = array<i32>} : memref<1x1x8xf32, #tpu.memory_space<vmem>>, vector<1x1x8xf32>,
    return
  }
  func.func @transform_0(%arg0: i32) -> (i32, i32, i32) {
    %c0_i32 = arith.constant 0 : i32
    %c0_i32_0 = arith.constant 0 : i32
    %c0_i32_1 = arith.constant 0 : i32
    return %arg0, %c0_i32, %c0_i32_0 : i32, i32, i32
  }
  func.func @transform_1(%arg0: i32) -> (i32, i32) {
    %c0_i32 = arith.constant 0 : i32
    %c0_i32_0 = arith.constant 0 : i32
    return %c0_i32, %arg0 : i32, i32
  }
  func.func @transform_2(%arg0: i32) -> (i32, i32, i32) {
    %c0_i32 = arith.constant 0 : i32
    %c0_i32_0 = arith.constant 0 : i32
    %c0_i32_1 = arith.constant 0 : i32
    return %arg0, %c0_i32, %c0_i32_0 : i32, i32, i32
  }
  func.func @transform_3(%arg0: i32) -> (i32, i32, i32) {
    %c0_i32 = arith.constant 0 : i32
    %c0_i32_0 = arith.constant 0 : i32
    %c0_i32_1 = arith.constant 0 : i32
    return %arg0, %c0_i32, %c0_i32_0 : i32, i32, i32
  }
  func.func @transform_4(%arg0: i32) -> (i32, i32, i32) {
    %c0_i32 = arith.constant 0 : i32
    %c0_i32_0 = arith.constant 0 : i32
    %c0_i32_1 = arith.constant 0 : i32
    return %arg0, %c0_i32, %c0_i32_0 : i32, i32, i32
  }
  func.func @transform_5(%arg0: i32) -> (i32, i32, i32) {
    %c0_i32 = arith.constant 0 : i32
    %c0_i32_0 = arith.constant 0 : i32
    %c0_i32_1 = arith.constant 0 : i32
    return %arg0, %c0_i32, %c0_i32_0 : i32, i32, i32
  }
  func.func @transform_6(%arg0: i32) -> i32 {
    %c0_i32 = arith.constant 0 : i32
    %c0_i32_0 = arith.constant 0 : i32
    return %c0_i32 : i32
  }
  func.func @transform_7(%arg0: i32) -> i32 {
    %c0_i32 = arith.constant 0 : i32
    %c0_i32_0 = arith.constant 0 : i32
    return %c0_i32 : i32
  }
  func.func @transform_8(%arg0: i32) -> i32 {
    %c0_i32 = arith.constant 0 : i32
    %c0_i32_0 = arith.constant 0 : i32
    return %c0_i32 : i32
  }
  func.func @transform_9(%arg0: i32) -> i32 {
    %c0_i32 = arith.constant 0 : i32
    %c0_i32_0 = arith.constant 0 : i32
    return %c0_i32 : i32
  }
  func.func @transform_10(%arg0: i32) -> (i32, i32, i32) {
    %c0_i32 = arith.constant 0 : i32
    %c0_i32_0 = arith.constant 0 : i32
    %c0_i32_1 = arith.constant 0 : i32
    return %arg0, %c0_i32, %c0_i32_0 : i32, i32, i32
  }
}

</mosaic_0001>

<llo_original>
// kernel: custom-call.8
$region0: #{custom-call.8}
  %s0 = inlined_call_operand.vmem [shape: bf16[16,2,16,32], index: 0, kind: output, shape index: {}]

// kernel: custom-call.1
$region0: #{custom-call.1}
  %s0 = inlined_call_operand.vmem [shape: f32[2,16,32], index: 0, kind: output, shape index: {}]

// kernel: custom-call
$region0: #{custom-call}
  %s0 = inlined_call_operand.vmem [shape: bf16[2,16,32], index: 0, kind: output, shape index: {}]

// kernel: custom-call.9
$region0: #{custom-call.9}
  %s0 = inlined_call_operand.vmem [shape: f32[16,2,16,32], index: 0, kind: output, shape index: {}]

// kernel: positdrmm_forward.1
$region0: #{positdrmm_forward.1}
  #allocation0 [shape = 'u32[]', space=smem, size = 0x4, offset = 0x4, fixed_abs, tag = 'smem constant byte address 0x4 - core index']
  #allocation1 [shape = 'u32[144,128]{1,0:T(1,128)}', space=vmem, size = 0x12000, scoped, tag = 'internal scratch']
  #allocation2 [shape = 'f32[1]{0:T(128)S(6)}', space=smem, size = 0x200, scoped, tag = 'scoped memory for positdrmm_forward.1']
  #allocation3 [shape = 'f32[1]{0:T(128)S(6)}', space=smem, size = 0x200, scoped, tag = 'scoped memory for positdrmm_forward.1']
  %s0 = inlined_call_operand.vmem [shape: f32[8,8,96], index: 0, kind: input, shape index: {}]
  %s1 = inlined_call_operand.vmem [shape: f32[96,128], index: 1, kind: input, shape index: {}]
  %s2 = inlined_call_operand.vmem [shape: s32[8,8,1], index: 2, kind: input, shape index: {}]
  %s3 = inlined_call_operand.vmem [shape: s32[8,1,16], index: 3, kind: input, shape index: {}]
  %s4 = inlined_call_operand.vmem [shape: f32[8,1,8], index: 4, kind: input, shape index: {}]
  %s5 = inlined_call_operand.vmem [shape: f32[8,1,4], index: 5, kind: input, shape index: {}]
  %s6 = inlined_call_operand.vmem [shape: f32[6], index: 6, kind: input, shape index: {}]
  %s7 = inlined_call_operand.<no memory space> [shape: f32[1], index: 7, kind: input, shape index: {}]
  %s8 = inlined_call_operand.vmem [shape: f32[5], index: 8, kind: input, shape index: {}]
  %s9 = inlined_call_operand.<no memory space> [shape: f32[1], index: 9, kind: input, shape index: {}]
  %s10 = inlined_call_operand.hbm [shape: f32[1,1,8], index: 10, kind: output, shape index: {}]
  %s11 = sld [smem:[#allocation0]]
  $region58: #{positdrmm_forward.1} parent=0
    _
  %s13 = ssub.s32 1, %s11
  %s14 = scalar_select 0, %s13, %s11
  %15 = sst [smem:[#allocation2]] %s7
  %16 = sst [smem:[#allocation3]] %s9
  $region1: #{positdrmm_forward.1} parent=0
    #allocation4 [shape = 'u8[512]{0}', space=smem, size = 0x200, scoped, tag = 'input window, operand 6, single buffered']
    #allocation5 [shape = 's32[1]{0}', space=sflag, size = 0x4, scoped, tag = 'scoped memory for positdrmm_forward.1']
    #allocation6 [shape = 's32[1]{0}', space=sflag, size = 0x4, scoped, tag = 'scoped memory for positdrmm_forward.1']
    #allocation7 [shape = 'u8[512]{0}', space=smem, size = 0x200, scoped, tag = 'input window, operand 8, single buffered']
    #allocation8 [shape = 's32[1]{0}', space=sflag, size = 0x4, scoped, tag = 'scoped memory for positdrmm_forward.1']
    #allocation9 [shape = 'u8[512]{0}', space=vmem, size = 0x400, scoped, tag = 'output window, operand 0, single buffered']
    %17 = vsyncpa [#allocation6], 0
    %18 = vsyncpa [#allocation8], 0
    %19 = vsyncpa [#allocation5], 0
    // Predicated region
    $region2: #{positdrmm_forward.1} parent=1 // pred_check
      _
    $region3: #{positdrmm_forward.1} parent=1 // pred_check_branch
      %21 = sbr.rel (0) target = $region5
    $region4: #{positdrmm_forward.1} parent=1 // pred_region
      _
    $region5: #{positdrmm_forward.1} parent=1 // pred_fallthru
      _
    // Predicated region
    $region6: #{positdrmm_forward.1} parent=1 // pred_check
      _
    $region7: #{positdrmm_forward.1} parent=1 // pred_check_branch
      %23 = sbr.rel (0) target = $region9
    $region8: #{positdrmm_forward.1} parent=1 // pred_region
      _
    $region9: #{positdrmm_forward.1} parent=1 // pred_fallthru
      _
    // Predicated region
    $region10: #{positdrmm_forward.1} parent=1 // pred_check
      _
    $region11: #{positdrmm_forward.1} parent=1 // pred_check_branch
      %25 = sbr.rel (0) target = $region13
    $region12: #{positdrmm_forward.1} parent=1 // pred_region
      _
    $region13: #{positdrmm_forward.1} parent=1 // pred_fallthru
      _
    // Predicated region
    $region14: #{positdrmm_forward.1} parent=1 // pred_check
      _
    $region15: #{positdrmm_forward.1} parent=1 // pred_check_branch
      %27 = sbr.rel (0) target = $region17
    $region16: #{positdrmm_forward.1} parent=1 // pred_region
      _
    $region17: #{positdrmm_forward.1} parent=1 // pred_fallthru
      _
    // Predicated region
    $region18: #{positdrmm_forward.1} parent=1 // pred_check
      _
    $region19: #{positdrmm_forward.1} parent=1 // pred_check_branch
      %29 = sbr.rel (0) target = $region21
    $region20: #{positdrmm_forward.1} parent=1 // pred_region
      _
    $region21: #{positdrmm_forward.1} parent=1 // pred_fallthru
      _
    // Predicated region
    $region22: #{positdrmm_forward.1} parent=1 // pred_check
      _
    $region23: #{positdrmm_forward.1} parent=1 // pred_check_branch
      %31 = sbr.rel (0) target = $region25
    $region24: #{positdrmm_forward.1} parent=1 // pred_region
      _
    $region25: #{positdrmm_forward.1} parent=1 // pred_fallthru
      _
    // Predicated region
    $region26: #{positdrmm_forward.1} parent=1 // pred_check
      _
    $region27: #{positdrmm_forward.1} parent=1 // pred_check_branch
      %33 = sbr.rel (0) target = $region29
    $region28: #{positdrmm_forward.1} parent=1 // pred_region
      %s35 = ssub.s32 16, 16
      %36 = vsyncadd [#allocation6], %s35
      %s38 = sshll.u32 %s6, 4
      %s39 = int_to_ptr.vmem [resolvable:$true] %s38
      %41 = dma.vmem_to_smem %s39, 16, [#allocation4], [#allocation6]
    $region29: #{positdrmm_forward.1} parent=1 // pred_fallthru
      _
    // Predicated region
    $region30: #{positdrmm_forward.1} parent=1 // pred_check
      _
    $region31: #{positdrmm_forward.1} parent=1 // pred_check_branch
      %43 = sbr.rel (0) target = $region33
    $region32: #{positdrmm_forward.1} parent=1 // pred_region
      _
    $region33: #{positdrmm_forward.1} parent=1 // pred_fallthru
      _
    // Predicated region
    $region34: #{positdrmm_forward.1} parent=1 // pred_check
      _
    $region35: #{positdrmm_forward.1} parent=1 // pred_check_branch
      %45 = sbr.rel (0) target = $region37
    $region36: #{positdrmm_forward.1} parent=1 // pred_region
      %s47 = ssub.s32 16, 16
      %48 = vsyncadd [#allocation8], %s47
      %s50 = sshll.u32 %s8, 4
      %s51 = int_to_ptr.vmem [resolvable:$true] %s50
      %53 = dma.vmem_to_smem %s51, 16, [#allocation7], [#allocation8]
    $region37: #{positdrmm_forward.1} parent=1 // pred_fallthru
      _
    // Predicated region
    $region38: #{positdrmm_forward.1} parent=1 // pred_check
      _
    $region39: #{positdrmm_forward.1} parent=1 // pred_check_branch
      %55 = sbr.rel (0) target = $region41
    $region40: #{positdrmm_forward.1} parent=1 // pred_region
      _
    $region41: #{positdrmm_forward.1} parent=1 // pred_fallthru
      _
    // Predicated region
    $region42: #{positdrmm_forward.1} parent=1 // pred_check
      _
    $region43: #{positdrmm_forward.1} parent=1 // pred_check_branch
      %57 = sbr.rel (0) target = $region45
    $region44: #{positdrmm_forward.1} parent=1 // pred_region
      %58 = dma.done [#allocation6], 16
    $region45: #{positdrmm_forward.1} parent=1 // pred_fallthru
      _
    // Predicated region
    $region46: #{positdrmm_forward.1} parent=1 // pred_check
      _
    $region47: #{positdrmm_forward.1} parent=1 // pred_check_branch
      %60 = sbr.rel (0) target = $region49
    $region48: #{positdrmm_forward.1} parent=1 // pred_region
      %61 = dma.done [#allocation8], 16
    $region49: #{positdrmm_forward.1} parent=1 // pred_fallthru
      _
    %62 = sfence
    %v63 = vld [vmem:[%s0] sm:$0xff]
    %v64 = vld [vmem:[%s0 + $0x8] sm:$0xff]
    %v65 = vld [vmem:[%s0 + $0x10] sm:$0xff]
    %v66 = vld [vmem:[%s0 + $0x18] sm:$0xff]
    %v67 = vld [vmem:[%s0 + $0x20] sm:$0xff]
    %v68 = vld [vmem:[%s0 + $0x28] sm:$0xff]
    %v69 = vld [vmem:[%s0 + $0x30] sm:$0xff]
    %v70 = vld [vmem:[%s0 + $0x38] sm:$0xff]
    %v71 = vlaneseq
    %v72 = vand.u32 %v71, 127
    %vm73 = vcmp.lt.s32.totalorder %v72, 32
    %v74 = vmul.f32 %v63, %v63
    %v75 = vmul.f32 %v64, %v64
    %v76 = vmul.f32 %v65, %v65
    %v77 = vmul.f32 %v66, %v66
    %v78 = vmul.f32 %v67, %v67
    %v79 = vmul.f32 %v68, %v68
    %v80 = vmul.f32 %v69, %v69
    %v81 = vmul.f32 %v70, %v70
    %v82 = vsel %vm73, %v74, 0.0
    %v83 = vsel %vm73, %v75, 0.0
    %v84 = vsel %vm73, %v76, 0.0
    %v85 = vsel %vm73, %v77, 0.0
    %v86 = vsel %vm73, %v78, 0.0
    %v87 = vsel %vm73, %v79, 0.0
    %v88 = vsel %vm73, %v80, 0.0
    %v89 = vsel %vm73, %v81, 0.0
    %vm90 = vcmask 785408
    %v91 = vsel %vm90, %v82, 0.0
    %92 = vadd.xlane.f32.xlu0 %v91
    %v93 = vpop.xlane.xlu0 %92
    %v94 = vsel %vm90, %v83, 0.0
    %95 = vadd.xlane.f32.xlu0 %v94
    %v96 = vpop.xlane.xlu0 %95
    %v97 = vsel %vm90, %v84, 0.0
    %98 = vadd.xlane.f32.xlu0 %v97
    %v99 = vpop.xlane.xlu0 %98
    %v100 = vsel %vm90, %v85, 0.0
    %101 = vadd.xlane.f32.xlu0 %v100
    %v102 = vpop.xlane.xlu0 %101
    %v103 = vsel %vm90, %v86, 0.0
    %104 = vadd.xlane.f32.xlu0 %v103
    %v105 = vpop.xlane.xlu0 %104
    %v106 = vsel %vm90, %v87, 0.0
    %107 = vadd.xlane.f32.xlu0 %v106
    %v108 = vpop.xlane.xlu0 %107
    %v109 = vsel %vm90, %v88, 0.0
    %110 = vadd.xlane.f32.xlu0 %v109
    %v111 = vpop.xlane.xlu0 %110
    %v112 = vsel %vm90, %v89, 0.0
    %113 = vadd.xlane.f32.xlu0 %v112
    %v114 = vpop.xlane.xlu0 %113
    %v115 = vsel %vm73, 0.0, %v74
    %v116 = vsel %vm73, 0.0, %v75
    %v117 = vsel %vm73, 0.0, %v76
    %v118 = vsel %vm73, 0.0, %v77
    %v119 = vsel %vm73, 0.0, %v78
    %v120 = vsel %vm73, 0.0, %v79
    %v121 = vsel %vm73, 0.0, %v80
    %v122 = vsel %vm73, 0.0, %v81
    %v123 = vsel %vm90, %v115, 0.0
    %124 = vadd.xlane.f32.xlu0 %v123
    %v125 = vpop.xlane.xlu0 %124
    %v126 = vsel %vm90, %v116, 0.0
    %127 = vadd.xlane.f32.xlu0 %v126
    %v128 = vpop.xlane.xlu0 %127
    %v129 = vsel %vm90, %v117, 0.0
    %130 = vadd.xlane.f32.xlu0 %v129
    %v131 = vpop.xlane.xlu0 %130
    %v132 = vsel %vm90, %v118, 0.0
    %133 = vadd.xlane.f32.xlu0 %v132
    %v134 = vpop.xlane.xlu0 %133
    %v135 = vsel %vm90, %v119, 0.0
    %136 = vadd.xlane.f32.xlu0 %v135
    %v137 = vpop.xlane.xlu0 %136
    %v138 = vsel %vm90, %v120, 0.0
    %139 = vadd.xlane.f32.xlu0 %v138
    %v140 = vpop.xlane.xlu0 %139
    %v141 = vsel %vm90, %v121, 0.0
    %142 = vadd.xlane.f32.xlu0 %v141
    %v143 = vpop.xlane.xlu0 %142
    %v144 = vsel %vm90, %v122, 0.0
    %145 = vadd.xlane.f32.xlu0 %v144
    %v146 = vpop.xlane.xlu0 %145
    %v147 = vrsqrt.pop %v93
    %v148 = vmul.f32 %v93, %v147
    %vm149 = vcmp.eq.f32.partialorder %v93, inf
    %v150 = vsel %vm149, %v93, %v148
    %vm151 = vcmp.eq.f32.partialorder %v93, 0.0
    %v152 = vand.u32 %v93, 2147483648
    %v153 = vsel %vm151, %v152, %v150
    %v154 = vrsqrt.pop %v96
    %v155 = vmul.f32 %v96, %v154
    %vm156 = vcmp.eq.f32.partialorder %v96, inf
    %v157 = vsel %vm156, %v96, %v155
    %vm158 = vcmp.eq.f32.partialorder %v96, 0.0
    %v159 = vand.u32 %v96, 2147483648
    %v160 = vsel %vm158, %v159, %v157
    %v161 = vrsqrt.pop %v99
    %v162 = vmul.f32 %v99, %v161
    %vm163 = vcmp.eq.f32.partialorder %v99, inf
    %v164 = vsel %vm163, %v99, %v162
    %vm165 = vcmp.eq.f32.partialorder %v99, 0.0
    %v166 = vand.u32 %v99, 2147483648
    %v167 = vsel %vm165, %v166, %v164
    %v168 = vrsqrt.pop %v102
    %v169 = vmul.f32 %v102, %v168
    %vm170 = vcmp.eq.f32.partialorder %v102, inf
    %v171 = vsel %vm170, %v102, %v169
    %vm172 = vcmp.eq.f32.partialorder %v102, 0.0
    %v173 = vand.u32 %v102, 2147483648
    %v174 = vsel %vm172, %v173, %v171
    %v175 = vrsqrt.pop %v105
    %v176 = vmul.f32 %v105, %v175
    %vm177 = vcmp.eq.f32.partialorder %v105, inf
    %v178 = vsel %vm177, %v105, %v176
    %vm179 = vcmp.eq.f32.partialorder %v105, 0.0
    %v180 = vand.u32 %v105, 2147483648
    %v181 = vsel %vm179, %v180, %v178
    %v182 = vrsqrt.pop %v108
    %v183 = vmul.f32 %v108, %v182
    %vm184 = vcmp.eq.f32.partialorder %v108, inf
    %v185 = vsel %vm184, %v108, %v183
    %vm186 = vcmp.eq.f32.partialorder %v108, 0.0
    %v187 = vand.u32 %v108, 2147483648
    %v188 = vsel %vm186, %v187, %v185
    %v189 = vrsqrt.pop %v111
    %v190 = vmul.f32 %v111, %v189
    %vm191 = vcmp.eq.f32.partialorder %v111, inf
    %v192 = vsel %vm191, %v111, %v190
    %vm193 = vcmp.eq.f32.partialorder %v111, 0.0
    %v194 = vand.u32 %v111, 2147483648
    %v195 = vsel %vm193, %v194, %v192
    %v196 = vrsqrt.pop %v114
    %v197 = vmul.f32 %v114, %v196
    %vm198 = vcmp.eq.f32.partialorder %v114, inf
    %v199 = vsel %vm198, %v114, %v197
    %vm200 = vcmp.eq.f32.partialorder %v114, 0.0
    %v201 = vand.u32 %v114, 2147483648
    %v202 = vsel %vm200, %v201, %v199
    %v203 = vadd.f32 %v153, 1e-07
    %v204 = vadd.f32 %v160, 1e-07
    %v205 = vadd.f32 %v167, 1e-07
    %v206 = vadd.f32 %v174, 1e-07
    %v207 = vadd.f32 %v181, 1e-07
    %v208 = vadd.f32 %v188, 1e-07
    %v209 = vadd.f32 %v195, 1e-07
    %v210 = vadd.f32 %v202, 1e-07
    %v211 = vrcp.pop %v203
    %v212 = vmul.f32 1.0, %v211
    %v213 = vrcp.pop %v204
    %v214 = vmul.f32 1.0, %v213
    %v215 = vrcp.pop %v205
    %v216 = vmul.f32 1.0, %v215
    %v217 = vrcp.pop %v206
    %v218 = vmul.f32 1.0, %v217
    %v219 = vrcp.pop %v207
    %v220 = vmul.f32 1.0, %v219
    %v221 = vrcp.pop %v208
    %v222 = vmul.f32 1.0, %v221
    %v223 = vrcp.pop %v209
    %v224 = vmul.f32 1.0, %v223
    %v225 = vrcp.pop %v210
    %v226 = vmul.f32 1.0, %v225
    %v227 = vrsqrt.pop %v125
    %v228 = vrsqrt.pop %v128
    %v229 = vrsqrt.pop %v131
    %v230 = vrsqrt.pop %v134
    %v231 = vrsqrt.pop %v137
    %v232 = vrsqrt.pop %v140
    %v233 = vrsqrt.pop %v143
    %v234 = vrsqrt.pop %v146
    %v235 = vsel %vm73, %v212, %v227
    %v236 = vsel %vm73, %v214, %v228
    %v237 = vsel %vm73, %v216, %v229
    %v238 = vsel %vm73, %v218, %v230
    %v239 = vsel %vm73, %v220, %v231
    %v240 = vsel %vm73, %v222, %v232
    %v241 = vsel %vm73, %v224, %v233
    %v242 = vsel %vm73, %v226, %v234
    %v243 = vmul.f32 %v63, %v235
    %v244 = vmul.f32 %v64, %v236
    %v245 = vmul.f32 %v65, %v237
    %v246 = vmul.f32 %v66, %v238
    %v247 = vmul.f32 %v67, %v239
    %v248 = vmul.f32 %v68, %v240
    %v249 = vmul.f32 %v69, %v241
    %v250 = vmul.f32 %v70, %v242
    %v251 = vld [vmem:[%s1] sm:$0xff]
    %v252 = vld [vmem:[%s1 + $0x8] sm:$0xff]
    %v253 = vld [vmem:[%s1 + $0x10] sm:$0xff]
    %v254 = vld [vmem:[%s1 + $0x18] sm:$0xff]
    %v255 = vld [vmem:[%s1 + $0x20] sm:$0xff]
    %v256 = vld [vmem:[%s1 + $0x28] sm:$0xff]
    %v257 = vld [vmem:[%s1 + $0x30] sm:$0xff]
    %v258 = vld [vmem:[%s1 + $0x38] sm:$0xff]
    %v259 = vld [vmem:[%s1 + $0x40] sm:$0xff]
    %v260 = vld [vmem:[%s1 + $0x48] sm:$0xff]
    %v261 = vld [vmem:[%s1 + $0x50] sm:$0xff]
    %v262 = vld [vmem:[%s1 + $0x58] sm:$0xff]
    %v263 = vlaneseq
    %v264 = vshrl.u32 %v263, 7
    %v265 = vadd.s32 %v264, 8
    %v266 = vadd.s32 %v264, 16
    %v267 = vadd.s32 %v264, 24
    %v268 = vadd.s32 %v264, 32
    %v269 = vadd.s32 %v264, 40
    %v270 = vadd.s32 %v264, 48
    %v271 = vadd.s32 %v264, 56
    %v272 = vadd.s32 %v264, 64
    %v273 = vadd.s32 %v264, 72
    %v274 = vadd.s32 %v264, 80
    %v275 = vadd.s32 %v264, 88
    %vm276 = vcmp.lt.s32.totalorder %v264, 32
    %vm277 = vcmp.lt.s32.totalorder %v265, 32
    %vm278 = vcmp.lt.s32.totalorder %v266, 32
    %vm279 = vcmp.lt.s32.totalorder %v267, 32
    %vm280 = vcmp.lt.s32.totalorder %v268, 32
    %vm281 = vcmp.lt.s32.totalorder %v269, 32
    %vm282 = vcmp.lt.s32.totalorder %v270, 32
    %vm283 = vcmp.lt.s32.totalorder %v271, 32
    %vm284 = vcmp.lt.s32.totalorder %v272, 32
    %vm285 = vcmp.lt.s32.totalorder %v273, 32
    %vm286 = vcmp.lt.s32.totalorder %v274, 32
    %vm287 = vcmp.lt.s32.totalorder %v275, 32
    %v288 = vmul.f32 %v251, %v251
    %v289 = vmul.f32 %v252, %v252
    %v290 = vmul.f32 %v253, %v253
    %v291 = vmul.f32 %v254, %v254
    %v292 = vmul.f32 %v255, %v255
    %v293 = vmul.f32 %v256, %v256
    %v294 = vmul.f32 %v257, %v257
    %v295 = vmul.f32 %v258, %v258
    %v296 = vmul.f32 %v259, %v259
    %v297 = vmul.f32 %v260, %v260
    %v298 = vmul.f32 %v261, %v261
    %v299 = vmul.f32 %v262, %v262
    %v300 = vsel %vm276, %v288, 0.0
    %v301 = vsel %vm277, %v289, 0.0
    %v302 = vsel %vm278, %v290, 0.0
    %v303 = vsel %vm279, %v291, 0.0
    %v304 = vsel %vm280, %v292, 0.0
    %v305 = vsel %vm281, %v293, 0.0
    %v306 = vsel %vm282, %v294, 0.0
    %v307 = vsel %vm283, %v295, 0.0
    %v308 = vsel %vm284, %v296, 0.0
    %v309 = vsel %vm285, %v297, 0.0
    %v310 = vsel %vm286, %v298, 0.0
    %v311 = vsel %vm287, %v299, 0.0
    %v312 = vadd.f32 %v300, %v301
    %v313 = vadd.f32 %v312, %v302
    %v314 = vadd.f32 %v313, %v303
    %v315 = vadd.f32 %v314, %v304
    %v316 = vadd.f32 %v315, %v305
    %v317 = vadd.f32 %v316, %v306
    %v318 = vadd.f32 %v317, %v307
    %v319 = vadd.f32 %v318, %v308
    %v320 = vadd.f32 %v319, %v309
    %v321 = vadd.f32 %v320, %v310
    %v322 = vadd.f32 %v321, %v311
    %v323 = vrot.slane %v322, 4
    %v324 = vadd.f32 %v322, %v323
    %v325 = vrot.slane %v324, 2
    %v326 = vadd.f32 %v324, %v325
    %v327 = vrot.slane %v326, 1
    %v328 = vadd.f32 %v326, %v327
    %v329 = vsel %vm276, 0.0, %v288
    %v330 = vsel %vm277, 0.0, %v289
    %v331 = vsel %vm278, 0.0, %v290
    %v332 = vsel %vm279, 0.0, %v291
    %v333 = vsel %vm280, 0.0, %v292
    %v334 = vsel %vm281, 0.0, %v293
    %v335 = vsel %vm282, 0.0, %v294
    %v336 = vsel %vm283, 0.0, %v295
    %v337 = vsel %vm284, 0.0, %v296
    %v338 = vsel %vm285, 0.0, %v297
    %v339 = vsel %vm286, 0.0, %v298
    %v340 = vsel %vm287, 0.0, %v299
    %v341 = vadd.f32 %v329, %v330
    %v342 = vadd.f32 %v341, %v331
    %v343 = vadd.f32 %v342, %v332
    %v344 = vadd.f32 %v343, %v333
    %v345 = vadd.f32 %v344, %v334
    %v346 = vadd.f32 %v345, %v335
    %v347 = vadd.f32 %v346, %v336
    %v348 = vadd.f32 %v347, %v337
    %v349 = vadd.f32 %v348, %v338
    %v350 = vadd.f32 %v349, %v339
    %v351 = vadd.f32 %v350, %v340
    %v352 = vrot.slane %v351, 4
    %v353 = vadd.f32 %v351, %v352
    %v354 = vrot.slane %v353, 2
    %v355 = vadd.f32 %v353, %v354
    %v356 = vrot.slane %v355, 1
    %v357 = vadd.f32 %v355, %v356
    %v358 = vrsqrt.pop %v328
    %v359 = vmul.f32 %v328, %v358
    %vm360 = vcmp.eq.f32.partialorder %v328, inf
    %v361 = vsel %vm360, %v328, %v359
    %vm362 = vcmp.eq.f32.partialorder %v328, 0.0
    %v363 = vand.u32 %v328, 2147483648
    %v364 = vsel %vm362, %v363, %v361
    %v365 = vadd.f32 %v364, 1e-07
    %v366 = vrcp.pop %v365
    %v367 = vmul.f32 1.0, %v366
    %v368 = vrsqrt.pop %v357
    %v369 = vmul.f32 %v251, %v367
    %v370 = vmul.f32 %v252, %v367
    %v371 = vmul.f32 %v253, %v367
    %v372 = vmul.f32 %v254, %v367
    %v373 = vmul.f32 %v255, %v367
    %v374 = vmul.f32 %v256, %v367
    %v375 = vmul.f32 %v257, %v367
    %v376 = vmul.f32 %v258, %v367
    %v377 = vmul.f32 %v259, %v367
    %v378 = vmul.f32 %v260, %v367
    %v379 = vmul.f32 %v261, %v367
    %v380 = vmul.f32 %v262, %v367
    %v381 = vsel %vm276, %v369, 0.0
    %v382 = vsel %vm277, %v370, 0.0
    %v383 = vsel %vm278, %v371, 0.0
    %v384 = vsel %vm279, %v372, 0.0
    %v385 = vsel %vm280, %v373, 0.0
    %v386 = vsel %vm281, %v374, 0.0
    %v387 = vsel %vm282, %v375, 0.0
    %v388 = vsel %vm283, %v376, 0.0
    %v389 = vsel %vm284, %v377, 0.0
    %v390 = vsel %vm285, %v378, 0.0
    %v391 = vsel %vm286, %v379, 0.0
    %v392 = vsel %vm287, %v380, 0.0
    %v393 = vmul.f32 %v251, %v368
    %v394 = vmul.f32 %v252, %v368
    %v395 = vmul.f32 %v253, %v368
    %v396 = vmul.f32 %v254, %v368
    %v397 = vmul.f32 %v255, %v368
    %v398 = vmul.f32 %v256, %v368
    %v399 = vmul.f32 %v257, %v368
    %v400 = vmul.f32 %v258, %v368
    %v401 = vmul.f32 %v259, %v368
    %v402 = vmul.f32 %v260, %v368
    %v403 = vmul.f32 %v261, %v368
    %v404 = vmul.f32 %v262, %v368
    %v405 = vsel %vm276, 0.0, %v393
    %v406 = vsel %vm277, 0.0, %v394
    %v407 = vsel %vm278, 0.0, %v395
    %v408 = vsel %vm279, 0.0, %v396
    %v409 = vsel %vm280, 0.0, %v397
    %v410 = vsel %vm281, 0.0, %v398
    %v411 = vsel %vm282, 0.0, %v399
    %v412 = vsel %vm283, 0.0, %v400
    %v413 = vsel %vm284, 0.0, %v401
    %v414 = vsel %vm285, 0.0, %v402
    %v415 = vsel %vm286, 0.0, %v403
    %v416 = vsel %vm287, 0.0, %v404
    %v418 = vsel %vm90, %v243, 0
    %v421 = vsel %vm90, %v244, 0
    %v424 = vsel %vm90, %v245, 0
    %v427 = vsel %vm90, %v246, 0
    %v430 = vsel %vm90, %v247, 0
    %v433 = vsel %vm90, %v248, 0
    %v436 = vsel %vm90, %v249, 0
    %v439 = vsel %vm90, %v250, 0
    %441 = vmatprep.subr.mxu0 0.0
    %442 = vmatpush1.msra.mxu0 0.0
    %443 = vmatprep.subr.mxu0 0.0
    %444 = vmatpush1.msra.mxu0 0.0
    %445 = vmatprep.subr.mxu0 0.0
    %446 = vmatpush1.msra.mxu0 0.0
    %447 = vmatprep.subr.mxu0 0.0
    %448 = vmatpush1.msra.mxu0 0.0
    %449 = vmatprep.subr.mxu0 %v416
    %450 = vmatpush1.msra.mxu0 %v392
    %451 = vmatprep.subr.mxu0 %v415
    %452 = vmatpush1.msra.mxu0 %v391
    %453 = vmatprep.subr.mxu0 %v414
    %454 = vmatpush1.msra.mxu0 %v390
    %455 = vmatprep.subr.mxu0 %v413
    %456 = vmatpush1.msra.mxu0 %v389
    %457 = vmatprep.subr.mxu0 %v412
    %458 = vmatpush1.msra.mxu0 %v388
    %459 = vmatprep.subr.mxu0 %v411
    %460 = vmatpush1.msra.mxu0 %v387
    %461 = vmatprep.subr.mxu0 %v410
    %462 = vmatpush1.msra.mxu0 %v386
    %463 = vmatprep.subr.mxu0 %v409
    %464 = vmatpush1.msra.mxu0 %v385
    %465 = vmatprep.subr.mxu0 %v408
    %466 = vmatpush1.msra.mxu0 %v384
    %467 = vmatprep.subr.mxu0 %v407
    %468 = vmatpush1.msra.mxu0 %v383
    %469 = vmatprep.subr.mxu0 %v406
    %470 = vmatpush1.msra.mxu0 %v382
    %471 = vmatprep.subr.mxu0 %v405
    %472 = vmatpush1.msra.mxu0 %v381
    %473 = vmatprep.subr.mxu0 0.0
    %474 = vmatpush2.msra.mxu0 0.0
    %475 = vmatprep.subr.mxu0 0.0
    %476 = vmatpush2.msra.mxu0 0.0
    %477 = vmatprep.subr.mxu0 0.0
    %478 = vmatpush2.msra.mxu0 0.0
    %479 = vmatprep.subr.mxu0 0.0
    %480 = vmatpush2.msra.mxu0 0.0
    %481 = vmatprep.subr.mxu0 0.0
    %482 = vmatpush2.msra.mxu0 0.0
    %483 = vmatprep.subr.mxu0 0.0
    %484 = vmatpush2.msra.mxu0 0.0
    %485 = vmatprep.subr.mxu0 0.0
    %486 = vmatpush2.msra.mxu0 0.0
    %487 = vmatprep.subr.mxu0 0.0
    %488 = vmatpush2.msra.mxu0 0.0
    %489 = vmatprep.subr.mxu0 0.0
    %490 = vmatpush2.msra.mxu0 0.0
    %491 = vmatprep.subr.mxu0 0.0
    %492 = vmatpush2.msra.mxu0 0.0
    %493 = vmatprep.subr.mxu0 0.0
    %494 = vmatpush2.msra.mxu0 0.0
    %495 = vmatprep.subr.mxu0 0.0
    %496 = vmatpush2.msra.mxu0 0.0
    %497 = vmatprep.subr.mxu0 0.0
    %498 = vmatpush2.msra.mxu0 0.0
    %499 = vmatprep.subr.mxu0 0.0
    %500 = vmatpush2.msra.mxu0 0.0
    %501 = vmatprep.subr.mxu0 0.0
    %502 = vmatpush2.msra.mxu0 0.0
    %503 = vmatprep.subr.mxu0 0.0
    %504 = vmatpush2.msra.mxu0 0.0
    %505 = vmatprep.mubr.f32.mxu0 0.0
    %506 = vmatmul.mubr.f32.gmra.mxu0 %v418
    %v507 = vpop.f32.mrf.mxu0
    %v508 = vadd.f32 0.0, %v507
    %v509 = vpop.f32.mrf.mxu0
    %v510 = vadd.f32 0.0, %v509
    %511 = vmatprep.mubr.f32.mxu0 0.0
    %512 = vmatmul.mubr.f32.gmra.mxu0 %v421
    %v513 = vpop.f32.mrf.mxu0
    %v514 = vadd.f32 0.0, %v513
    %v515 = vpop.f32.mrf.mxu0
    %v516 = vadd.f32 0.0, %v515
    %517 = vmatprep.mubr.f32.mxu0 0.0
    %518 = vmatmul.mubr.f32.gmra.mxu0 %v424
    %v519 = vpop.f32.mrf.mxu0
    %v520 = vadd.f32 0.0, %v519
    %v521 = vpop.f32.mrf.mxu0
    %v522 = vadd.f32 0.0, %v521
    %523 = vmatprep.mubr.f32.mxu0 0.0
    %524 = vmatmul.mubr.f32.gmra.mxu0 %v427
    %v525 = vpop.f32.mrf.mxu0
    %v526 = vadd.f32 0.0, %v525
    %v527 = vpop.f32.mrf.mxu0
    %v528 = vadd.f32 0.0, %v527
    %529 = vmatprep.mubr.f32.mxu0 0.0
    %530 = vmatmul.mubr.f32.gmra.mxu0 %v430
    %v531 = vpop.f32.mrf.mxu0
    %v532 = vadd.f32 0.0, %v531
    %v533 = vpop.f32.mrf.mxu0
    %v534 = vadd.f32 0.0, %v533
    %535 = vmatprep.mubr.f32.mxu0 0.0
    %536 = vmatmul.mubr.f32.gmra.mxu0 %v433
    %v537 = vpop.f32.mrf.mxu0
    %v538 = vadd.f32 0.0, %v537
    %v539 = vpop.f32.mrf.mxu0
    %v540 = vadd.f32 0.0, %v539
    %541 = vmatprep.mubr.f32.mxu0 0.0
    %542 = vmatmul.mubr.f32.gmra.mxu0 %v436
    %v543 = vpop.f32.mrf.mxu0
    %v544 = vadd.f32 0.0, %v543
    %v545 = vpop.f32.mrf.mxu0
    %v546 = vadd.f32 0.0, %v545
    %547 = vmatprep.mubr.f32.mxu0 0.0
    %548 = vmatmul.mubr.f32.gmra.mxu0 %v439
    %v549 = vpop.f32.mrf.mxu0
    %v550 = vadd.f32 0.0, %v549
    %v551 = vpop.f32.mrf.mxu0
    %v552 = vadd.f32 0.0, %v551
    %553 = vdwg.mxu0
    %vm554 = vcmp.ge.s32.totalorder %v72, 0
    %vm555 = vcmp.ge.s32.totalorder %v72, 16
    %vm556 = vcmp.ge.s32.totalorder %v72, 32
    %vm557 = vcmp.ge.s32.totalorder %v72, 48
    %vm558 = vcmp.ge.s32.totalorder %v72, 64
    %vm559 = vcmp.ge.s32.totalorder %v72, 80
    %vm560 = vcmp.ge.s32.totalorder %v72, 96
    %vm561 = vcmp.ge.s32.totalorder %v72, 112
    %vm562 = vcmp.lt.s32.totalorder %v72, 16
    %vm563 = vcmp.lt.s32.totalorder %v72, 48
    %vm564 = vcmp.lt.s32.totalorder %v72, 64
    %vm565 = vcmp.lt.s32.totalorder %v72, 80
    %vm566 = vcmp.lt.s32.totalorder %v72, 96
    %vm567 = vcmp.lt.s32.totalorder %v72, 112
    %vm568 = vcmp.lt.s32.totalorder %v72, 128
    %vm569 = vmand %vm554, %vm562
    %vm570 = vmand %vm555, %vm73
    %vm571 = vmand %vm556, %vm563
    %vm572 = vmand %vm557, %vm564
    %vm573 = vmand %vm558, %vm565
    %vm574 = vmand %vm559, %vm566
    %vm575 = vmand %vm560, %vm567
    %vm576 = vmand %vm561, %vm568
    %v577 = vsel %vm569, %v508, -inf
    %v578 = vsel %vm570, %v514, -inf
    %v579 = vsel %vm571, %v520, -inf
    %v580 = vsel %vm572, %v526, -inf
    %v581 = vsel %vm573, %v532, -inf
    %v582 = vsel %vm574, %v538, -inf
    %v583 = vsel %vm575, %v544, -inf
    %v584 = vsel %vm576, %v550, -inf
    %v585 = vsel %vm569, %v510, -inf
    %v586 = vsel %vm570, %v516, -inf
    %v587 = vsel %vm571, %v522, -inf
    %v588 = vsel %vm572, %v528, -inf
    %v589 = vsel %vm573, %v534, -inf
    %v590 = vsel %vm574, %v540, -inf
    %v591 = vsel %vm575, %v546, -inf
    %v592 = vsel %vm576, %v552, -inf
    %593 = vmax.xlane.f32.xlu0 %v577
    %v594 = vpop.xlane.xlu0 %593
    %595 = vmax.xlane.f32.xlu0 %v578
    %v596 = vpop.xlane.xlu0 %595
    %597 = vmax.xlane.f32.xlu0 %v579
    %v598 = vpop.xlane.xlu0 %597
    %599 = vmax.xlane.f32.xlu0 %v580
    %v600 = vpop.xlane.xlu0 %599
    %601 = vmax.xlane.f32.xlu0 %v581
    %v602 = vpop.xlane.xlu0 %601
    %603 = vmax.xlane.f32.xlu0 %v582
    %v604 = vpop.xlane.xlu0 %603
    %605 = vmax.xlane.f32.xlu0 %v583
    %v606 = vpop.xlane.xlu0 %605
    %607 = vmax.xlane.f32.xlu0 %v584
    %v608 = vpop.xlane.xlu0 %607
    %vm609 = vcmp.eq.f32.partialorder %v577, %v594
    %vm610 = vcmp.eq.f32.partialorder %v578, %v596
    %vm611 = vcmp.eq.f32.partialorder %v579, %v598
    %vm612 = vcmp.eq.f32.partialorder %v580, %v600
    %vm613 = vcmp.eq.f32.partialorder %v581, %v602
    %vm614 = vcmp.eq.f32.partialorder %v582, %v604
    %vm615 = vcmp.eq.f32.partialorder %v583, %v606
    %vm616 = vcmp.eq.f32.partialorder %v584, %v608
    %v617 = vsel %vm609, %v72, 128
    %v618 = vsel %vm610, %v72, 128
    %v619 = vsel %vm611, %v72, 128
    %v620 = vsel %vm612, %v72, 128
    %v621 = vsel %vm613, %v72, 128
    %v622 = vsel %vm614, %v72, 128
    %v623 = vsel %vm615, %v72, 128
    %v624 = vsel %vm616, %v72, 128
    %v625 = vand.u32 %v617, 65535
    %v626 = vshra.s32 %v617, 16
    %v627 = vcvt.s32.f32 %v625
    %v628 = vcvt.s32.f32 %v626
    %629 = vmin.xlane.f32.xlu0 %v628
    %v630 = vpop.xlane.xlu0 %629
    %vm631 = vcmp.eq.f32.partialorder %v628, %v630
    %v632 = vsel %vm631, %v627, inf
    %633 = vmin.xlane.f32.xlu0 %v632
    %v634 = vpop.xlane.xlu0 %633
    %v635 = vcvt.f32.s32 %v634
    %v636 = vcvt.f32.s32 %v630
    %v637 = vshll.u32 %v636, 16
    %v638 = vadd.s32 %v637, %v635
    %v639 = vand.u32 %v618, 65535
    %v640 = vshra.s32 %v618, 16
    %v641 = vcvt.s32.f32 %v639
    %v642 = vcvt.s32.f32 %v640
    %643 = vmin.xlane.f32.xlu0 %v642
    %v644 = vpop.xlane.xlu0 %643
    %vm645 = vcmp.eq.f32.partialorder %v642, %v644
    %v646 = vsel %vm645, %v641, inf
    %647 = vmin.xlane.f32.xlu0 %v646
    %v648 = vpop.xlane.xlu0 %647
    %v649 = vcvt.f32.s32 %v648
    %v650 = vcvt.f32.s32 %v644
    %v651 = vshll.u32 %v650, 16
    %v652 = vadd.s32 %v651, %v649
    %v653 = vand.u32 %v619, 65535
    %v654 = vshra.s32 %v619, 16
    %v655 = vcvt.s32.f32 %v653
    %v656 = vcvt.s32.f32 %v654
    %657 = vmin.xlane.f32.xlu0 %v656
    %v658 = vpop.xlane.xlu0 %657
    %vm659 = vcmp.eq.f32.partialorder %v656, %v658
    %v660 = vsel %vm659, %v655, inf
    %661 = vmin.xlane.f32.xlu0 %v660
    %v662 = vpop.xlane.xlu0 %661
    %v663 = vcvt.f32.s32 %v662
    %v664 = vcvt.f32.s32 %v658
    %v665 = vshll.u32 %v664, 16
    %v666 = vadd.s32 %v665, %v663
    %v667 = vand.u32 %v620, 65535
    %v668 = vshra.s32 %v620, 16
    %v669 = vcvt.s32.f32 %v667
    %v670 = vcvt.s32.f32 %v668
    %671 = vmin.xlane.f32.xlu0 %v670
    %v672 = vpop.xlane.xlu0 %671
    %vm673 = vcmp.eq.f32.partialorder %v670, %v672
    %v674 = vsel %vm673, %v669, inf
    %675 = vmin.xlane.f32.xlu0 %v674
    %v676 = vpop.xlane.xlu0 %675
    %v677 = vcvt.f32.s32 %v676
    %v678 = vcvt.f32.s32 %v672
    %v679 = vshll.u32 %v678, 16
    %v680 = vadd.s32 %v679, %v677
    %v681 = vand.u32 %v621, 65535
    %v682 = vshra.s32 %v621, 16
    %v683 = vcvt.s32.f32 %v681
    %v684 = vcvt.s32.f32 %v682
    %685 = vmin.xlane.f32.xlu0 %v684
    %v686 = vpop.xlane.xlu0 %685
    %vm687 = vcmp.eq.f32.partialorder %v684, %v686
    %v688 = vsel %vm687, %v683, inf
    %689 = vmin.xlane.f32.xlu0 %v688
    %v690 = vpop.xlane.xlu0 %689
    %v691 = vcvt.f32.s32 %v690
    %v692 = vcvt.f32.s32 %v686
    %v693 = vshll.u32 %v692, 16
    %v694 = vadd.s32 %v693, %v691
    %v695 = vand.u32 %v622, 65535
    %v696 = vshra.s32 %v622, 16
    %v697 = vcvt.s32.f32 %v695
    %v698 = vcvt.s32.f32 %v696
    %699 = vmin.xlane.f32.xlu0 %v698
    %v700 = vpop.xlane.xlu0 %699
    %vm701 = vcmp.eq.f32.partialorder %v698, %v700
    %v702 = vsel %vm701, %v697, inf
    %703 = vmin.xlane.f32.xlu0 %v702
    %v704 = vpop.xlane.xlu0 %703
    %v705 = vcvt.f32.s32 %v704
    %v706 = vcvt.f32.s32 %v700
    %v707 = vshll.u32 %v706, 16
    %v708 = vadd.s32 %v707, %v705
    %v709 = vand.u32 %v623, 65535
    %v710 = vshra.s32 %v623, 16
    %v711 = vcvt.s32.f32 %v709
    %v712 = vcvt.s32.f32 %v710
    %713 = vmin.xlane.f32.xlu0 %v712
    %v714 = vpop.xlane.xlu0 %713
    %vm715 = vcmp.eq.f32.partialorder %v712, %v714
    %v716 = vsel %vm715, %v711, inf
    %717 = vmin.xlane.f32.xlu0 %v716
    %v718 = vpop.xlane.xlu0 %717
    %v719 = vcvt.f32.s32 %v718
    %v720 = vcvt.f32.s32 %v714
    %v721 = vshll.u32 %v720, 16
    %v722 = vadd.s32 %v721, %v719
    %v723 = vand.u32 %v624, 65535
    %v724 = vshra.s32 %v624, 16
    %v725 = vcvt.s32.f32 %v723
    %v726 = vcvt.s32.f32 %v724
    %727 = vmin.xlane.f32.xlu0 %v726
    %v728 = vpop.xlane.xlu0 %727
    %vm729 = vcmp.eq.f32.partialorder %v726, %v728
    %v730 = vsel %vm729, %v725, inf
    %731 = vmin.xlane.f32.xlu0 %v730
    %v732 = vpop.xlane.xlu0 %731
    %v733 = vcvt.f32.s32 %v732
    %v734 = vcvt.f32.s32 %v728
    %v735 = vshll.u32 %v734, 16
    %v736 = vadd.s32 %v735, %v733
    %vm737 = vcmp.eq.s32.totalorder %v72, %v638
    %vm738 = vcmp.eq.s32.totalorder %v72, %v652
    %vm739 = vcmp.eq.s32.totalorder %v72, %v666
    %vm740 = vcmp.eq.s32.totalorder %v72, %v680
    %vm741 = vcmp.eq.s32.totalorder %v72, %v694
    %vm742 = vcmp.eq.s32.totalorder %v72, %v708
    %vm743 = vcmp.eq.s32.totalorder %v72, %v722
    %vm744 = vcmp.eq.s32.totalorder %v72, %v736
    %v745 = vsel %vm737, -inf, %v577
    %v746 = vsel %vm738, -inf, %v578
    %v747 = vsel %vm739, -inf, %v579
    %v748 = vsel %vm740, -inf, %v580
    %v749 = vsel %vm741, -inf, %v581
    %v750 = vsel %vm742, -inf, %v582
    %v751 = vsel %vm743, -inf, %v583
    %v752 = vsel %vm744, -inf, %v584
    %753 = vmax.xlane.f32.xlu0 %v745
    %v754 = vpop.xlane.xlu0 %753
    %755 = vmax.xlane.f32.xlu0 %v746
    %v756 = vpop.xlane.xlu0 %755
    %757 = vmax.xlane.f32.xlu0 %v747
    %v758 = vpop.xlane.xlu0 %757
    %759 = vmax.xlane.f32.xlu0 %v748
    %v760 = vpop.xlane.xlu0 %759
    %761 = vmax.xlane.f32.xlu0 %v749
    %v762 = vpop.xlane.xlu0 %761
    %763 = vmax.xlane.f32.xlu0 %v750
    %v764 = vpop.xlane.xlu0 %763
    %765 = vmax.xlane.f32.xlu0 %v751
    %v766 = vpop.xlane.xlu0 %765
    %767 = vmax.xlane.f32.xlu0 %v752
    %v768 = vpop.xlane.xlu0 %767
    %v769 = vadd.f32 %v594, %v754
    %v770 = vadd.f32 %v596, %v756
    %v771 = vadd.f32 %v598, %v758
    %v772 = vadd.f32 %v600, %v760
    %v773 = vadd.f32 %v602, %v762
    %v774 = vadd.f32 %v604, %v764
    %v775 = vadd.f32 %v606, %v766
    %v776 = vadd.f32 %v608, %v768
    %vm777 = vcmp.eq.f32.partialorder %v745, %v754
    %vm778 = vcmp.eq.f32.partialorder %v746, %v756
    %vm779 = vcmp.eq.f32.partialorder %v747, %v758
    %vm780 = vcmp.eq.f32.partialorder %v748, %v760
    %vm781 = vcmp.eq.f32.partialorder %v749, %v762
    %vm782 = vcmp.eq.f32.partialorder %v750, %v764
    %vm783 = vcmp.eq.f32.partialorder %v751, %v766
    %vm784 = vcmp.eq.f32.partialorder %v752, %v768
    %v785 = vsel %vm777, %v72, 128
    %v786 = vsel %vm778, %v72, 128
    %v787 = vsel %vm779, %v72, 128
    %v788 = vsel %vm780, %v72, 128
    %v789 = vsel %vm781, %v72, 128
    %v790 = vsel %vm782, %v72, 128
    %v791 = vsel %vm783, %v72, 128
    %v792 = vsel %vm784, %v72, 128
    %v793 = vand.u32 %v785, 65535
    %v794 = vshra.s32 %v785, 16
    %v795 = vcvt.s32.f32 %v793
    %v796 = vcvt.s32.f32 %v794
    %797 = vmin.xlane.f32.xlu0 %v796
    %v798 = vpop.xlane.xlu0 %797
    %vm799 = vcmp.eq.f32.partialorder %v796, %v798
    %v800 = vsel %vm799, %v795, inf
    %801 = vmin.xlane.f32.xlu0 %v800
    %v802 = vpop.xlane.xlu0 %801
    %v803 = vcvt.f32.s32 %v802
    %v804 = vcvt.f32.s32 %v798
    %v805 = vshll.u32 %v804, 16
    %v806 = vadd.s32 %v805, %v803
    %v807 = vand.u32 %v786, 65535
    %v808 = vshra.s32 %v786, 16
    %v809 = vcvt.s32.f32 %v807
    %v810 = vcvt.s32.f32 %v808
    %811 = vmin.xlane.f32.xlu0 %v810
    %v812 = vpop.xlane.xlu0 %811
    %vm813 = vcmp.eq.f32.partialorder %v810, %v812
    %v814 = vsel %vm813, %v809, inf
    %815 = vmin.xlane.f32.xlu0 %v814
    %v816 = vpop.xlane.xlu0 %815
    %v817 = vcvt.f32.s32 %v816
    %v818 = vcvt.f32.s32 %v812
    %v819 = vshll.u32 %v818, 16
    %v820 = vadd.s32 %v819, %v817
    %v821 = vand.u32 %v787, 65535
    %v822 = vshra.s32 %v787, 16
    %v823 = vcvt.s32.f32 %v821
    %v824 = vcvt.s32.f32 %v822
    %825 = vmin.xlane.f32.xlu0 %v824
    %v826 = vpop.xlane.xlu0 %825
    %vm827 = vcmp.eq.f32.partialorder %v824, %v826
    %v828 = vsel %vm827, %v823, inf
    %829 = vmin.xlane.f32.xlu0 %v828
    %v830 = vpop.xlane.xlu0 %829
    %v831 = vcvt.f32.s32 %v830
    %v832 = vcvt.f32.s32 %v826
    %v833 = vshll.u32 %v832, 16
    %v834 = vadd.s32 %v833, %v831
    %v835 = vand.u32 %v788, 65535
    %v836 = vshra.s32 %v788, 16
    %v837 = vcvt.s32.f32 %v835
    %v838 = vcvt.s32.f32 %v836
    %839 = vmin.xlane.f32.xlu0 %v838
    %v840 = vpop.xlane.xlu0 %839
    %vm841 = vcmp.eq.f32.partialorder %v838, %v840
    %v842 = vsel %vm841, %v837, inf
    %843 = vmin.xlane.f32.xlu0 %v842
    %v844 = vpop.xlane.xlu0 %843
    %v845 = vcvt.f32.s32 %v844
    %v846 = vcvt.f32.s32 %v840
    %v847 = vshll.u32 %v846, 16
    %v848 = vadd.s32 %v847, %v845
    %v849 = vand.u32 %v789, 65535
    %v850 = vshra.s32 %v789, 16
    %v851 = vcvt.s32.f32 %v849
    %v852 = vcvt.s32.f32 %v850
    %853 = vmin.xlane.f32.xlu0 %v852
    %v854 = vpop.xlane.xlu0 %853
    %vm855 = vcmp.eq.f32.partialorder %v852, %v854
    %v856 = vsel %vm855, %v851, inf
    %857 = vmin.xlane.f32.xlu0 %v856
    %v858 = vpop.xlane.xlu0 %857
    %v859 = vcvt.f32.s32 %v858
    %v860 = vcvt.f32.s32 %v854
    %v861 = vshll.u32 %v860, 16
    %v862 = vadd.s32 %v861, %v859
    %v863 = vand.u32 %v790, 65535
    %v864 = vshra.s32 %v790, 16
    %v865 = vcvt.s32.f32 %v863
    %v866 = vcvt.s32.f32 %v864
    %867 = vmin.xlane.f32.xlu0 %v866
    %v868 = vpop.xlane.xlu0 %867
    %vm869 = vcmp.eq.f32.partialorder %v866, %v868
    %v870 = vsel %vm869, %v865, inf
    %871 = vmin.xlane.f32.xlu0 %v870
    %v872 = vpop.xlane.xlu0 %871
    %v873 = vcvt.f32.s32 %v872
    %v874 = vcvt.f32.s32 %v868
    %v875 = vshll.u32 %v874, 16
    %v876 = vadd.s32 %v875, %v873
    %v877 = vand.u32 %v791, 65535
    %v878 = vshra.s32 %v791, 16
    %v879 = vcvt.s32.f32 %v877
    %v880 = vcvt.s32.f32 %v878
    %881 = vmin.xlane.f32.xlu0 %v880
    %v882 = vpop.xlane.xlu0 %881
    %vm883 = vcmp.eq.f32.partialorder %v880, %v882
    %v884 = vsel %vm883, %v879, inf
    %885 = vmin.xlane.f32.xlu0 %v884
    %v886 = vpop.xlane.xlu0 %885
    %v887 = vcvt.f32.s32 %v886
    %v888 = vcvt.f32.s32 %v882
    %v889 = vshll.u32 %v888, 16
    %v890 = vadd.s32 %v889, %v887
    %v891 = vand.u32 %v792, 65535
    %v892 = vshra.s32 %v792, 16
    %v893 = vcvt.s32.f32 %v891
    %v894 = vcvt.s32.f32 %v892
    %895 = vmin.xlane.f32.xlu0 %v894
    %v896 = vpop.xlane.xlu0 %895
    %vm897 = vcmp.eq.f32.partialorder %v894, %v896
    %v898 = vsel %vm897, %v893, inf
    %899 = vmin.xlane.f32.xlu0 %v898
    %v900 = vpop.xlane.xlu0 %899
    %v901 = vcvt.f32.s32 %v900
    %v902 = vcvt.f32.s32 %v896
    %v903 = vshll.u32 %v902, 16
    %v904 = vadd.s32 %v903, %v901
    %vm905 = vcmp.eq.s32.totalorder %v72, %v806
    %vm906 = vcmp.eq.s32.totalorder %v72, %v820
    %vm907 = vcmp.eq.s32.totalorder %v72, %v834
    %vm908 = vcmp.eq.s32.totalorder %v72, %v848
    %vm909 = vcmp.eq.s32.totalorder %v72, %v862
    %vm910 = vcmp.eq.s32.totalorder %v72, %v876
    %vm911 = vcmp.eq.s32.totalorder %v72, %v890
    %vm912 = vcmp.eq.s32.totalorder %v72, %v904
    %v913 = vsel %vm905, -inf, %v745
    %v914 = vsel %vm906, -inf, %v746
    %v915 = vsel %vm907, -inf, %v747
    %v916 = vsel %vm908, -inf, %v748
    %v917 = vsel %vm909, -inf, %v749
    %v918 = vsel %vm910, -inf, %v750
    %v919 = vsel %vm911, -inf, %v751
    %v920 = vsel %vm912, -inf, %v752
    %921 = vmax.xlane.f32.xlu0 %v913
    %v922 = vpop.xlane.xlu0 %921
    %923 = vmax.xlane.f32.xlu0 %v914
    %v924 = vpop.xlane.xlu0 %923
    %925 = vmax.xlane.f32.xlu0 %v915
    %v926 = vpop.xlane.xlu0 %925
    %927 = vmax.xlane.f32.xlu0 %v916
    %v928 = vpop.xlane.xlu0 %927
    %929 = vmax.xlane.f32.xlu0 %v917
    %v930 = vpop.xlane.xlu0 %929
    %931 = vmax.xlane.f32.xlu0 %v918
    %v932 = vpop.xlane.xlu0 %931
    %933 = vmax.xlane.f32.xlu0 %v919
    %v934 = vpop.xlane.xlu0 %933
    %935 = vmax.xlane.f32.xlu0 %v920
    %v936 = vpop.xlane.xlu0 %935
    %v937 = vadd.f32 %v769, %v922
    %v938 = vadd.f32 %v770, %v924
    %v939 = vadd.f32 %v771, %v926
    %v940 = vadd.f32 %v772, %v928
    %v941 = vadd.f32 %v773, %v930
    %v942 = vadd.f32 %v774, %v932
    %v943 = vadd.f32 %v775, %v934
    %v944 = vadd.f32 %v776, %v936
    %vm945 = vcmp.eq.f32.partialorder %v913, %v922
    %vm946 = vcmp.eq.f32.partialorder %v914, %v924
    %vm947 = vcmp.eq.f32.partialorder %v915, %v926
    %vm948 = vcmp.eq.f32.partialorder %v916, %v928
    %vm949 = vcmp.eq.f32.partialorder %v917, %v930
    %vm950 = vcmp.eq.f32.partialorder %v918, %v932
    %vm951 = vcmp.eq.f32.partialorder %v919, %v934
    %vm952 = vcmp.eq.f32.partialorder %v920, %v936
    %v953 = vsel %vm945, %v72, 128
    %v954 = vsel %vm946, %v72, 128
    %v955 = vsel %vm947, %v72, 128
    %v956 = vsel %vm948, %v72, 128
    %v957 = vsel %vm949, %v72, 128
    %v958 = vsel %vm950, %v72, 128
    %v959 = vsel %vm951, %v72, 128
    %v960 = vsel %vm952, %v72, 128
    %v961 = vand.u32 %v953, 65535
    %v962 = vshra.s32 %v953, 16
    %v963 = vcvt.s32.f32 %v961
    %v964 = vcvt.s32.f32 %v962
    %965 = vmin.xlane.f32.xlu0 %v964
    %v966 = vpop.xlane.xlu0 %965
    %vm967 = vcmp.eq.f32.partialorder %v964, %v966
    %v968 = vsel %vm967, %v963, inf
    %969 = vmin.xlane.f32.xlu0 %v968
    %v970 = vpop.xlane.xlu0 %969
    %v971 = vcvt.f32.s32 %v970
    %v972 = vcvt.f32.s32 %v966
    %v973 = vshll.u32 %v972, 16
    %v974 = vadd.s32 %v973, %v971
    %v975 = vand.u32 %v954, 65535
    %v976 = vshra.s32 %v954, 16
    %v977 = vcvt.s32.f32 %v975
    %v978 = vcvt.s32.f32 %v976
    %979 = vmin.xlane.f32.xlu0 %v978
    %v980 = vpop.xlane.xlu0 %979
    %vm981 = vcmp.eq.f32.partialorder %v978, %v980
    %v982 = vsel %vm981, %v977, inf
    %983 = vmin.xlane.f32.xlu0 %v982
    %v984 = vpop.xlane.xlu0 %983
    %v985 = vcvt.f32.s32 %v984
    %v986 = vcvt.f32.s32 %v980
    %v987 = vshll.u32 %v986, 16
    %v988 = vadd.s32 %v987, %v985
    %v989 = vand.u32 %v955, 65535
    %v990 = vshra.s32 %v955, 16
    %v991 = vcvt.s32.f32 %v989
    %v992 = vcvt.s32.f32 %v990
    %993 = vmin.xlane.f32.xlu0 %v992
    %v994 = vpop.xlane.xlu0 %993
    %vm995 = vcmp.eq.f32.partialorder %v992, %v994
    %v996 = vsel %vm995, %v991, inf
    %997 = vmin.xlane.f32.xlu0 %v996
    %v998 = vpop.xlane.xlu0 %997
    %v999 = vcvt.f32.s32 %v998
    %v1000 = vcvt.f32.s32 %v994
    %v1001 = vshll.u32 %v1000, 16
    %v1002 = vadd.s32 %v1001, %v999
    %v1003 = vand.u32 %v956, 65535
    %v1004 = vshra.s32 %v956, 16
    %v1005 = vcvt.s32.f32 %v1003
    %v1006 = vcvt.s32.f32 %v1004
    %1007 = vmin.xlane.f32.xlu0 %v1006
    %v1008 = vpop.xlane.xlu0 %1007
    %vm1009 = vcmp.eq.f32.partialorder %v1006, %v1008
    %v1010 = vsel %vm1009, %v1005, inf
    %1011 = vmin.xlane.f32.xlu0 %v1010
    %v1012 = vpop.xlane.xlu0 %1011
    %v1013 = vcvt.f32.s32 %v1012
    %v1014 = vcvt.f32.s32 %v1008
    %v1015 = vshll.u32 %v1014, 16
    %v1016 = vadd.s32 %v1015, %v1013
    %v1017 = vand.u32 %v957, 65535
    %v1018 = vshra.s32 %v957, 16
    %v1019 = vcvt.s32.f32 %v1017
    %v1020 = vcvt.s32.f32 %v1018
    %1021 = vmin.xlane.f32.xlu0 %v1020
    %v1022 = vpop.xlane.xlu0 %1021
    %vm1023 = vcmp.eq.f32.partialorder %v1020, %v1022
    %v1024 = vsel %vm1023, %v1019, inf
    %1025 = vmin.xlane.f32.xlu0 %v1024
    %v1026 = vpop.xlane.xlu0 %1025
    %v1027 = vcvt.f32.s32 %v1026
    %v1028 = vcvt.f32.s32 %v1022
    %v1029 = vshll.u32 %v1028, 16
    %v1030 = vadd.s32 %v1029, %v1027
    %v1031 = vand.u32 %v958, 65535
    %v1032 = vshra.s32 %v958, 16
    %v1033 = vcvt.s32.f32 %v1031
    %v1034 = vcvt.s32.f32 %v1032
    %1035 = vmin.xlane.f32.xlu0 %v1034
    %v1036 = vpop.xlane.xlu0 %1035
    %vm1037 = vcmp.eq.f32.partialorder %v1034, %v1036
    %v1038 = vsel %vm1037, %v1033, inf
    %1039 = vmin.xlane.f32.xlu0 %v1038
    %v1040 = vpop.xlane.xlu0 %1039
    %v1041 = vcvt.f32.s32 %v1040
    %v1042 = vcvt.f32.s32 %v1036
    %v1043 = vshll.u32 %v1042, 16
    %v1044 = vadd.s32 %v1043, %v1041
    %v1045 = vand.u32 %v959, 65535
    %v1046 = vshra.s32 %v959, 16
    %v1047 = vcvt.s32.f32 %v1045
    %v1048 = vcvt.s32.f32 %v1046
    %1049 = vmin.xlane.f32.xlu0 %v1048
    %v1050 = vpop.xlane.xlu0 %1049
    %vm1051 = vcmp.eq.f32.partialorder %v1048, %v1050
    %v1052 = vsel %vm1051, %v1047, inf
    %1053 = vmin.xlane.f32.xlu0 %v1052
    %v1054 = vpop.xlane.xlu0 %1053
    %v1055 = vcvt.f32.s32 %v1054
    %v1056 = vcvt.f32.s32 %v1050
    %v1057 = vshll.u32 %v1056, 16
    %v1058 = vadd.s32 %v1057, %v1055
    %v1059 = vand.u32 %v960, 65535
    %v1060 = vshra.s32 %v960, 16
    %v1061 = vcvt.s32.f32 %v1059
    %v1062 = vcvt.s32.f32 %v1060
    %1063 = vmin.xlane.f32.xlu0 %v1062
    %v1064 = vpop.xlane.xlu0 %1063
    %vm1065 = vcmp.eq.f32.partialorder %v1062, %v1064
    %v1066 = vsel %vm1065, %v1061, inf
    %1067 = vmin.xlane.f32.xlu0 %v1066
    %v1068 = vpop.xlane.xlu0 %1067
    %v1069 = vcvt.f32.s32 %v1068
    %v1070 = vcvt.f32.s32 %v1064
    %v1071 = vshll.u32 %v1070, 16
    %v1072 = vadd.s32 %v1071, %v1069
    %vm1073 = vcmp.eq.s32.totalorder %v72, %v974
    %vm1074 = vcmp.eq.s32.totalorder %v72, %v988
    %vm1075 = vcmp.eq.s32.totalorder %v72, %v1002
    %vm1076 = vcmp.eq.s32.totalorder %v72, %v1016
    %vm1077 = vcmp.eq.s32.totalorder %v72, %v1030
    %vm1078 = vcmp.eq.s32.totalorder %v72, %v1044
    %vm1079 = vcmp.eq.s32.totalorder %v72, %v1058
    %vm1080 = vcmp.eq.s32.totalorder %v72, %v1072
    %v1081 = vsel %vm1073, -inf, %v913
    %v1082 = vsel %vm1074, -inf, %v914
    %v1083 = vsel %vm1075, -inf, %v915
    %v1084 = vsel %vm1076, -inf, %v916
    %v1085 = vsel %vm1077, -inf, %v917
    %v1086 = vsel %vm1078, -inf, %v918
    %v1087 = vsel %vm1079, -inf, %v919
    %v1088 = vsel %vm1080, -inf, %v920
    %1089 = vmax.xlane.f32.xlu0 %v1081
    %v1090 = vpop.xlane.xlu0 %1089
    %1091 = vmax.xlane.f32.xlu0 %v1082
    %v1092 = vpop.xlane.xlu0 %1091
    %1093 = vmax.xlane.f32.xlu0 %v1083
    %v1094 = vpop.xlane.xlu0 %1093
    %1095 = vmax.xlane.f32.xlu0 %v1084
    %v1096 = vpop.xlane.xlu0 %1095
    %1097 = vmax.xlane.f32.xlu0 %v1085
    %v1098 = vpop.xlane.xlu0 %1097
    %1099 = vmax.xlane.f32.xlu0 %v1086
    %v1100 = vpop.xlane.xlu0 %1099
    %1101 = vmax.xlane.f32.xlu0 %v1087
    %v1102 = vpop.xlane.xlu0 %1101
    %1103 = vmax.xlane.f32.xlu0 %v1088
    %v1104 = vpop.xlane.xlu0 %1103
    %v1105 = vadd.f32 %v937, %v1090
    %v1106 = vadd.f32 %v938, %v1092
    %v1107 = vadd.f32 %v939, %v1094
    %v1108 = vadd.f32 %v940, %v1096
    %v1109 = vadd.f32 %v941, %v1098
    %v1110 = vadd.f32 %v942, %v1100
    %v1111 = vadd.f32 %v943, %v1102
    %v1112 = vadd.f32 %v944, %v1104
    %vm1113 = vcmp.eq.f32.partialorder %v1081, %v1090
    %vm1114 = vcmp.eq.f32.partialorder %v1082, %v1092
    %vm1115 = vcmp.eq.f32.partialorder %v1083, %v1094
    %vm1116 = vcmp.eq.f32.partialorder %v1084, %v1096
    %vm1117 = vcmp.eq.f32.partialorder %v1085, %v1098
    %vm1118 = vcmp.eq.f32.partialorder %v1086, %v1100
    %vm1119 = vcmp.eq.f32.partialorder %v1087, %v1102
    %vm1120 = vcmp.eq.f32.partialorder %v1088, %v1104
    %v1121 = vsel %vm1113, %v72, 128
    %v1122 = vsel %vm1114, %v72, 128
    %v1123 = vsel %vm1115, %v72, 128
    %v1124 = vsel %vm1116, %v72, 128
    %v1125 = vsel %vm1117, %v72, 128
    %v1126 = vsel %vm1118, %v72, 128
    %v1127 = vsel %vm1119, %v72, 128
    %v1128 = vsel %vm1120, %v72, 128
    %v1129 = vand.u32 %v1121, 65535
    %v1130 = vshra.s32 %v1121, 16
    %v1131 = vcvt.s32.f32 %v1129
    %v1132 = vcvt.s32.f32 %v1130
    %1133 = vmin.xlane.f32.xlu0 %v1132
    %v1134 = vpop.xlane.xlu0 %1133
    %vm1135 = vcmp.eq.f32.partialorder %v1132, %v1134
    %v1136 = vsel %vm1135, %v1131, inf
    %1137 = vmin.xlane.f32.xlu0 %v1136
    %v1138 = vpop.xlane.xlu0 %1137
    %v1139 = vcvt.f32.s32 %v1138
    %v1140 = vcvt.f32.s32 %v1134
    %v1141 = vshll.u32 %v1140, 16
    %v1142 = vadd.s32 %v1141, %v1139
    %v1143 = vand.u32 %v1122, 65535
    %v1144 = vshra.s32 %v1122, 16
    %v1145 = vcvt.s32.f32 %v1143
    %v1146 = vcvt.s32.f32 %v1144
    %1147 = vmin.xlane.f32.xlu0 %v1146
    %v1148 = vpop.xlane.xlu0 %1147
    %vm1149 = vcmp.eq.f32.partialorder %v1146, %v1148
    %v1150 = vsel %vm1149, %v1145, inf
    %1151 = vmin.xlane.f32.xlu0 %v1150
    %v1152 = vpop.xlane.xlu0 %1151
    %v1153 = vcvt.f32.s32 %v1152
    %v1154 = vcvt.f32.s32 %v1148
    %v1155 = vshll.u32 %v1154, 16
    %v1156 = vadd.s32 %v1155, %v1153
    %v1157 = vand.u32 %v1123, 65535
    %v1158 = vshra.s32 %v1123, 16
    %v1159 = vcvt.s32.f32 %v1157
    %v1160 = vcvt.s32.f32 %v1158
    %1161 = vmin.xlane.f32.xlu0 %v1160
    %v1162 = vpop.xlane.xlu0 %1161
    %vm1163 = vcmp.eq.f32.partialorder %v1160, %v1162
    %v1164 = vsel %vm1163, %v1159, inf
    %1165 = vmin.xlane.f32.xlu0 %v1164
    %v1166 = vpop.xlane.xlu0 %1165
    %v1167 = vcvt.f32.s32 %v1166
    %v1168 = vcvt.f32.s32 %v1162
    %v1169 = vshll.u32 %v1168, 16
    %v1170 = vadd.s32 %v1169, %v1167
    %v1171 = vand.u32 %v1124, 65535
    %v1172 = vshra.s32 %v1124, 16
    %v1173 = vcvt.s32.f32 %v1171
    %v1174 = vcvt.s32.f32 %v1172
    %1175 = vmin.xlane.f32.xlu0 %v1174
    %v1176 = vpop.xlane.xlu0 %1175
    %vm1177 = vcmp.eq.f32.partialorder %v1174, %v1176
    %v1178 = vsel %vm1177, %v1173, inf
    %1179 = vmin.xlane.f32.xlu0 %v1178
    %v1180 = vpop.xlane.xlu0 %1179
    %v1181 = vcvt.f32.s32 %v1180
    %v1182 = vcvt.f32.s32 %v1176
    %v1183 = vshll.u32 %v1182, 16
    %v1184 = vadd.s32 %v1183, %v1181
    %v1185 = vand.u32 %v1125, 65535
    %v1186 = vshra.s32 %v1125, 16
    %v1187 = vcvt.s32.f32 %v1185
    %v1188 = vcvt.s32.f32 %v1186
    %1189 = vmin.xlane.f32.xlu0 %v1188
    %v1190 = vpop.xlane.xlu0 %1189
    %vm1191 = vcmp.eq.f32.partialorder %v1188, %v1190
    %v1192 = vsel %vm1191, %v1187, inf
    %1193 = vmin.xlane.f32.xlu0 %v1192
    %v1194 = vpop.xlane.xlu0 %1193
    %v1195 = vcvt.f32.s32 %v1194
    %v1196 = vcvt.f32.s32 %v1190
    %v1197 = vshll.u32 %v1196, 16
    %v1198 = vadd.s32 %v1197, %v1195
    %v1199 = vand.u32 %v1126, 65535
    %v1200 = vshra.s32 %v1126, 16
    %v1201 = vcvt.s32.f32 %v1199
    %v1202 = vcvt.s32.f32 %v1200
    %1203 = vmin.xlane.f32.xlu0 %v1202
    %v1204 = vpop.xlane.xlu0 %1203
    %vm1205 = vcmp.eq.f32.partialorder %v1202, %v1204
    %v1206 = vsel %vm1205, %v1201, inf
    %1207 = vmin.xlane.f32.xlu0 %v1206
    %v1208 = vpop.xlane.xlu0 %1207
    %v1209 = vcvt.f32.s32 %v1208
    %v1210 = vcvt.f32.s32 %v1204
    %v1211 = vshll.u32 %v1210, 16
    %v1212 = vadd.s32 %v1211, %v1209
    %v1213 = vand.u32 %v1127, 65535
    %v1214 = vshra.s32 %v1127, 16
    %v1215 = vcvt.s32.f32 %v1213
    %v1216 = vcvt.s32.f32 %v1214
    %1217 = vmin.xlane.f32.xlu0 %v1216
    %v1218 = vpop.xlane.xlu0 %1217
    %vm1219 = vcmp.eq.f32.partialorder %v1216, %v1218
    %v1220 = vsel %vm1219, %v1215, inf
    %1221 = vmin.xlane.f32.xlu0 %v1220
    %v1222 = vpop.xlane.xlu0 %1221
    %v1223 = vcvt.f32.s32 %v1222
    %v1224 = vcvt.f32.s32 %v1218
    %v1225 = vshll.u32 %v1224, 16
    %v1226 = vadd.s32 %v1225, %v1223
    %v1227 = vand.u32 %v1128, 65535
    %v1228 = vshra.s32 %v1128, 16
    %v1229 = vcvt.s32.f32 %v1227
    %v1230 = vcvt.s32.f32 %v1228
    %1231 = vmin.xlane.f32.xlu0 %v1230
    %v1232 = vpop.xlane.xlu0 %1231
    %vm1233 = vcmp.eq.f32.partialorder %v1230, %v1232
    %v1234 = vsel %vm1233, %v1229, inf
    %1235 = vmin.xlane.f32.xlu0 %v1234
    %v1236 = vpop.xlane.xlu0 %1235
    %v1237 = vcvt.f32.s32 %v1236
    %v1238 = vcvt.f32.s32 %v1232
    %v1239 = vshll.u32 %v1238, 16
    %v1240 = vadd.s32 %v1239, %v1237
    %vm1241 = vcmp.eq.s32.totalorder %v72, %v1142
    %vm1242 = vcmp.eq.s32.totalorder %v72, %v1156
    %vm1243 = vcmp.eq.s32.totalorder %v72, %v1170
    %vm1244 = vcmp.eq.s32.totalorder %v72, %v1184
    %vm1245 = vcmp.eq.s32.totalorder %v72, %v1198
    %vm1246 = vcmp.eq.s32.totalorder %v72, %v1212
    %vm1247 = vcmp.eq.s32.totalorder %v72, %v1226
    %vm1248 = vcmp.eq.s32.totalorder %v72, %v1240
    %v1249 = vsel %vm1241, -inf, %v1081
    %v1250 = vsel %vm1242, -inf, %v1082
    %v1251 = vsel %vm1243, -inf, %v1083
    %v1252 = vsel %vm1244, -inf, %v1084
    %v1253 = vsel %vm1245, -inf, %v1085
    %v1254 = vsel %vm1246, -inf, %v1086
    %v1255 = vsel %vm1247, -inf, %v1087
    %v1256 = vsel %vm1248, -inf, %v1088
    %1257 = vmax.xlane.f32.xlu0 %v1249
    %v1258 = vpop.xlane.xlu0 %1257
    %1259 = vmax.xlane.f32.xlu0 %v1250
    %v1260 = vpop.xlane.xlu0 %1259
    %1261 = vmax.xlane.f32.xlu0 %v1251
    %v1262 = vpop.xlane.xlu0 %1261
    %1263 = vmax.xlane.f32.xlu0 %v1252
    %v1264 = vpop.xlane.xlu0 %1263
    %1265 = vmax.xlane.f32.xlu0 %v1253
    %v1266 = vpop.xlane.xlu0 %1265
    %1267 = vmax.xlane.f32.xlu0 %v1254
    %v1268 = vpop.xlane.xlu0 %1267
    %1269 = vmax.xlane.f32.xlu0 %v1255
    %v1270 = vpop.xlane.xlu0 %1269
    %1271 = vmax.xlane.f32.xlu0 %v1256
    %v1272 = vpop.xlane.xlu0 %1271
    %v1273 = vadd.f32 %v1105, %v1258
    %v1274 = vadd.f32 %v1106, %v1260
    %v1275 = vadd.f32 %v1107, %v1262
    %v1276 = vadd.f32 %v1108, %v1264
    %v1277 = vadd.f32 %v1109, %v1266
    %v1278 = vadd.f32 %v1110, %v1268
    %v1279 = vadd.f32 %v1111, %v1270
    %v1280 = vadd.f32 %v1112, %v1272
    %v1281 = vmul.f32 %v1273, 0.2
    %v1282 = vmul.f32 %v1274, 0.2
    %v1283 = vmul.f32 %v1275, 0.2
    %v1284 = vmul.f32 %v1276, 0.2
    %v1285 = vmul.f32 %v1277, 0.2
    %v1286 = vmul.f32 %v1278, 0.2
    %v1287 = vmul.f32 %v1279, 0.2
    %v1288 = vmul.f32 %v1280, 0.2
    %1289 = vmax.xlane.f32.xlu0 %v585
    %v1290 = vpop.xlane.xlu0 %1289
    %1291 = vmax.xlane.f32.xlu0 %v586
    %v1292 = vpop.xlane.xlu0 %1291
    %1293 = vmax.xlane.f32.xlu0 %v587
    %v1294 = vpop.xlane.xlu0 %1293
    %1295 = vmax.xlane.f32.xlu0 %v588
    %v1296 = vpop.xlane.xlu0 %1295
    %1297 = vmax.xlane.f32.xlu0 %v589
    %v1298 = vpop.xlane.xlu0 %1297
    %1299 = vmax.xlane.f32.xlu0 %v590
    %v1300 = vpop.xlane.xlu0 %1299
    %1301 = vmax.xlane.f32.xlu0 %v591
    %v1302 = vpop.xlane.xlu0 %1301
    %1303 = vmax.xlane.f32.xlu0 %v592
    %v1304 = vpop.xlane.xlu0 %1303
    %vm1305 = vcmp.eq.f32.partialorder %v585, %v1290
    %vm1306 = vcmp.eq.f32.partialorder %v586, %v1292
    %vm1307 = vcmp.eq.f32.partialorder %v587, %v1294
    %vm1308 = vcmp.eq.f32.partialorder %v588, %v1296
    %vm1309 = vcmp.eq.f32.partialorder %v589, %v1298
    %vm1310 = vcmp.eq.f32.partialorder %v590, %v1300
    %vm1311 = vcmp.eq.f32.partialorder %v591, %v1302
    %vm1312 = vcmp.eq.f32.partialorder %v592, %v1304
    %v1313 = vsel %vm1305, %v72, 128
    %v1314 = vsel %vm1306, %v72, 128
    %v1315 = vsel %vm1307, %v72, 128
    %v1316 = vsel %vm1308, %v72, 128
    %v1317 = vsel %vm1309, %v72, 128
    %v1318 = vsel %vm1310, %v72, 128
    %v1319 = vsel %vm1311, %v72, 128
    %v1320 = vsel %vm1312, %v72, 128
    %v1321 = vand.u32 %v1313, 65535
    %v1322 = vshra.s32 %v1313, 16
    %v1323 = vcvt.s32.f32 %v1321
    %v1324 = vcvt.s32.f32 %v1322
    %1325 = vmin.xlane.f32.xlu0 %v1324
    %v1326 = vpop.xlane.xlu0 %1325
    %vm1327 = vcmp.eq.f32.partialorder %v1324, %v1326
    %v1328 = vsel %vm1327, %v1323, inf
    %1329 = vmin.xlane.f32.xlu0 %v1328
    %v1330 = vpop.xlane.xlu0 %1329
    %v1331 = vcvt.f32.s32 %v1330
    %v1332 = vcvt.f32.s32 %v1326
    %v1333 = vshll.u32 %v1332, 16
    %v1334 = vadd.s32 %v1333, %v1331
    %v1335 = vand.u32 %v1314, 65535
    %v1336 = vshra.s32 %v1314, 16
    %v1337 = vcvt.s32.f32 %v1335
    %v1338 = vcvt.s32.f32 %v1336
    %1339 = vmin.xlane.f32.xlu0 %v1338
    %v1340 = vpop.xlane.xlu0 %1339
    %vm1341 = vcmp.eq.f32.partialorder %v1338, %v1340
    %v1342 = vsel %vm1341, %v1337, inf
    %1343 = vmin.xlane.f32.xlu0 %v1342
    %v1344 = vpop.xlane.xlu0 %1343
    %v1345 = vcvt.f32.s32 %v1344
    %v1346 = vcvt.f32.s32 %v1340
    %v1347 = vshll.u32 %v1346, 16
    %v1348 = vadd.s32 %v1347, %v1345
    %v1349 = vand.u32 %v1315, 65535
    %v1350 = vshra.s32 %v1315, 16
    %v1351 = vcvt.s32.f32 %v1349
    %v1352 = vcvt.s32.f32 %v1350
    %1353 = vmin.xlane.f32.xlu0 %v1352
    %v1354 = vpop.xlane.xlu0 %1353
    %vm1355 = vcmp.eq.f32.partialorder %v1352, %v1354
    %v1356 = vsel %vm1355, %v1351, inf
    %1357 = vmin.xlane.f32.xlu0 %v1356
    %v1358 = vpop.xlane.xlu0 %1357
    %v1359 = vcvt.f32.s32 %v1358
    %v1360 = vcvt.f32.s32 %v1354
    %v1361 = vshll.u32 %v1360, 16
    %v1362 = vadd.s32 %v1361, %v1359
    %v1363 = vand.u32 %v1316, 65535
    %v1364 = vshra.s32 %v1316, 16
    %v1365 = vcvt.s32.f32 %v1363
    %v1366 = vcvt.s32.f32 %v1364
    %1367 = vmin.xlane.f32.xlu0 %v1366
    %v1368 = vpop.xlane.xlu0 %1367
    %vm1369 = vcmp.eq.f32.partialorder %v1366, %v1368
    %v1370 = vsel %vm1369, %v1365, inf
    %1371 = vmin.xlane.f32.xlu0 %v1370
    %v1372 = vpop.xlane.xlu0 %1371
    %v1373 = vcvt.f32.s32 %v1372
    %v1374 = vcvt.f32.s32 %v1368
    %v1375 = vshll.u32 %v1374, 16
    %v1376 = vadd.s32 %v1375, %v1373
    %v1377 = vand.u32 %v1317, 65535
    %v1378 = vshra.s32 %v1317, 16
    %v1379 = vcvt.s32.f32 %v1377
    %v1380 = vcvt.s32.f32 %v1378
    %1381 = vmin.xlane.f32.xlu0 %v1380
    %v1382 = vpop.xlane.xlu0 %1381
    %vm1383 = vcmp.eq.f32.partialorder %v1380, %v1382
    %v1384 = vsel %vm1383, %v1379, inf
    %1385 = vmin.xlane.f32.xlu0 %v1384
    %v1386 = vpop.xlane.xlu0 %1385
    %v1387 = vcvt.f32.s32 %v1386
    %v1388 = vcvt.f32.s32 %v1382
    %v1389 = vshll.u32 %v1388, 16
    %v1390 = vadd.s32 %v1389, %v1387
    %v1391 = vand.u32 %v1318, 65535
    %v1392 = vshra.s32 %v1318, 16
    %v1393 = vcvt.s32.f32 %v1391
    %v1394 = vcvt.s32.f32 %v1392
    %1395 = vmin.xlane.f32.xlu0 %v1394
    %v1396 = vpop.xlane.xlu0 %1395
    %vm1397 = vcmp.eq.f32.partialorder %v1394, %v1396
    %v1398 = vsel %vm1397, %v1393, inf
    %1399 = vmin.xlane.f32.xlu0 %v1398
    %v1400 = vpop.xlane.xlu0 %1399
    %v1401 = vcvt.f32.s32 %v1400
    %v1402 = vcvt.f32.s32 %v1396
    %v1403 = vshll.u32 %v1402, 16
    %v1404 = vadd.s32 %v1403, %v1401
    %v1405 = vand.u32 %v1319, 65535
    %v1406 = vshra.s32 %v1319, 16
    %v1407 = vcvt.s32.f32 %v1405
    %v1408 = vcvt.s32.f32 %v1406
    %1409 = vmin.xlane.f32.xlu0 %v1408
    %v1410 = vpop.xlane.xlu0 %1409
    %vm1411 = vcmp.eq.f32.partialorder %v1408, %v1410
    %v1412 = vsel %vm1411, %v1407, inf
    %1413 = vmin.xlane.f32.xlu0 %v1412
    %v1414 = vpop.xlane.xlu0 %1413
    %v1415 = vcvt.f32.s32 %v1414
    %v1416 = vcvt.f32.s32 %v1410
    %v1417 = vshll.u32 %v1416, 16
    %v1418 = vadd.s32 %v1417, %v1415
    %v1419 = vand.u32 %v1320, 65535
    %v1420 = vshra.s32 %v1320, 16
    %v1421 = vcvt.s32.f32 %v1419
    %v1422 = vcvt.s32.f32 %v1420
    %1423 = vmin.xlane.f32.xlu0 %v1422
    %v1424 = vpop.xlane.xlu0 %1423
    %vm1425 = vcmp.eq.f32.partialorder %v1422, %v1424
    %v1426 = vsel %vm1425, %v1421, inf
    %1427 = vmin.xlane.f32.xlu0 %v1426
    %v1428 = vpop.xlane.xlu0 %1427
    %v1429 = vcvt.f32.s32 %v1428
    %v1430 = vcvt.f32.s32 %v1424
    %v1431 = vshll.u32 %v1430, 16
    %v1432 = vadd.s32 %v1431, %v1429
    %vm1433 = vcmp.eq.s32.totalorder %v72, %v1334
    %vm1434 = vcmp.eq.s32.totalorder %v72, %v1348
    %vm1435 = vcmp.eq.s32.totalorder %v72, %v1362
    %vm1436 = vcmp.eq.s32.totalorder %v72, %v1376
    %vm1437 = vcmp.eq.s32.totalorder %v72, %v1390
    %vm1438 = vcmp.eq.s32.totalorder %v72, %v1404
    %vm1439 = vcmp.eq.s32.totalorder %v72, %v1418
    %vm1440 = vcmp.eq.s32.totalorder %v72, %v1432
    %v1441 = vsel %vm1433, -inf, %v585
    %v1442 = vsel %vm1434, -inf, %v586
    %v1443 = vsel %vm1435, -inf, %v587
    %v1444 = vsel %vm1436, -inf, %v588
    %v1445 = vsel %vm1437, -inf, %v589
    %v1446 = vsel %vm1438, -inf, %v590
    %v1447 = vsel %vm1439, -inf, %v591
    %v1448 = vsel %vm1440, -inf, %v592
    %1449 = vmax.xlane.f32.xlu0 %v1441
    %v1450 = vpop.xlane.xlu0 %1449
    %1451 = vmax.xlane.f32.xlu0 %v1442
    %v1452 = vpop.xlane.xlu0 %1451
    %1453 = vmax.xlane.f32.xlu0 %v1443
    %v1454 = vpop.xlane.xlu0 %1453
    %1455 = vmax.xlane.f32.xlu0 %v1444
    %v1456 = vpop.xlane.xlu0 %1455
    %1457 = vmax.xlane.f32.xlu0 %v1445
    %v1458 = vpop.xlane.xlu0 %1457
    %1459 = vmax.xlane.f32.xlu0 %v1446
    %v1460 = vpop.xlane.xlu0 %1459
    %1461 = vmax.xlane.f32.xlu0 %v1447
    %v1462 = vpop.xlane.xlu0 %1461
    %1463 = vmax.xlane.f32.xlu0 %v1448
    %v1464 = vpop.xlane.xlu0 %1463
    %v1465 = vadd.f32 %v1290, %v1450
    %v1466 = vadd.f32 %v1292, %v1452
    %v1467 = vadd.f32 %v1294, %v1454
    %v1468 = vadd.f32 %v1296, %v1456
    %v1469 = vadd.f32 %v1298, %v1458
    %v1470 = vadd.f32 %v1300, %v1460
    %v1471 = vadd.f32 %v1302, %v1462
    %v1472 = vadd.f32 %v1304, %v1464
    %vm1473 = vcmp.eq.f32.partialorder %v1441, %v1450
    %vm1474 = vcmp.eq.f32.partialorder %v1442, %v1452
    %vm1475 = vcmp.eq.f32.partialorder %v1443, %v1454
    %vm1476 = vcmp.eq.f32.partialorder %v1444, %v1456
    %vm1477 = vcmp.eq.f32.partialorder %v1445, %v1458
    %vm1478 = vcmp.eq.f32.partialorder %v1446, %v1460
    %vm1479 = vcmp.eq.f32.partialorder %v1447, %v1462
    %vm1480 = vcmp.eq.f32.partialorder %v1448, %v1464
    %v1481 = vsel %vm1473, %v72, 128
    %v1482 = vsel %vm1474, %v72, 128
    %v1483 = vsel %vm1475, %v72, 128
    %v1484 = vsel %vm1476, %v72, 128
    %v1485 = vsel %vm1477, %v72, 128
    %v1486 = vsel %vm1478, %v72, 128
    %v1487 = vsel %vm1479, %v72, 128
    %v1488 = vsel %vm1480, %v72, 128
    %v1489 = vand.u32 %v1481, 65535
    %v1490 = vshra.s32 %v1481, 16
    %v1491 = vcvt.s32.f32 %v1489
    %v1492 = vcvt.s32.f32 %v1490
    %1493 = vmin.xlane.f32.xlu0 %v1492
    %v1494 = vpop.xlane.xlu0 %1493
    %vm1495 = vcmp.eq.f32.partialorder %v1492, %v1494
    %v1496 = vsel %vm1495, %v1491, inf
    %1497 = vmin.xlane.f32.xlu0 %v1496
    %v1498 = vpop.xlane.xlu0 %1497
    %v1499 = vcvt.f32.s32 %v1498
    %v1500 = vcvt.f32.s32 %v1494
    %v1501 = vshll.u32 %v1500, 16
    %v1502 = vadd.s32 %v1501, %v1499
    %v1503 = vand.u32 %v1482, 65535
    %v1504 = vshra.s32 %v1482, 16
    %v1505 = vcvt.s32.f32 %v1503
    %v1506 = vcvt.s32.f32 %v1504
    %1507 = vmin.xlane.f32.xlu0 %v1506
    %v1508 = vpop.xlane.xlu0 %1507
    %vm1509 = vcmp.eq.f32.partialorder %v1506, %v1508
    %v1510 = vsel %vm1509, %v1505, inf
    %1511 = vmin.xlane.f32.xlu0 %v1510
    %v1512 = vpop.xlane.xlu0 %1511
    %v1513 = vcvt.f32.s32 %v1512
    %v1514 = vcvt.f32.s32 %v1508
    %v1515 = vshll.u32 %v1514, 16
    %v1516 = vadd.s32 %v1515, %v1513
    %v1517 = vand.u32 %v1483, 65535
    %v1518 = vshra.s32 %v1483, 16
    %v1519 = vcvt.s32.f32 %v1517
    %v1520 = vcvt.s32.f32 %v1518
    %1521 = vmin.xlane.f32.xlu0 %v1520
    %v1522 = vpop.xlane.xlu0 %1521
    %vm1523 = vcmp.eq.f32.partialorder %v1520, %v1522
    %v1524 = vsel %vm1523, %v1519, inf
    %1525 = vmin.xlane.f32.xlu0 %v1524
    %v1526 = vpop.xlane.xlu0 %1525
    %v1527 = vcvt.f32.s32 %v1526
    %v1528 = vcvt.f32.s32 %v1522
    %v1529 = vshll.u32 %v1528, 16
    %v1530 = vadd.s32 %v1529, %v1527
    %v1531 = vand.u32 %v1484, 65535
    %v1532 = vshra.s32 %v1484, 16
    %v1533 = vcvt.s32.f32 %v1531
    %v1534 = vcvt.s32.f32 %v1532
    %1535 = vmin.xlane.f32.xlu0 %v1534
    %v1536 = vpop.xlane.xlu0 %1535
    %vm1537 = vcmp.eq.f32.partialorder %v1534, %v1536
    %v1538 = vsel %vm1537, %v1533, inf
    %1539 = vmin.xlane.f32.xlu0 %v1538
    %v1540 = vpop.xlane.xlu0 %1539
    %v1541 = vcvt.f32.s32 %v1540
    %v1542 = vcvt.f32.s32 %v1536
    %v1543 = vshll.u32 %v1542, 16
    %v1544 = vadd.s32 %v1543, %v1541
    %v1545 = vand.u32 %v1485, 65535
    %v1546 = vshra.s32 %v1485, 16
    %v1547 = vcvt.s32.f32 %v1545
    %v1548 = vcvt.s32.f32 %v1546
    %1549 = vmin.xlane.f32.xlu0 %v1548
    %v1550 = vpop.xlane.xlu0 %1549
    %vm1551 = vcmp.eq.f32.partialorder %v1548, %v1550
    %v1552 = vsel %vm1551, %v1547, inf
    %1553 = vmin.xlane.f32.xlu0 %v1552
    %v1554 = vpop.xlane.xlu0 %1553
    %v1555 = vcvt.f32.s32 %v1554
    %v1556 = vcvt.f32.s32 %v1550
    %v1557 = vshll.u32 %v1556, 16
    %v1558 = vadd.s32 %v1557, %v1555
    %v1559 = vand.u32 %v1486, 65535
    %v1560 = vshra.s32 %v1486, 16
    %v1561 = vcvt.s32.f32 %v1559
    %v1562 = vcvt.s32.f32 %v1560
    %1563 = vmin.xlane.f32.xlu0 %v1562
    %v1564 = vpop.xlane.xlu0 %1563
    %vm1565 = vcmp.eq.f32.partialorder %v1562, %v1564
    %v1566 = vsel %vm1565, %v1561, inf
    %1567 = vmin.xlane.f32.xlu0 %v1566
    %v1568 = vpop.xlane.xlu0 %1567
    %v1569 = vcvt.f32.s32 %v1568
    %v1570 = vcvt.f32.s32 %v1564
    %v1571 = vshll.u32 %v1570, 16
    %v1572 = vadd.s32 %v1571, %v1569
    %v1573 = vand.u32 %v1487, 65535
    %v1574 = vshra.s32 %v1487, 16
    %v1575 = vcvt.s32.f32 %v1573
    %v1576 = vcvt.s32.f32 %v1574
    %1577 = vmin.xlane.f32.xlu0 %v1576
    %v1578 = vpop.xlane.xlu0 %1577
    %vm1579 = vcmp.eq.f32.partialorder %v1576, %v1578
    %v1580 = vsel %vm1579, %v1575, inf
    %1581 = vmin.xlane.f32.xlu0 %v1580
    %v1582 = vpop.xlane.xlu0 %1581
    %v1583 = vcvt.f32.s32 %v1582
    %v1584 = vcvt.f32.s32 %v1578
    %v1585 = vshll.u32 %v1584, 16
    %v1586 = vadd.s32 %v1585, %v1583
    %v1587 = vand.u32 %v1488, 65535
    %v1588 = vshra.s32 %v1488, 16
    %v1589 = vcvt.s32.f32 %v1587
    %v1590 = vcvt.s32.f32 %v1588
    %1591 = vmin.xlane.f32.xlu0 %v1590
    %v1592 = vpop.xlane.xlu0 %1591
    %vm1593 = vcmp.eq.f32.partialorder %v1590, %v1592
    %v1594 = vsel %vm1593, %v1589, inf
    %1595 = vmin.xlane.f32.xlu0 %v1594
    %v1596 = vpop.xlane.xlu0 %1595
    %v1597 = vcvt.f32.s32 %v1596
    %v1598 = vcvt.f32.s32 %v1592
    %v1599 = vshll.u32 %v1598, 16
    %v1600 = vadd.s32 %v1599, %v1597
    %vm1601 = vcmp.eq.s32.totalorder %v72, %v1502
    %vm1602 = vcmp.eq.s32.totalorder %v72, %v1516
    %vm1603 = vcmp.eq.s32.totalorder %v72, %v1530
    %vm1604 = vcmp.eq.s32.totalorder %v72, %v1544
    %vm1605 = vcmp.eq.s32.totalorder %v72, %v1558
    %vm1606 = vcmp.eq.s32.totalorder %v72, %v1572
    %vm1607 = vcmp.eq.s32.totalorder %v72, %v1586
    %vm1608 = vcmp.eq.s32.totalorder %v72, %v1600
    %v1609 = vsel %vm1601, -inf, %v1441
    %v1610 = vsel %vm1602, -inf, %v1442
    %v1611 = vsel %vm1603, -inf, %v1443
    %v1612 = vsel %vm1604, -inf, %v1444
    %v1613 = vsel %vm1605, -inf, %v1445
    %v1614 = vsel %vm1606, -inf, %v1446
    %v1615 = vsel %vm1607, -inf, %v1447
    %v1616 = vsel %vm1608, -inf, %v1448
    %1617 = vmax.xlane.f32.xlu0 %v1609
    %v1618 = vpop.xlane.xlu0 %1617
    %1619 = vmax.xlane.f32.xlu0 %v1610
    %v1620 = vpop.xlane.xlu0 %1619
    %1621 = vmax.xlane.f32.xlu0 %v1611
    %v1622 = vpop.xlane.xlu0 %1621
    %1623 = vmax.xlane.f32.xlu0 %v1612
    %v1624 = vpop.xlane.xlu0 %1623
    %1625 = vmax.xlane.f32.xlu0 %v1613
    %v1626 = vpop.xlane.xlu0 %1625
    %1627 = vmax.xlane.f32.xlu0 %v1614
    %v1628 = vpop.xlane.xlu0 %1627
    %1629 = vmax.xlane.f32.xlu0 %v1615
    %v1630 = vpop.xlane.xlu0 %1629
    %1631 = vmax.xlane.f32.xlu0 %v1616
    %v1632 = vpop.xlane.xlu0 %1631
    %v1633 = vadd.f32 %v1465, %v1618
    %v1634 = vadd.f32 %v1466, %v1620
    %v1635 = vadd.f32 %v1467, %v1622
    %v1636 = vadd.f32 %v1468, %v1624
    %v1637 = vadd.f32 %v1469, %v1626
    %v1638 = vadd.f32 %v1470, %v1628
    %v1639 = vadd.f32 %v1471, %v1630
    %v1640 = vadd.f32 %v1472, %v1632
    %vm1641 = vcmp.eq.f32.partialorder %v1609, %v1618
    %vm1642 = vcmp.eq.f32.partialorder %v1610, %v1620
    %vm1643 = vcmp.eq.f32.partialorder %v1611, %v1622
    %vm1644 = vcmp.eq.f32.partialorder %v1612, %v1624
    %vm1645 = vcmp.eq.f32.partialorder %v1613, %v1626
    %vm1646 = vcmp.eq.f32.partialorder %v1614, %v1628
    %vm1647 = vcmp.eq.f32.partialorder %v1615, %v1630
    %vm1648 = vcmp.eq.f32.partialorder %v1616, %v1632
    %v1649 = vsel %vm1641, %v72, 128
    %v1650 = vsel %vm1642, %v72, 128
    %v1651 = vsel %vm1643, %v72, 128
    %v1652 = vsel %vm1644, %v72, 128
    %v1653 = vsel %vm1645, %v72, 128
    %v1654 = vsel %vm1646, %v72, 128
    %v1655 = vsel %vm1647, %v72, 128
    %v1656 = vsel %vm1648, %v72, 128
    %v1657 = vand.u32 %v1649, 65535
    %v1658 = vshra.s32 %v1649, 16
    %v1659 = vcvt.s32.f32 %v1657
    %v1660 = vcvt.s32.f32 %v1658
    %1661 = vmin.xlane.f32.xlu0 %v1660
    %v1662 = vpop.xlane.xlu0 %1661
    %vm1663 = vcmp.eq.f32.partialorder %v1660, %v1662
    %v1664 = vsel %vm1663, %v1659, inf
    %1665 = vmin.xlane.f32.xlu0 %v1664
    %v1666 = vpop.xlane.xlu0 %1665
    %v1667 = vcvt.f32.s32 %v1666
    %v1668 = vcvt.f32.s32 %v1662
    %v1669 = vshll.u32 %v1668, 16
    %v1670 = vadd.s32 %v1669, %v1667
    %v1671 = vand.u32 %v1650, 65535
    %v1672 = vshra.s32 %v1650, 16
    %v1673 = vcvt.s32.f32 %v1671
    %v1674 = vcvt.s32.f32 %v1672
    %1675 = vmin.xlane.f32.xlu0 %v1674
    %v1676 = vpop.xlane.xlu0 %1675
    %vm1677 = vcmp.eq.f32.partialorder %v1674, %v1676
    %v1678 = vsel %vm1677, %v1673, inf
    %1679 = vmin.xlane.f32.xlu0 %v1678
    %v1680 = vpop.xlane.xlu0 %1679
    %v1681 = vcvt.f32.s32 %v1680
    %v1682 = vcvt.f32.s32 %v1676
    %v1683 = vshll.u32 %v1682, 16
    %v1684 = vadd.s32 %v1683, %v1681
    %v1685 = vand.u32 %v1651, 65535
    %v1686 = vshra.s32 %v1651, 16
    %v1687 = vcvt.s32.f32 %v1685
    %v1688 = vcvt.s32.f32 %v1686
    %1689 = vmin.xlane.f32.xlu0 %v1688
    %v1690 = vpop.xlane.xlu0 %1689
    %vm1691 = vcmp.eq.f32.partialorder %v1688, %v1690
    %v1692 = vsel %vm1691, %v1687, inf
    %1693 = vmin.xlane.f32.xlu0 %v1692
    %v1694 = vpop.xlane.xlu0 %1693
    %v1695 = vcvt.f32.s32 %v1694
    %v1696 = vcvt.f32.s32 %v1690
    %v1697 = vshll.u32 %v1696, 16
    %v1698 = vadd.s32 %v1697, %v1695
    %v1699 = vand.u32 %v1652, 65535
    %v1700 = vshra.s32 %v1652, 16
    %v1701 = vcvt.s32.f32 %v1699
    %v1702 = vcvt.s32.f32 %v1700
    %1703 = vmin.xlane.f32.xlu0 %v1702
    %v1704 = vpop.xlane.xlu0 %1703
    %vm1705 = vcmp.eq.f32.partialorder %v1702, %v1704
    %v1706 = vsel %vm1705, %v1701, inf
    %1707 = vmin.xlane.f32.xlu0 %v1706
    %v1708 = vpop.xlane.xlu0 %1707
    %v1709 = vcvt.f32.s32 %v1708
    %v1710 = vcvt.f32.s32 %v1704
    %v1711 = vshll.u32 %v1710, 16
    %v1712 = vadd.s32 %v1711, %v1709
    %v1713 = vand.u32 %v1653, 65535
    %v1714 = vshra.s32 %v1653, 16
    %v1715 = vcvt.s32.f32 %v1713
    %v1716 = vcvt.s32.f32 %v1714
    %1717 = vmin.xlane.f32.xlu0 %v1716
    %v1718 = vpop.xlane.xlu0 %1717
    %vm1719 = vcmp.eq.f32.partialorder %v1716, %v1718
    %v1720 = vsel %vm1719, %v1715, inf
    %1721 = vmin.xlane.f32.xlu0 %v1720
    %v1722 = vpop.xlane.xlu0 %1721
    %v1723 = vcvt.f32.s32 %v1722
    %v1724 = vcvt.f32.s32 %v1718
    %v1725 = vshll.u32 %v1724, 16
    %v1726 = vadd.s32 %v1725, %v1723
    %v1727 = vand.u32 %v1654, 65535
    %v1728 = vshra.s32 %v1654, 16
    %v1729 = vcvt.s32.f32 %v1727
    %v1730 = vcvt.s32.f32 %v1728
    %1731 = vmin.xlane.f32.xlu0 %v1730
    %v1732 = vpop.xlane.xlu0 %1731
    %vm1733 = vcmp.eq.f32.partialorder %v1730, %v1732
    %v1734 = vsel %vm1733, %v1729, inf
    %1735 = vmin.xlane.f32.xlu0 %v1734
    %v1736 = vpop.xlane.xlu0 %1735
    %v1737 = vcvt.f32.s32 %v1736
    %v1738 = vcvt.f32.s32 %v1732
    %v1739 = vshll.u32 %v1738, 16
    %v1740 = vadd.s32 %v1739, %v1737
    %v1741 = vand.u32 %v1655, 65535
    %v1742 = vshra.s32 %v1655, 16
    %v1743 = vcvt.s32.f32 %v1741
    %v1744 = vcvt.s32.f32 %v1742
    %1745 = vmin.xlane.f32.xlu0 %v1744
    %v1746 = vpop.xlane.xlu0 %1745
    %vm1747 = vcmp.eq.f32.partialorder %v1744, %v1746
    %v1748 = vsel %vm1747, %v1743, inf
    %1749 = vmin.xlane.f32.xlu0 %v1748
    %v1750 = vpop.xlane.xlu0 %1749
    %v1751 = vcvt.f32.s32 %v1750
    %v1752 = vcvt.f32.s32 %v1746
    %v1753 = vshll.u32 %v1752, 16
    %v1754 = vadd.s32 %v1753, %v1751
    %v1755 = vand.u32 %v1656, 65535
    %v1756 = vshra.s32 %v1656, 16
    %v1757 = vcvt.s32.f32 %v1755
    %v1758 = vcvt.s32.f32 %v1756
    %1759 = vmin.xlane.f32.xlu0 %v1758
    %v1760 = vpop.xlane.xlu0 %1759
    %vm1761 = vcmp.eq.f32.partialorder %v1758, %v1760
    %v1762 = vsel %vm1761, %v1757, inf
    %1763 = vmin.xlane.f32.xlu0 %v1762
    %v1764 = vpop.xlane.xlu0 %1763
    %v1765 = vcvt.f32.s32 %v1764
    %v1766 = vcvt.f32.s32 %v1760
    %v1767 = vshll.u32 %v1766, 16
    %v1768 = vadd.s32 %v1767, %v1765
    %vm1769 = vcmp.eq.s32.totalorder %v72, %v1670
    %vm1770 = vcmp.eq.s32.totalorder %v72, %v1684
    %vm1771 = vcmp.eq.s32.totalorder %v72, %v1698
    %vm1772 = vcmp.eq.s32.totalorder %v72, %v1712
    %vm1773 = vcmp.eq.s32.totalorder %v72, %v1726
    %vm1774 = vcmp.eq.s32.totalorder %v72, %v1740
    %vm1775 = vcmp.eq.s32.totalorder %v72, %v1754
    %vm1776 = vcmp.eq.s32.totalorder %v72, %v1768
    %v1777 = vsel %vm1769, -inf, %v1609
    %v1778 = vsel %vm1770, -inf, %v1610
    %v1779 = vsel %vm1771, -inf, %v1611
    %v1780 = vsel %vm1772, -inf, %v1612
    %v1781 = vsel %vm1773, -inf, %v1613
    %v1782 = vsel %vm1774, -inf, %v1614
    %v1783 = vsel %vm1775, -inf, %v1615
    %v1784 = vsel %vm1776, -inf, %v1616
    %1785 = vmax.xlane.f32.xlu0 %v1777
    %v1786 = vpop.xlane.xlu0 %1785
    %1787 = vmax.xlane.f32.xlu0 %v1778
    %v1788 = vpop.xlane.xlu0 %1787
    %1789 = vmax.xlane.f32.xlu0 %v1779
    %v1790 = vpop.xlane.xlu0 %1789
    %1791 = vmax.xlane.f32.xlu0 %v1780
    %v1792 = vpop.xlane.xlu0 %1791
    %1793 = vmax.xlane.f32.xlu0 %v1781
    %v1794 = vpop.xlane.xlu0 %1793
    %1795 = vmax.xlane.f32.xlu0 %v1782
    %v1796 = vpop.xlane.xlu0 %1795
    %1797 = vmax.xlane.f32.xlu0 %v1783
    %v1798 = vpop.xlane.xlu0 %1797
    %1799 = vmax.xlane.f32.xlu0 %v1784
    %v1800 = vpop.xlane.xlu0 %1799
    %v1801 = vadd.f32 %v1633, %v1786
    %v1802 = vadd.f32 %v1634, %v1788
    %v1803 = vadd.f32 %v1635, %v1790
    %v1804 = vadd.f32 %v1636, %v1792
    %v1805 = vadd.f32 %v1637, %v1794
    %v1806 = vadd.f32 %v1638, %v1796
    %v1807 = vadd.f32 %v1639, %v1798
    %v1808 = vadd.f32 %v1640, %v1800
    %vm1809 = vcmp.eq.f32.partialorder %v1777, %v1786
    %vm1810 = vcmp.eq.f32.partialorder %v1778, %v1788
    %vm1811 = vcmp.eq.f32.partialorder %v1779, %v1790
    %vm1812 = vcmp.eq.f32.partialorder %v1780, %v1792
    %vm1813 = vcmp.eq.f32.partialorder %v1781, %v1794
    %vm1814 = vcmp.eq.f32.partialorder %v1782, %v1796
    %vm1815 = vcmp.eq.f32.partialorder %v1783, %v1798
    %vm1816 = vcmp.eq.f32.partialorder %v1784, %v1800
    %v1817 = vsel %vm1809, %v72, 128
    %v1818 = vsel %vm1810, %v72, 128
    %v1819 = vsel %vm1811, %v72, 128
    %v1820 = vsel %vm1812, %v72, 128
    %v1821 = vsel %vm1813, %v72, 128
    %v1822 = vsel %vm1814, %v72, 128
    %v1823 = vsel %vm1815, %v72, 128
    %v1824 = vsel %vm1816, %v72, 128
    %v1825 = vand.u32 %v1817, 65535
    %v1826 = vshra.s32 %v1817, 16
    %v1827 = vcvt.s32.f32 %v1825
    %v1828 = vcvt.s32.f32 %v1826
    %1829 = vmin.xlane.f32.xlu0 %v1828
    %v1830 = vpop.xlane.xlu0 %1829
    %vm1831 = vcmp.eq.f32.partialorder %v1828, %v1830
    %v1832 = vsel %vm1831, %v1827, inf
    %1833 = vmin.xlane.f32.xlu0 %v1832
    %v1834 = vpop.xlane.xlu0 %1833
    %v1835 = vcvt.f32.s32 %v1834
    %v1836 = vcvt.f32.s32 %v1830
    %v1837 = vshll.u32 %v1836, 16
    %v1838 = vadd.s32 %v1837, %v1835
    %v1839 = vand.u32 %v1818, 65535
    %v1840 = vshra.s32 %v1818, 16
    %v1841 = vcvt.s32.f32 %v1839
    %v1842 = vcvt.s32.f32 %v1840
    %1843 = vmin.xlane.f32.xlu0 %v1842
    %v1844 = vpop.xlane.xlu0 %1843
    %vm1845 = vcmp.eq.f32.partialorder %v1842, %v1844
    %v1846 = vsel %vm1845, %v1841, inf
    %1847 = vmin.xlane.f32.xlu0 %v1846
    %v1848 = vpop.xlane.xlu0 %1847
    %v1849 = vcvt.f32.s32 %v1848
    %v1850 = vcvt.f32.s32 %v1844
    %v1851 = vshll.u32 %v1850, 16
    %v1852 = vadd.s32 %v1851, %v1849
    %v1853 = vand.u32 %v1819, 65535
    %v1854 = vshra.s32 %v1819, 16
    %v1855 = vcvt.s32.f32 %v1853
    %v1856 = vcvt.s32.f32 %v1854
    %1857 = vmin.xlane.f32.xlu0 %v1856
    %v1858 = vpop.xlane.xlu0 %1857
    %vm1859 = vcmp.eq.f32.partialorder %v1856, %v1858
    %v1860 = vsel %vm1859, %v1855, inf
    %1861 = vmin.xlane.f32.xlu0 %v1860
    %v1862 = vpop.xlane.xlu0 %1861
    %v1863 = vcvt.f32.s32 %v1862
    %v1864 = vcvt.f32.s32 %v1858
    %v1865 = vshll.u32 %v1864, 16
    %v1866 = vadd.s32 %v1865, %v1863
    %v1867 = vand.u32 %v1820, 65535
    %v1868 = vshra.s32 %v1820, 16
    %v1869 = vcvt.s32.f32 %v1867
    %v1870 = vcvt.s32.f32 %v1868
    %1871 = vmin.xlane.f32.xlu0 %v1870
    %v1872 = vpop.xlane.xlu0 %1871
    %vm1873 = vcmp.eq.f32.partialorder %v1870, %v1872
    %v1874 = vsel %vm1873, %v1869, inf
    %1875 = vmin.xlane.f32.xlu0 %v1874
    %v1876 = vpop.xlane.xlu0 %1875
    %v1877 = vcvt.f32.s32 %v1876
    %v1878 = vcvt.f32.s32 %v1872
    %v1879 = vshll.u32 %v1878, 16
    %v1880 = vadd.s32 %v1879, %v1877
    %v1881 = vand.u32 %v1821, 65535
    %v1882 = vshra.s32 %v1821, 16
    %v1883 = vcvt.s32.f32 %v1881
    %v1884 = vcvt.s32.f32 %v1882
    %1885 = vmin.xlane.f32.xlu0 %v1884
    %v1886 = vpop.xlane.xlu0 %1885
    %vm1887 = vcmp.eq.f32.partialorder %v1884, %v1886
    %v1888 = vsel %vm1887, %v1883, inf
    %1889 = vmin.xlane.f32.xlu0 %v1888
    %v1890 = vpop.xlane.xlu0 %1889
    %v1891 = vcvt.f32.s32 %v1890
    %v1892 = vcvt.f32.s32 %v1886
    %v1893 = vshll.u32 %v1892, 16
    %v1894 = vadd.s32 %v1893, %v1891
    %v1895 = vand.u32 %v1822, 65535
    %v1896 = vshra.s32 %v1822, 16
    %v1897 = vcvt.s32.f32 %v1895
    %v1898 = vcvt.s32.f32 %v1896
    %1899 = vmin.xlane.f32.xlu0 %v1898
    %v1900 = vpop.xlane.xlu0 %1899
    %vm1901 = vcmp.eq.f32.partialorder %v1898, %v1900
    %v1902 = vsel %vm1901, %v1897, inf
    %1903 = vmin.xlane.f32.xlu0 %v1902
    %v1904 = vpop.xlane.xlu0 %1903
    %v1905 = vcvt.f32.s32 %v1904
    %v1906 = vcvt.f32.s32 %v1900
    %v1907 = vshll.u32 %v1906, 16
    %v1908 = vadd.s32 %v1907, %v1905
    %v1909 = vand.u32 %v1823, 65535
    %v1910 = vshra.s32 %v1823, 16
    %v1911 = vcvt.s32.f32 %v1909
    %v1912 = vcvt.s32.f32 %v1910
    %1913 = vmin.xlane.f32.xlu0 %v1912
    %v1914 = vpop.xlane.xlu0 %1913
    %vm1915 = vcmp.eq.f32.partialorder %v1912, %v1914
    %v1916 = vsel %vm1915, %v1911, inf
    %1917 = vmin.xlane.f32.xlu0 %v1916
    %v1918 = vpop.xlane.xlu0 %1917
    %v1919 = vcvt.f32.s32 %v1918
    %v1920 = vcvt.f32.s32 %v1914
    %v1921 = vshll.u32 %v1920, 16
    %v1922 = vadd.s32 %v1921, %v1919
    %v1923 = vand.u32 %v1824, 65535
    %v1924 = vshra.s32 %v1824, 16
    %v1925 = vcvt.s32.f32 %v1923
    %v1926 = vcvt.s32.f32 %v1924
    %1927 = vmin.xlane.f32.xlu0 %v1926
    %v1928 = vpop.xlane.xlu0 %1927
    %vm1929 = vcmp.eq.f32.partialorder %v1926, %v1928
    %v1930 = vsel %vm1929, %v1925, inf
    %1931 = vmin.xlane.f32.xlu0 %v1930
    %v1932 = vpop.xlane.xlu0 %1931
    %v1933 = vcvt.f32.s32 %v1932
    %v1934 = vcvt.f32.s32 %v1928
    %v1935 = vshll.u32 %v1934, 16
    %v1936 = vadd.s32 %v1935, %v1933
    %vm1937 = vcmp.eq.s32.totalorder %v72, %v1838
    %vm1938 = vcmp.eq.s32.totalorder %v72, %v1852
    %vm1939 = vcmp.eq.s32.totalorder %v72, %v1866
    %vm1940 = vcmp.eq.s32.totalorder %v72, %v1880
    %vm1941 = vcmp.eq.s32.totalorder %v72, %v1894
    %vm1942 = vcmp.eq.s32.totalorder %v72, %v1908
    %vm1943 = vcmp.eq.s32.totalorder %v72, %v1922
    %vm1944 = vcmp.eq.s32.totalorder %v72, %v1936
    %v1945 = vsel %vm1937, -inf, %v1777
    %v1946 = vsel %vm1938, -inf, %v1778
    %v1947 = vsel %vm1939, -inf, %v1779
    %v1948 = vsel %vm1940, -inf, %v1780
    %v1949 = vsel %vm1941, -inf, %v1781
    %v1950 = vsel %vm1942, -inf, %v1782
    %v1951 = vsel %vm1943, -inf, %v1783
    %v1952 = vsel %vm1944, -inf, %v1784
    %1953 = vmax.xlane.f32.xlu0 %v1945
    %v1954 = vpop.xlane.xlu0 %1953
    %1955 = vmax.xlane.f32.xlu0 %v1946
    %v1956 = vpop.xlane.xlu0 %1955
    %1957 = vmax.xlane.f32.xlu0 %v1947
    %v1958 = vpop.xlane.xlu0 %1957
    %1959 = vmax.xlane.f32.xlu0 %v1948
    %v1960 = vpop.xlane.xlu0 %1959
    %1961 = vmax.xlane.f32.xlu0 %v1949
    %v1962 = vpop.xlane.xlu0 %1961
    %1963 = vmax.xlane.f32.xlu0 %v1950
    %v1964 = vpop.xlane.xlu0 %1963
    %1965 = vmax.xlane.f32.xlu0 %v1951
    %v1966 = vpop.xlane.xlu0 %1965
    %1967 = vmax.xlane.f32.xlu0 %v1952
    %v1968 = vpop.xlane.xlu0 %1967
    %v1969 = vadd.f32 %v1801, %v1954
    %v1970 = vadd.f32 %v1802, %v1956
    %v1971 = vadd.f32 %v1803, %v1958
    %v1972 = vadd.f32 %v1804, %v1960
    %v1973 = vadd.f32 %v1805, %v1962
    %v1974 = vadd.f32 %v1806, %v1964
    %v1975 = vadd.f32 %v1807, %v1966
    %v1976 = vadd.f32 %v1808, %v1968
    %v1977 = vmul.f32 %v1969, 0.2
    %v1978 = vmul.f32 %v1970, 0.2
    %v1979 = vmul.f32 %v1971, 0.2
    %v1980 = vmul.f32 %v1972, 0.2
    %v1981 = vmul.f32 %v1973, 0.2
    %v1982 = vmul.f32 %v1974, 0.2
    %v1983 = vmul.f32 %v1975, 0.2
    %v1984 = vmul.f32 %v1976, 0.2
    %v1985 = vld [vmem:[%s2] sm:$0xff]
    %v1986 = vld [vmem:[%s2 + $0x8] sm:$0xff]
    %v1987 = vld [vmem:[%s2 + $0x10] sm:$0xff]
    %v1988 = vld [vmem:[%s2 + $0x18] sm:$0xff]
    %v1989 = vld [vmem:[%s2 + $0x20] sm:$0xff]
    %v1990 = vld [vmem:[%s2 + $0x28] sm:$0xff]
    %v1991 = vld [vmem:[%s2 + $0x30] sm:$0xff]
    %v1992 = vld [vmem:[%s2 + $0x38] sm:$0xff]
    %v1993 = vld [vmem:[%s3] sm:$0x1]
    %v1994 = vld [vmem:[%s3 + $0x1] sm:$0x1]
    %v1995 = vld [vmem:[%s3 + $0x2] sm:$0x1]
    %v1996 = vld [vmem:[%s3 + $0x3] sm:$0x1]
    %v1997 = vld [vmem:[%s3 + $0x4] sm:$0x1]
    %v1998 = vld [vmem:[%s3 + $0x5] sm:$0x1]
    %v1999 = vld [vmem:[%s3 + $0x6] sm:$0x1]
    %v2000 = vld [vmem:[%s3 + $0x7] sm:$0x1]
    %2001 = vset.pattern.permute.xlu0 0
    %2002 = vperm.xlu0 %2001, %v1985
    %v2003 = vpop.permute.xlu0 %2002
    %2004 = vset.pattern.permute.xlu0 0
    %2005 = vperm.xlu0 %2004, %v1986
    %v2006 = vpop.permute.xlu0 %2005
    %2007 = vset.pattern.permute.xlu0 0
    %2008 = vperm.xlu0 %2007, %v1987
    %v2009 = vpop.permute.xlu0 %2008
    %2010 = vset.pattern.permute.xlu0 0
    %2011 = vperm.xlu0 %2010, %v1988
    %v2012 = vpop.permute.xlu0 %2011
    %2013 = vset.pattern.permute.xlu0 0
    %2014 = vperm.xlu0 %2013, %v1989
    %v2015 = vpop.permute.xlu0 %2014
    %2016 = vset.pattern.permute.xlu0 0
    %2017 = vperm.xlu0 %2016, %v1990
    %v2018 = vpop.permute.xlu0 %2017
    %2019 = vset.pattern.permute.xlu0 0
    %2020 = vperm.xlu0 %2019, %v1991
    %v2021 = vpop.permute.xlu0 %2020
    %2022 = vset.pattern.permute.xlu0 0
    %2023 = vperm.xlu0 %2022, %v1992
    %v2024 = vpop.permute.xlu0 %2023
    %v2025 = vlaneseq
    %v2026 = vshrl.u32 %v2025, 7
    %v2027 = vsub.s32 0, %v2026
    %v2028 = vrot.slane %v1993, %v2027
    %v2029 = vlaneseq
    %v2030 = vshrl.u32 %v2029, 7
    %v2031 = vsub.s32 0, %v2030
    %v2032 = vrot.slane %v1994, %v2031
    %v2033 = vlaneseq
    %v2034 = vshrl.u32 %v2033, 7
    %v2035 = vsub.s32 0, %v2034
    %v2036 = vrot.slane %v1995, %v2035
    %v2037 = vlaneseq
    %v2038 = vshrl.u32 %v2037, 7
    %v2039 = vsub.s32 0, %v2038
    %v2040 = vrot.slane %v1996, %v2039
    %v2041 = vlaneseq
    %v2042 = vshrl.u32 %v2041, 7
    %v2043 = vsub.s32 0, %v2042
    %v2044 = vrot.slane %v1997, %v2043
    %v2045 = vlaneseq
    %v2046 = vshrl.u32 %v2045, 7
    %v2047 = vsub.s32 0, %v2046
    %v2048 = vrot.slane %v1998, %v2047
    %v2049 = vlaneseq
    %v2050 = vshrl.u32 %v2049, 7
    %v2051 = vsub.s32 0, %v2050
    %v2052 = vrot.slane %v1999, %v2051
    %v2053 = vlaneseq
    %v2054 = vshrl.u32 %v2053, 7
    %v2055 = vsub.s32 0, %v2054
    %v2056 = vrot.slane %v2000, %v2055
    %vm2057 = vcmp.eq.s32.totalorder %v2003, %v2028
    %vm2058 = vcmp.eq.s32.totalorder %v2006, %v2032
    %vm2059 = vcmp.eq.s32.totalorder %v2009, %v2036
    %vm2060 = vcmp.eq.s32.totalorder %v2012, %v2040
    %vm2061 = vcmp.eq.s32.totalorder %v2015, %v2044
    %vm2062 = vcmp.eq.s32.totalorder %v2018, %v2048
    %vm2063 = vcmp.eq.s32.totalorder %v2021, %v2052
    %vm2064 = vcmp.eq.s32.totalorder %v2024, %v2056
    %vm2065 = vcmp.ne.s32.totalorder %v1985, 0
    %vm2066 = vcmp.ne.s32.totalorder %v1986, 0
    %vm2067 = vcmp.ne.s32.totalorder %v1987, 0
    %vm2068 = vcmp.ne.s32.totalorder %v1988, 0
    %vm2069 = vcmp.ne.s32.totalorder %v1989, 0
    %vm2070 = vcmp.ne.s32.totalorder %v1990, 0
    %vm2071 = vcmp.ne.s32.totalorder %v1991, 0
    %vm2072 = vcmp.ne.s32.totalorder %v1992, 0
    %v2073 = vsel %vm2065, 1, 0
    %v2074 = vsel %vm2066, 1, 0
    %v2075 = vsel %vm2067, 1, 0
    %v2076 = vsel %vm2068, 1, 0
    %v2077 = vsel %vm2069, 1, 0
    %v2078 = vsel %vm2070, 1, 0
    %v2079 = vsel %vm2071, 1, 0
    %v2080 = vsel %vm2072, 1, 0
    %2081 = vset.pattern.permute.xlu0 0
    %2082 = vperm.xlu0 %2081, %v2073
    %v2083 = vpop.permute.xlu0 %2082
    %2084 = vset.pattern.permute.xlu0 0
    %2085 = vperm.xlu0 %2084, %v2074
    %v2086 = vpop.permute.xlu0 %2085
    %2087 = vset.pattern.permute.xlu0 0
    %2088 = vperm.xlu0 %2087, %v2075
    %v2089 = vpop.permute.xlu0 %2088
    %2090 = vset.pattern.permute.xlu0 0
    %2091 = vperm.xlu0 %2090, %v2076
    %v2092 = vpop.permute.xlu0 %2091
    %2093 = vset.pattern.permute.xlu0 0
    %2094 = vperm.xlu0 %2093, %v2077
    %v2095 = vpop.permute.xlu0 %2094
    %2096 = vset.pattern.permute.xlu0 0
    %2097 = vperm.xlu0 %2096, %v2078
    %v2098 = vpop.permute.xlu0 %2097
    %2099 = vset.pattern.permute.xlu0 0
    %2100 = vperm.xlu0 %2099, %v2079
    %v2101 = vpop.permute.xlu0 %2100
    %2102 = vset.pattern.permute.xlu0 0
    %2103 = vperm.xlu0 %2102, %v2080
    %v2104 = vpop.permute.xlu0 %2103
    %vm2105 = vcmp.eq.s32.totalorder %v2083, 1
    %vm2106 = vcmp.eq.s32.totalorder %v2086, 1
    %vm2107 = vcmp.eq.s32.totalorder %v2089, 1
    %vm2108 = vcmp.eq.s32.totalorder %v2092, 1
    %vm2109 = vcmp.eq.s32.totalorder %v2095, 1
    %vm2110 = vcmp.eq.s32.totalorder %v2098, 1
    %vm2111 = vcmp.eq.s32.totalorder %v2101, 1
    %vm2112 = vcmp.eq.s32.totalorder %v2104, 1
    %vm2113 = vmand %vm2057, %vm2105
    %vm2114 = vmand %vm2058, %vm2106
    %vm2115 = vmand %vm2059, %vm2107
    %vm2116 = vmand %vm2060, %vm2108
    %vm2117 = vmand %vm2061, %vm2109
    %vm2118 = vmand %vm2062, %vm2110
    %vm2119 = vmand %vm2063, %vm2111
    %vm2120 = vmand %vm2064, %vm2112
    %v2121 = vsel %vm2113, 1, 0
    %v2122 = vsel %vm2114, 1, 0
    %v2123 = vsel %vm2115, 1, 0
    %v2124 = vsel %vm2116, 1, 0
    %v2125 = vsel %vm2117, 1, 0
    %v2126 = vsel %vm2118, 1, 0
    %v2127 = vsel %vm2119, 1, 0
    %v2128 = vsel %vm2120, 1, 0
    %v2129 = vcvt.s32.f32 %v2121
    %v2130 = vcvt.s32.f32 %v2122
    %v2131 = vcvt.s32.f32 %v2123
    %v2132 = vcvt.s32.f32 %v2124
    %v2133 = vcvt.s32.f32 %v2125
    %v2134 = vcvt.s32.f32 %v2126
    %v2135 = vcvt.s32.f32 %v2127
    %v2136 = vcvt.s32.f32 %v2128
    %vm2137 = vcmask 130048
    %v2138 = vsel %vm2137, %v2129, 0.0
    %2139 = vadd.xlane.f32.xlu0 %v2138
    %v2140 = vpop.xlane.xlu0 %2139
    %v2141 = vsel %vm2137, %v2130, 0.0
    %2142 = vadd.xlane.f32.xlu0 %v2141
    %v2143 = vpop.xlane.xlu0 %2142
    %v2144 = vsel %vm2137, %v2131, 0.0
    %2145 = vadd.xlane.f32.xlu0 %v2144
    %v2146 = vpop.xlane.xlu0 %2145
    %v2147 = vsel %vm2137, %v2132, 0.0
    %2148 = vadd.xlane.f32.xlu0 %v2147
    %v2149 = vpop.xlane.xlu0 %2148
    %v2150 = vsel %vm2137, %v2133, 0.0
    %2151 = vadd.xlane.f32.xlu0 %v2150
    %v2152 = vpop.xlane.xlu0 %2151
    %v2153 = vsel %vm2137, %v2134, 0.0
    %2154 = vadd.xlane.f32.xlu0 %v2153
    %v2155 = vpop.xlane.xlu0 %2154
    %v2156 = vsel %vm2137, %v2135, 0.0
    %2157 = vadd.xlane.f32.xlu0 %v2156
    %v2158 = vpop.xlane.xlu0 %2157
    %v2159 = vsel %vm2137, %v2136, 0.0
    %2160 = vadd.xlane.f32.xlu0 %v2159
    %v2161 = vpop.xlane.xlu0 %2160
    %vm2162 = vcmp.gt.f32.partialorder %v2140, 0.0
    %vm2163 = vcmp.gt.f32.partialorder %v2143, 0.0
    %vm2164 = vcmp.gt.f32.partialorder %v2146, 0.0
    %vm2165 = vcmp.gt.f32.partialorder %v2149, 0.0
    %vm2166 = vcmp.gt.f32.partialorder %v2152, 0.0
    %vm2167 = vcmp.gt.f32.partialorder %v2155, 0.0
    %vm2168 = vcmp.gt.f32.partialorder %v2158, 0.0
    %vm2169 = vcmp.gt.f32.partialorder %v2161, 0.0
    %v2170 = vsel %vm2162, 1, 0
    %v2171 = vsel %vm2163, 1, 0
    %v2172 = vsel %vm2164, 1, 0
    %v2173 = vsel %vm2165, 1, 0
    %v2174 = vsel %vm2166, 1, 0
    %v2175 = vsel %vm2167, 1, 0
    %v2176 = vsel %vm2168, 1, 0
    %v2177 = vsel %vm2169, 1, 0
    %v2178 = vcvt.s32.f32 %v2170
    %v2179 = vcvt.s32.f32 %v2171
    %v2180 = vcvt.s32.f32 %v2172
    %v2181 = vcvt.s32.f32 %v2173
    %v2182 = vcvt.s32.f32 %v2174
    %v2183 = vcvt.s32.f32 %v2175
    %v2184 = vcvt.s32.f32 %v2176
    %v2185 = vcvt.s32.f32 %v2177
    %v2186 = vmin.f32 %v2140, 5.0
    %v2187 = vmin.f32 %v2143, 5.0
    %v2188 = vmin.f32 %v2146, 5.0
    %v2189 = vmin.f32 %v2149, 5.0
    %v2190 = vmin.f32 %v2152, 5.0
    %v2191 = vmin.f32 %v2155, 5.0
    %v2192 = vmin.f32 %v2158, 5.0
    %v2193 = vmin.f32 %v2161, 5.0
    %v2194 = vmul.f32 %v2186, 0.2
    %v2195 = vmul.f32 %v2187, 0.2
    %v2196 = vmul.f32 %v2188, 0.2
    %v2197 = vmul.f32 %v2189, 0.2
    %v2198 = vmul.f32 %v2190, 0.2
    %v2199 = vmul.f32 %v2191, 0.2
    %v2200 = vmul.f32 %v2192, 0.2
    %v2201 = vmul.f32 %v2193, 0.2
    %s2202 = sld [smem:[#allocation4]]
    %v2203 = vstv %s2202
    %v2204 = vmul.f32 %v2203, %v594
    %v2205 = vmul.f32 %v2203, %v596
    %v2206 = vmul.f32 %v2203, %v598
    %v2207 = vmul.f32 %v2203, %v600
    %v2208 = vmul.f32 %v2203, %v602
    %v2209 = vmul.f32 %v2203, %v604
    %v2210 = vmul.f32 %v2203, %v606
    %v2211 = vmul.f32 %v2203, %v608
    %s2212 = sld [smem:[#allocation4 + $0x1]]
    %v2213 = vstv %s2212
    %v2214 = vmul.f32 %v2213, %v1281
    %v2215 = vmul.f32 %v2213, %v1282
    %v2216 = vmul.f32 %v2213, %v1283
    %v2217 = vmul.f32 %v2213, %v1284
    %v2218 = vmul.f32 %v2213, %v1285
    %v2219 = vmul.f32 %v2213, %v1286
    %v2220 = vmul.f32 %v2213, %v1287
    %v2221 = vmul.f32 %v2213, %v1288
    %v2222 = vadd.f32 %v2204, %v2214
    %v2223 = vadd.f32 %v2205, %v2215
    %v2224 = vadd.f32 %v2206, %v2216
    %v2225 = vadd.f32 %v2207, %v2217
    %v2226 = vadd.f32 %v2208, %v2218
    %v2227 = vadd.f32 %v2209, %v2219
    %v2228 = vadd.f32 %v2210, %v2220
    %v2229 = vadd.f32 %v2211, %v2221
    %s2230 = sld [smem:[#allocation4 + $0x2]]
    %v2231 = vstv %s2230
    %v2232 = vmul.f32 %v2231, %v1290
    %v2233 = vmul.f32 %v2231, %v1292
    %v2234 = vmul.f32 %v2231, %v1294
    %v2235 = vmul.f32 %v2231, %v1296
    %v2236 = vmul.f32 %v2231, %v1298
    %v2237 = vmul.f32 %v2231, %v1300
    %v2238 = vmul.f32 %v2231, %v1302
    %v2239 = vmul.f32 %v2231, %v1304
    %v2240 = vadd.f32 %v2222, %v2232
    %v2241 = vadd.f32 %v2223, %v2233
    %v2242 = vadd.f32 %v2224, %v2234
    %v2243 = vadd.f32 %v2225, %v2235
    %v2244 = vadd.f32 %v2226, %v2236
    %v2245 = vadd.f32 %v2227, %v2237
    %v2246 = vadd.f32 %v2228, %v2238
    %v2247 = vadd.f32 %v2229, %v2239
    %s2248 = sld [smem:[#allocation4 + $0x3]]
    %v2249 = vstv %s2248
    %v2250 = vmul.f32 %v2249, %v1977
    %v2251 = vmul.f32 %v2249, %v1978
    %v2252 = vmul.f32 %v2249, %v1979
    %v2253 = vmul.f32 %v2249, %v1980
    %v2254 = vmul.f32 %v2249, %v1981
    %v2255 = vmul.f32 %v2249, %v1982
    %v2256 = vmul.f32 %v2249, %v1983
    %v2257 = vmul.f32 %v2249, %v1984
    %v2258 = vadd.f32 %v2240, %v2250
    %v2259 = vadd.f32 %v2241, %v2251
    %v2260 = vadd.f32 %v2242, %v2252
    %v2261 = vadd.f32 %v2243, %v2253
    %v2262 = vadd.f32 %v2244, %v2254
    %v2263 = vadd.f32 %v2245, %v2255
    %v2264 = vadd.f32 %v2246, %v2256
    %v2265 = vadd.f32 %v2247, %v2257
    %s2266 = sld [smem:[#allocation4 + $0x4]]
    %v2267 = vstv %s2266
    %v2268 = vmul.f32 %v2267, %v2178
    %v2269 = vmul.f32 %v2267, %v2179
    %v2270 = vmul.f32 %v2267, %v2180
    %v2271 = vmul.f32 %v2267, %v2181
    %v2272 = vmul.f32 %v2267, %v2182
    %v2273 = vmul.f32 %v2267, %v2183
    %v2274 = vmul.f32 %v2267, %v2184
    %v2275 = vmul.f32 %v2267, %v2185
    %v2276 = vadd.f32 %v2258, %v2268
    %v2277 = vadd.f32 %v2259, %v2269
    %v2278 = vadd.f32 %v2260, %v2270
    %v2279 = vadd.f32 %v2261, %v2271
    %v2280 = vadd.f32 %v2262, %v2272
    %v2281 = vadd.f32 %v2263, %v2273
    %v2282 = vadd.f32 %v2264, %v2274
    %v2283 = vadd.f32 %v2265, %v2275
    %s2284 = sld [smem:[#allocation4 + $0x5]]
    %v2285 = vstv %s2284
    %v2286 = vmul.f32 %v2285, %v2194
    %v2287 = vmul.f32 %v2285, %v2195
    %v2288 = vmul.f32 %v2285, %v2196
    %v2289 = vmul.f32 %v2285, %v2197
    %v2290 = vmul.f32 %v2285, %v2198
    %v2291 = vmul.f32 %v2285, %v2199
    %v2292 = vmul.f32 %v2285, %v2200
    %v2293 = vmul.f32 %v2285, %v2201
    %v2294 = vadd.f32 %v2276, %v2286
    %v2295 = vadd.f32 %v2277, %v2287
    %v2296 = vadd.f32 %v2278, %v2288
    %v2297 = vadd.f32 %v2279, %v2289
    %v2298 = vadd.f32 %v2280, %v2290
    %v2299 = vadd.f32 %v2281, %v2291
    %v2300 = vadd.f32 %v2282, %v2292
    %v2301 = vadd.f32 %v2283, %v2293
    %s2302 = sld [smem:[#allocation2]]
    %v2303 = vstv %s2302
    %v2304 = vadd.f32 %v2294, %v2303
    %v2305 = vadd.f32 %v2295, %v2303
    %v2306 = vadd.f32 %v2296, %v2303
    %v2307 = vadd.f32 %v2297, %v2303
    %v2308 = vadd.f32 %v2298, %v2303
    %v2309 = vadd.f32 %v2299, %v2303
    %v2310 = vadd.f32 %v2300, %v2303
    %v2311 = vadd.f32 %v2301, %v2303
    %vm2312 = vcmp.ge.f32.partialorder %v2304, 0.0
    %vm2313 = vcmp.ge.f32.partialorder %v2305, 0.0
    %vm2314 = vcmp.ge.f32.partialorder %v2306, 0.0
    %vm2315 = vcmp.ge.f32.partialorder %v2307, 0.0
    %vm2316 = vcmp.ge.f32.partialorder %v2308, 0.0
    %vm2317 = vcmp.ge.f32.partialorder %v2309, 0.0
    %vm2318 = vcmp.ge.f32.partialorder %v2310, 0.0
    %vm2319 = vcmp.ge.f32.partialorder %v2311, 0.0
    %v2320 = vmul.f32 %v2304, 0.01
    %v2321 = vmul.f32 %v2305, 0.01
    %v2322 = vmul.f32 %v2306, 0.01
    %v2323 = vmul.f32 %v2307, 0.01
    %v2324 = vmul.f32 %v2308, 0.01
    %v2325 = vmul.f32 %v2309, 0.01
    %v2326 = vmul.f32 %v2310, 0.01
    %v2327 = vmul.f32 %v2311, 0.01
    %v2328 = vsel %vm2312, %v2304, %v2320
    %v2329 = vsel %vm2313, %v2305, %v2321
    %v2330 = vsel %vm2314, %v2306, %v2322
    %v2331 = vsel %vm2315, %v2307, %v2323
    %v2332 = vsel %vm2316, %v2308, %v2324
    %v2333 = vsel %vm2317, %v2309, %v2325
    %v2334 = vsel %vm2318, %v2310, %v2326
    %v2335 = vsel %vm2319, %v2311, %v2327
    %v2336 = vld [vmem:[%s4] sm:$0x1]
    %v2337 = vld [vmem:[%s4 + $0x1] sm:$0x1]
    %v2338 = vld [vmem:[%s4 + $0x2] sm:$0x1]
    %v2339 = vld [vmem:[%s4 + $0x3] sm:$0x1]
    %v2340 = vld [vmem:[%s4 + $0x4] sm:$0x1]
    %v2341 = vld [vmem:[%s4 + $0x5] sm:$0x1]
    %v2342 = vld [vmem:[%s4 + $0x6] sm:$0x1]
    %v2343 = vld [vmem:[%s4 + $0x7] sm:$0x1]
    %v2352 = vcombine.low %v2336, %v2337
    %v2353 = vcombine.low %v2338, %v2339
    %v2354 = vcombine.low %v2340, %v2341
    %v2355 = vcombine.low %v2342, %v2343
    %v2357 = vunpack.c.l.s4 1966171168
    %v2358 = vunpack.c.0.s8 %v2357
    %v2359 = vlaneseq
    %v2360 = vshrl.u32 %v2359, 7
    %v2361 = vsub.s32 %v2358, %v2360
    %v2362 = vrot.slane %v2352, %v2361
    %v2364 = vunpack.c.l.s4 1966171168
    %v2365 = vunpack.c.0.s8 %v2364
    %v2366 = vlaneseq
    %v2367 = vshrl.u32 %v2366, 7
    %v2368 = vsub.s32 %v2365, %v2367
    %v2369 = vrot.slane %v2353, %v2368
    %v2371 = vunpack.c.l.s4 1966171168
    %v2372 = vunpack.c.0.s8 %v2371
    %v2373 = vlaneseq
    %v2374 = vshrl.u32 %v2373, 7
    %v2375 = vsub.s32 %v2372, %v2374
    %v2376 = vrot.slane %v2354, %v2375
    %v2378 = vunpack.c.l.s4 1966171168
    %v2379 = vunpack.c.0.s8 %v2378
    %v2380 = vlaneseq
    %v2381 = vshrl.u32 %v2380, 7
    %v2382 = vsub.s32 %v2379, %v2381
    %v2383 = vrot.slane %v2355, %v2382
    %v2384 = vcombine.low %v2362, %v2369
    %v2385 = vcombine.low %v2376, %v2383
    %v2387 = vunpack.c.l.s4 1966171168
    %v2388 = vunpack.c.0.s8 %v2387
    %v2389 = vlaneseq
    %v2390 = vshrl.u32 %v2389, 7
    %v2391 = vsub.s32 %v2388, %v2390
    %v2392 = vrot.slane %v2384, %v2391
    %v2394 = vunpack.c.l.s4 1966171168
    %v2395 = vunpack.c.0.s8 %v2394
    %v2396 = vlaneseq
    %v2397 = vshrl.u32 %v2396, 7
    %v2398 = vsub.s32 %v2395, %v2397
    %v2399 = vrot.slane %v2385, %v2398
    %v2400 = vcombine.low %v2392, %v2399
    %vm2402 = vcmask 64512
    %v2403 = vsel %vm2402, %v2400, -inf
    %2404 = vmax.xlane.f32.xlu0 %v2403
    %v2405 = vpop.xlane.xlu0 %2404
    %v2407 = vlaneseq
    %v2408 = vshrl.u32 %v2407, 7
    %v2409 = vsub.s32 0, %v2408
    %v2410 = vrot.slane %v2405, %v2409
    %v2411 = vlaneseq
    %v2412 = vshrl.u32 %v2411, 7
    %v2413 = vsub.s32 1, %v2412
    %v2414 = vrot.slane %v2405, %v2413
    %v2415 = vlaneseq
    %v2416 = vshrl.u32 %v2415, 7
    %v2417 = vsub.s32 2, %v2416
    %v2418 = vrot.slane %v2405, %v2417
    %v2419 = vlaneseq
    %v2420 = vshrl.u32 %v2419, 7
    %v2421 = vsub.s32 3, %v2420
    %v2422 = vrot.slane %v2405, %v2421
    %v2423 = vlaneseq
    %v2424 = vshrl.u32 %v2423, 7
    %v2425 = vsub.s32 4, %v2424
    %v2426 = vrot.slane %v2405, %v2425
    %v2427 = vlaneseq
    %v2428 = vshrl.u32 %v2427, 7
    %v2429 = vsub.s32 5, %v2428
    %v2430 = vrot.slane %v2405, %v2429
    %v2431 = vlaneseq
    %v2432 = vshrl.u32 %v2431, 7
    %v2433 = vsub.s32 6, %v2432
    %v2434 = vrot.slane %v2405, %v2433
    %v2435 = vlaneseq
    %v2436 = vshrl.u32 %v2435, 7
    %v2437 = vsub.s32 7, %v2436
    %v2438 = vrot.slane %v2405, %v2437
    %v2447 = vsub.f32 %v2336, %v2410
    %v2448 = vsub.f32 %v2337, %v2414
    %v2449 = vsub.f32 %v2338, %v2418
    %v2450 = vsub.f32 %v2339, %v2422
    %v2451 = vsub.f32 %v2340, %v2426
    %v2452 = vsub.f32 %v2341, %v2430
    %v2453 = vsub.f32 %v2342, %v2434
    %v2454 = vsub.f32 %v2343, %v2438
    %v2455 = vmul.f32 %v2447, 1.442695
    %v2456 = vpow.pop %v2455
    %v2457 = vmul.f32 %v2448, 1.442695
    %v2458 = vpow.pop %v2457
    %v2459 = vmul.f32 %v2449, 1.442695
    %v2460 = vpow.pop %v2459
    %v2461 = vmul.f32 %v2450, 1.442695
    %v2462 = vpow.pop %v2461
    %v2463 = vmul.f32 %v2451, 1.442695
    %v2464 = vpow.pop %v2463
    %v2465 = vmul.f32 %v2452, 1.442695
    %v2466 = vpow.pop %v2465
    %v2467 = vmul.f32 %v2453, 1.442695
    %v2468 = vpow.pop %v2467
    %v2469 = vmul.f32 %v2454, 1.442695
    %v2470 = vpow.pop %v2469
    %v2479 = vcombine.low %v2456, %v2458
    %v2480 = vcombine.low %v2460, %v2462
    %v2481 = vcombine.low %v2464, %v2466
    %v2482 = vcombine.low %v2468, %v2470
    %v2484 = vunpack.c.l.s4 1966171168
    %v2485 = vunpack.c.0.s8 %v2484
    %v2486 = vlaneseq
    %v2487 = vshrl.u32 %v2486, 7
    %v2488 = vsub.s32 %v2485, %v2487
    %v2489 = vrot.slane %v2479, %v2488
    %v2491 = vunpack.c.l.s4 1966171168
    %v2492 = vunpack.c.0.s8 %v2491
    %v2493 = vlaneseq
    %v2494 = vshrl.u32 %v2493, 7
    %v2495 = vsub.s32 %v2492, %v2494
    %v2496 = vrot.slane %v2480, %v2495
    %v2498 = vunpack.c.l.s4 1966171168
    %v2499 = vunpack.c.0.s8 %v2498
    %v2500 = vlaneseq
    %v2501 = vshrl.u32 %v2500, 7
    %v2502 = vsub.s32 %v2499, %v2501
    %v2503 = vrot.slane %v2481, %v2502
    %v2505 = vunpack.c.l.s4 1966171168
    %v2506 = vunpack.c.0.s8 %v2505
    %v2507 = vlaneseq
    %v2508 = vshrl.u32 %v2507, 7
    %v2509 = vsub.s32 %v2506, %v2508
    %v2510 = vrot.slane %v2482, %v2509
    %v2511 = vcombine.low %v2489, %v2496
    %v2512 = vcombine.low %v2503, %v2510
    %v2514 = vunpack.c.l.s4 1966171168
    %v2515 = vunpack.c.0.s8 %v2514
    %v2516 = vlaneseq
    %v2517 = vshrl.u32 %v2516, 7
    %v2518 = vsub.s32 %v2515, %v2517
    %v2519 = vrot.slane %v2511, %v2518
    %v2521 = vunpack.c.l.s4 1966171168
    %v2522 = vunpack.c.0.s8 %v2521
    %v2523 = vlaneseq
    %v2524 = vshrl.u32 %v2523, 7
    %v2525 = vsub.s32 %v2522, %v2524
    %v2526 = vrot.slane %v2512, %v2525
    %v2527 = vcombine.low %v2519, %v2526
    %v2529 = vsel %vm2402, %v2527, 0.0
    %2530 = vadd.xlane.f32.xlu0 %v2529
    %v2531 = vpop.xlane.xlu0 %2530
    %v2533 = vlaneseq
    %v2534 = vshrl.u32 %v2533, 7
    %v2535 = vsub.s32 0, %v2534
    %v2536 = vrot.slane %v2531, %v2535
    %v2537 = vlaneseq
    %v2538 = vshrl.u32 %v2537, 7
    %v2539 = vsub.s32 1, %v2538
    %v2540 = vrot.slane %v2531, %v2539
    %v2541 = vlaneseq
    %v2542 = vshrl.u32 %v2541, 7
    %v2543 = vsub.s32 2, %v2542
    %v2544 = vrot.slane %v2531, %v2543
    %v2545 = vlaneseq
    %v2546 = vshrl.u32 %v2545, 7
    %v2547 = vsub.s32 3, %v2546
    %v2548 = vrot.slane %v2531, %v2547
    %v2549 = vlaneseq
    %v2550 = vshrl.u32 %v2549, 7
    %v2551 = vsub.s32 4, %v2550
    %v2552 = vrot.slane %v2531, %v2551
    %v2553 = vlaneseq
    %v2554 = vshrl.u32 %v2553, 7
    %v2555 = vsub.s32 5, %v2554
    %v2556 = vrot.slane %v2531, %v2555
    %v2557 = vlaneseq
    %v2558 = vshrl.u32 %v2557, 7
    %v2559 = vsub.s32 6, %v2558
    %v2560 = vrot.slane %v2531, %v2559
    %v2561 = vlaneseq
    %v2562 = vshrl.u32 %v2561, 7
    %v2563 = vsub.s32 7, %v2562
    %v2564 = vrot.slane %v2531, %v2563
    %v2573 = vrcp.pop %v2536
    %v2574 = vmul.f32 %v2456, %v2573
    %v2575 = vrcp.pop %v2540
    %v2576 = vmul.f32 %v2458, %v2575
    %v2577 = vrcp.pop %v2544
    %v2578 = vmul.f32 %v2460, %v2577
    %v2579 = vrcp.pop %v2548
    %v2580 = vmul.f32 %v2462, %v2579
    %v2581 = vrcp.pop %v2552
    %v2582 = vmul.f32 %v2464, %v2581
    %v2583 = vrcp.pop %v2556
    %v2584 = vmul.f32 %v2466, %v2583
    %v2585 = vrcp.pop %v2560
    %v2586 = vmul.f32 %v2468, %v2585
    %v2587 = vrcp.pop %v2564
    %v2588 = vmul.f32 %v2470, %v2587
    %v2597 = vlaneseq
    %v2598 = vshrl.u32 %v2597, 7
    %v2599 = vsub.s32 0, %v2598
    %v2600 = vrot.slane %v2328, %v2599
    %v2601 = vlaneseq
    %v2602 = vshrl.u32 %v2601, 7
    %v2603 = vsub.s32 1, %v2602
    %v2604 = vrot.slane %v2328, %v2603
    %v2605 = vlaneseq
    %v2606 = vshrl.u32 %v2605, 7
    %v2607 = vsub.s32 2, %v2606
    %v2608 = vrot.slane %v2328, %v2607
    %v2609 = vlaneseq
    %v2610 = vshrl.u32 %v2609, 7
    %v2611 = vsub.s32 3, %v2610
    %v2612 = vrot.slane %v2328, %v2611
    %v2613 = vlaneseq
    %v2614 = vshrl.u32 %v2613, 7
    %v2615 = vsub.s32 4, %v2614
    %v2616 = vrot.slane %v2328, %v2615
    %v2617 = vlaneseq
    %v2618 = vshrl.u32 %v2617, 7
    %v2619 = vsub.s32 5, %v2618
    %v2620 = vrot.slane %v2328, %v2619
    %v2621 = vlaneseq
    %v2622 = vshrl.u32 %v2621, 7
    %v2623 = vsub.s32 6, %v2622
    %v2624 = vrot.slane %v2328, %v2623
    %v2625 = vlaneseq
    %v2626 = vshrl.u32 %v2625, 7
    %v2627 = vsub.s32 7, %v2626
    %v2628 = vrot.slane %v2328, %v2627
    %v2629 = vlaneseq
    %v2630 = vshrl.u32 %v2629, 7
    %v2631 = vsub.s32 0, %v2630
    %v2632 = vrot.slane %v2329, %v2631
    %v2633 = vlaneseq
    %v2634 = vshrl.u32 %v2633, 7
    %v2635 = vsub.s32 1, %v2634
    %v2636 = vrot.slane %v2329, %v2635
    %v2637 = vlaneseq
    %v2638 = vshrl.u32 %v2637, 7
    %v2639 = vsub.s32 2, %v2638
    %v2640 = vrot.slane %v2329, %v2639
    %v2641 = vlaneseq
    %v2642 = vshrl.u32 %v2641, 7
    %v2643 = vsub.s32 3, %v2642
    %v2644 = vrot.slane %v2329, %v2643
    %v2645 = vlaneseq
    %v2646 = vshrl.u32 %v2645, 7
    %v2647 = vsub.s32 4, %v2646
    %v2648 = vrot.slane %v2329, %v2647
    %v2649 = vlaneseq
    %v2650 = vshrl.u32 %v2649, 7
    %v2651 = vsub.s32 5, %v2650
    %v2652 = vrot.slane %v2329, %v2651
    %v2653 = vlaneseq
    %v2654 = vshrl.u32 %v2653, 7
    %v2655 = vsub.s32 6, %v2654
    %v2656 = vrot.slane %v2329, %v2655
    %v2657 = vlaneseq
    %v2658 = vshrl.u32 %v2657, 7
    %v2659 = vsub.s32 7, %v2658
    %v2660 = vrot.slane %v2329, %v2659
    %v2661 = vlaneseq
    %v2662 = vshrl.u32 %v2661, 7
    %v2663 = vsub.s32 0, %v2662
    %v2664 = vrot.slane %v2330, %v2663
    %v2665 = vlaneseq
    %v2666 = vshrl.u32 %v2665, 7
    %v2667 = vsub.s32 1, %v2666
    %v2668 = vrot.slane %v2330, %v2667
    %v2669 = vlaneseq
    %v2670 = vshrl.u32 %v2669, 7
    %v2671 = vsub.s32 2, %v2670
    %v2672 = vrot.slane %v2330, %v2671
    %v2673 = vlaneseq
    %v2674 = vshrl.u32 %v2673, 7
    %v2675 = vsub.s32 3, %v2674
    %v2676 = vrot.slane %v2330, %v2675
    %v2677 = vlaneseq
    %v2678 = vshrl.u32 %v2677, 7
    %v2679 = vsub.s32 4, %v2678
    %v2680 = vrot.slane %v2330, %v2679
    %v2681 = vlaneseq
    %v2682 = vshrl.u32 %v2681, 7
    %v2683 = vsub.s32 5, %v2682
    %v2684 = vrot.slane %v2330, %v2683
    %v2685 = vlaneseq
    %v2686 = vshrl.u32 %v2685, 7
    %v2687 = vsub.s32 6, %v2686
    %v2688 = vrot.slane %v2330, %v2687
    %v2689 = vlaneseq
    %v2690 = vshrl.u32 %v2689, 7
    %v2691 = vsub.s32 7, %v2690
    %v2692 = vrot.slane %v2330, %v2691
    %v2693 = vlaneseq
    %v2694 = vshrl.u32 %v2693, 7
    %v2695 = vsub.s32 0, %v2694
    %v2696 = vrot.slane %v2331, %v2695
    %v2697 = vlaneseq
    %v2698 = vshrl.u32 %v2697, 7
    %v2699 = vsub.s32 1, %v2698
    %v2700 = vrot.slane %v2331, %v2699
    %v2701 = vlaneseq
    %v2702 = vshrl.u32 %v2701, 7
    %v2703 = vsub.s32 2, %v2702
    %v2704 = vrot.slane %v2331, %v2703
    %v2705 = vlaneseq
    %v2706 = vshrl.u32 %v2705, 7
    %v2707 = vsub.s32 3, %v2706
    %v2708 = vrot.slane %v2331, %v2707
    %v2709 = vlaneseq
    %v2710 = vshrl.u32 %v2709, 7
    %v2711 = vsub.s32 4, %v2710
    %v2712 = vrot.slane %v2331, %v2711
    %v2713 = vlaneseq
    %v2714 = vshrl.u32 %v2713, 7
    %v2715 = vsub.s32 5, %v2714
    %v2716 = vrot.slane %v2331, %v2715
    %v2717 = vlaneseq
    %v2718 = vshrl.u32 %v2717, 7
    %v2719 = vsub.s32 6, %v2718
    %v2720 = vrot.slane %v2331, %v2719
    %v2721 = vlaneseq
    %v2722 = vshrl.u32 %v2721, 7
    %v2723 = vsub.s32 7, %v2722
    %v2724 = vrot.slane %v2331, %v2723
    %v2725 = vlaneseq
    %v2726 = vshrl.u32 %v2725, 7
    %v2727 = vsub.s32 0, %v2726
    %v2728 = vrot.slane %v2332, %v2727
    %v2729 = vlaneseq
    %v2730 = vshrl.u32 %v2729, 7
    %v2731 = vsub.s32 1, %v2730
    %v2732 = vrot.slane %v2332, %v2731
    %v2733 = vlaneseq
    %v2734 = vshrl.u32 %v2733, 7
    %v2735 = vsub.s32 2, %v2734
    %v2736 = vrot.slane %v2332, %v2735
    %v2737 = vlaneseq
    %v2738 = vshrl.u32 %v2737, 7
    %v2739 = vsub.s32 3, %v2738
    %v2740 = vrot.slane %v2332, %v2739
    %v2741 = vlaneseq
    %v2742 = vshrl.u32 %v2741, 7
    %v2743 = vsub.s32 4, %v2742
    %v2744 = vrot.slane %v2332, %v2743
    %v2745 = vlaneseq
    %v2746 = vshrl.u32 %v2745, 7
    %v2747 = vsub.s32 5, %v2746
    %v2748 = vrot.slane %v2332, %v2747
    %v2749 = vlaneseq
    %v2750 = vshrl.u32 %v2749, 7
    %v2751 = vsub.s32 6, %v2750
    %v2752 = vrot.slane %v2332, %v2751
    %v2753 = vlaneseq
    %v2754 = vshrl.u32 %v2753, 7
    %v2755 = vsub.s32 7, %v2754
    %v2756 = vrot.slane %v2332, %v2755
    %v2757 = vlaneseq
    %v2758 = vshrl.u32 %v2757, 7
    %v2759 = vsub.s32 0, %v2758
    %v2760 = vrot.slane %v2333, %v2759
    %v2761 = vlaneseq
    %v2762 = vshrl.u32 %v2761, 7
    %v2763 = vsub.s32 1, %v2762
    %v2764 = vrot.slane %v2333, %v2763
    %v2765 = vlaneseq
    %v2766 = vshrl.u32 %v2765, 7
    %v2767 = vsub.s32 2, %v2766
    %v2768 = vrot.slane %v2333, %v2767
    %v2769 = vlaneseq
    %v2770 = vshrl.u32 %v2769, 7
    %v2771 = vsub.s32 3, %v2770
    %v2772 = vrot.slane %v2333, %v2771
    %v2773 = vlaneseq
    %v2774 = vshrl.u32 %v2773, 7
    %v2775 = vsub.s32 4, %v2774
    %v2776 = vrot.slane %v2333, %v2775
    %v2777 = vlaneseq
    %v2778 = vshrl.u32 %v2777, 7
    %v2779 = vsub.s32 5, %v2778
    %v2780 = vrot.slane %v2333, %v2779
    %v2781 = vlaneseq
    %v2782 = vshrl.u32 %v2781, 7
    %v2783 = vsub.s32 6, %v2782
    %v2784 = vrot.slane %v2333, %v2783
    %v2785 = vlaneseq
    %v2786 = vshrl.u32 %v2785, 7
    %v2787 = vsub.s32 7, %v2786
    %v2788 = vrot.slane %v2333, %v2787
    %v2789 = vlaneseq
    %v2790 = vshrl.u32 %v2789, 7
    %v2791 = vsub.s32 0, %v2790
    %v2792 = vrot.slane %v2334, %v2791
    %v2793 = vlaneseq
    %v2794 = vshrl.u32 %v2793, 7
    %v2795 = vsub.s32 1, %v2794
    %v2796 = vrot.slane %v2334, %v2795
    %v2797 = vlaneseq
    %v2798 = vshrl.u32 %v2797, 7
    %v2799 = vsub.s32 2, %v2798
    %v2800 = vrot.slane %v2334, %v2799
    %v2801 = vlaneseq
    %v2802 = vshrl.u32 %v2801, 7
    %v2803 = vsub.s32 3, %v2802
    %v2804 = vrot.slane %v2334, %v2803
    %v2805 = vlaneseq
    %v2806 = vshrl.u32 %v2805, 7
    %v2807 = vsub.s32 4, %v2806
    %v2808 = vrot.slane %v2334, %v2807
    %v2809 = vlaneseq
    %v2810 = vshrl.u32 %v2809, 7
    %v2811 = vsub.s32 5, %v2810
    %v2812 = vrot.slane %v2334, %v2811
    %v2813 = vlaneseq
    %v2814 = vshrl.u32 %v2813, 7
    %v2815 = vsub.s32 6, %v2814
    %v2816 = vrot.slane %v2334, %v2815
    %v2817 = vlaneseq
    %v2818 = vshrl.u32 %v2817, 7
    %v2819 = vsub.s32 7, %v2818
    %v2820 = vrot.slane %v2334, %v2819
    %v2821 = vlaneseq
    %v2822 = vshrl.u32 %v2821, 7
    %v2823 = vsub.s32 0, %v2822
    %v2824 = vrot.slane %v2335, %v2823
    %v2825 = vlaneseq
    %v2826 = vshrl.u32 %v2825, 7
    %v2827 = vsub.s32 1, %v2826
    %v2828 = vrot.slane %v2335, %v2827
    %v2829 = vlaneseq
    %v2830 = vshrl.u32 %v2829, 7
    %v2831 = vsub.s32 2, %v2830
    %v2832 = vrot.slane %v2335, %v2831
    %v2833 = vlaneseq
    %v2834 = vshrl.u32 %v2833, 7
    %v2835 = vsub.s32 3, %v2834
    %v2836 = vrot.slane %v2335, %v2835
    %v2837 = vlaneseq
    %v2838 = vshrl.u32 %v2837, 7
    %v2839 = vsub.s32 4, %v2838
    %v2840 = vrot.slane %v2335, %v2839
    %v2841 = vlaneseq
    %v2842 = vshrl.u32 %v2841, 7
    %v2843 = vsub.s32 5, %v2842
    %v2844 = vrot.slane %v2335, %v2843
    %v2845 = vlaneseq
    %v2846 = vshrl.u32 %v2845, 7
    %v2847 = vsub.s32 6, %v2846
    %v2848 = vrot.slane %v2335, %v2847
    %v2849 = vlaneseq
    %v2850 = vshrl.u32 %v2849, 7
    %v2851 = vsub.s32 7, %v2850
    %v2852 = vrot.slane %v2335, %v2851
    %v2853 = vcombine.low %v2600, %v2604
    %v2854 = vcombine.low %v2608, %v2612
    %v2855 = vcombine.low %v2616, %v2620
    %v2856 = vcombine.low %v2624, %v2628
    %v2858 = vunpack.c.l.s4 1966171168
    %v2859 = vunpack.c.0.s8 %v2858
    %v2860 = vlaneseq
    %v2861 = vshrl.u32 %v2860, 7
    %v2862 = vsub.s32 %v2859, %v2861
    %v2863 = vrot.slane %v2853, %v2862
    %v2865 = vunpack.c.l.s4 1966171168
    %v2866 = vunpack.c.0.s8 %v2865
    %v2867 = vlaneseq
    %v2868 = vshrl.u32 %v2867, 7
    %v2869 = vsub.s32 %v2866, %v2868
    %v2870 = vrot.slane %v2854, %v2869
    %v2872 = vunpack.c.l.s4 1966171168
    %v2873 = vunpack.c.0.s8 %v2872
    %v2874 = vlaneseq
    %v2875 = vshrl.u32 %v2874, 7
    %v2876 = vsub.s32 %v2873, %v2875
    %v2877 = vrot.slane %v2855, %v2876
    %v2879 = vunpack.c.l.s4 1966171168
    %v2880 = vunpack.c.0.s8 %v2879
    %v2881 = vlaneseq
    %v2882 = vshrl.u32 %v2881, 7
    %v2883 = vsub.s32 %v2880, %v2882
    %v2884 = vrot.slane %v2856, %v2883
    %v2885 = vcombine.low %v2863, %v2870
    %v2886 = vcombine.low %v2877, %v2884
    %v2888 = vunpack.c.l.s4 1966171168
    %v2889 = vunpack.c.0.s8 %v2888
    %v2890 = vlaneseq
    %v2891 = vshrl.u32 %v2890, 7
    %v2892 = vsub.s32 %v2889, %v2891
    %v2893 = vrot.slane %v2885, %v2892
    %v2895 = vunpack.c.l.s4 1966171168
    %v2896 = vunpack.c.0.s8 %v2895
    %v2897 = vlaneseq
    %v2898 = vshrl.u32 %v2897, 7
    %v2899 = vsub.s32 %v2896, %v2898
    %v2900 = vrot.slane %v2886, %v2899
    %v2901 = vcombine.low %v2893, %v2900
    %v2902 = vcombine.low %v2632, %v2636
    %v2903 = vcombine.low %v2640, %v2644
    %v2904 = vcombine.low %v2648, %v2652
    %v2905 = vcombine.low %v2656, %v2660
    %v2907 = vunpack.c.l.s4 1966171168
    %v2908 = vunpack.c.0.s8 %v2907
    %v2909 = vlaneseq
    %v2910 = vshrl.u32 %v2909, 7
    %v2911 = vsub.s32 %v2908, %v2910
    %v2912 = vrot.slane %v2902, %v2911
    %v2914 = vunpack.c.l.s4 1966171168
    %v2915 = vunpack.c.0.s8 %v2914
    %v2916 = vlaneseq
    %v2917 = vshrl.u32 %v2916, 7
    %v2918 = vsub.s32 %v2915, %v2917
    %v2919 = vrot.slane %v2903, %v2918
    %v2921 = vunpack.c.l.s4 1966171168
    %v2922 = vunpack.c.0.s8 %v2921
    %v2923 = vlaneseq
    %v2924 = vshrl.u32 %v2923, 7
    %v2925 = vsub.s32 %v2922, %v2924
    %v2926 = vrot.slane %v2904, %v2925
    %v2928 = vunpack.c.l.s4 1966171168
    %v2929 = vunpack.c.0.s8 %v2928
    %v2930 = vlaneseq
    %v2931 = vshrl.u32 %v2930, 7
    %v2932 = vsub.s32 %v2929, %v2931
    %v2933 = vrot.slane %v2905, %v2932
    %v2934 = vcombine.low %v2912, %v2919
    %v2935 = vcombine.low %v2926, %v2933
    %v2937 = vunpack.c.l.s4 1966171168
    %v2938 = vunpack.c.0.s8 %v2937
    %v2939 = vlaneseq
    %v2940 = vshrl.u32 %v2939, 7
    %v2941 = vsub.s32 %v2938, %v2940
    %v2942 = vrot.slane %v2934, %v2941
    %v2944 = vunpack.c.l.s4 1966171168
    %v2945 = vunpack.c.0.s8 %v2944
    %v2946 = vlaneseq
    %v2947 = vshrl.u32 %v2946, 7
    %v2948 = vsub.s32 %v2945, %v2947
    %v2949 = vrot.slane %v2935, %v2948
    %v2950 = vcombine.low %v2942, %v2949
    %v2951 = vcombine.low %v2664, %v2668
    %v2952 = vcombine.low %v2672, %v2676
    %v2953 = vcombine.low %v2680, %v2684
    %v2954 = vcombine.low %v2688, %v2692
    %v2956 = vunpack.c.l.s4 1966171168
    %v2957 = vunpack.c.0.s8 %v2956
    %v2958 = vlaneseq
    %v2959 = vshrl.u32 %v2958, 7
    %v2960 = vsub.s32 %v2957, %v2959
    %v2961 = vrot.slane %v2951, %v2960
    %v2963 = vunpack.c.l.s4 1966171168
    %v2964 = vunpack.c.0.s8 %v2963
    %v2965 = vlaneseq
    %v2966 = vshrl.u32 %v2965, 7
    %v2967 = vsub.s32 %v2964, %v2966
    %v2968 = vrot.slane %v2952, %v2967
    %v2970 = vunpack.c.l.s4 1966171168
    %v2971 = vunpack.c.0.s8 %v2970
    %v2972 = vlaneseq
    %v2973 = vshrl.u32 %v2972, 7
    %v2974 = vsub.s32 %v2971, %v2973
    %v2975 = vrot.slane %v2953, %v2974
    %v2977 = vunpack.c.l.s4 1966171168
    %v2978 = vunpack.c.0.s8 %v2977
    %v2979 = vlaneseq
    %v2980 = vshrl.u32 %v2979, 7
    %v2981 = vsub.s32 %v2978, %v2980
    %v2982 = vrot.slane %v2954, %v2981
    %v2983 = vcombine.low %v2961, %v2968
    %v2984 = vcombine.low %v2975, %v2982
    %v2986 = vunpack.c.l.s4 1966171168
    %v2987 = vunpack.c.0.s8 %v2986
    %v2988 = vlaneseq
    %v2989 = vshrl.u32 %v2988, 7
    %v2990 = vsub.s32 %v2987, %v2989
    %v2991 = vrot.slane %v2983, %v2990
    %v2993 = vunpack.c.l.s4 1966171168
    %v2994 = vunpack.c.0.s8 %v2993
    %v2995 = vlaneseq
    %v2996 = vshrl.u32 %v2995, 7
    %v2997 = vsub.s32 %v2994, %v2996
    %v2998 = vrot.slane %v2984, %v2997
    %v2999 = vcombine.low %v2991, %v2998
    %v3000 = vcombine.low %v2696, %v2700
    %v3001 = vcombine.low %v2704, %v2708
    %v3002 = vcombine.low %v2712, %v2716
    %v3003 = vcombine.low %v2720, %v2724
    %v3005 = vunpack.c.l.s4 1966171168
    %v3006 = vunpack.c.0.s8 %v3005
    %v3007 = vlaneseq
    %v3008 = vshrl.u32 %v3007, 7
    %v3009 = vsub.s32 %v3006, %v3008
    %v3010 = vrot.slane %v3000, %v3009
    %v3012 = vunpack.c.l.s4 1966171168
    %v3013 = vunpack.c.0.s8 %v3012
    %v3014 = vlaneseq
    %v3015 = vshrl.u32 %v3014, 7
    %v3016 = vsub.s32 %v3013, %v3015
    %v3017 = vrot.slane %v3001, %v3016
    %v3019 = vunpack.c.l.s4 1966171168
    %v3020 = vunpack.c.0.s8 %v3019
    %v3021 = vlaneseq
    %v3022 = vshrl.u32 %v3021, 7
    %v3023 = vsub.s32 %v3020, %v3022
    %v3024 = vrot.slane %v3002, %v3023
    %v3026 = vunpack.c.l.s4 1966171168
    %v3027 = vunpack.c.0.s8 %v3026
    %v3028 = vlaneseq
    %v3029 = vshrl.u32 %v3028, 7
    %v3030 = vsub.s32 %v3027, %v3029
    %v3031 = vrot.slane %v3003, %v3030
    %v3032 = vcombine.low %v3010, %v3017
    %v3033 = vcombine.low %v3024, %v3031
    %v3035 = vunpack.c.l.s4 1966171168
    %v3036 = vunpack.c.0.s8 %v3035
    %v3037 = vlaneseq
    %v3038 = vshrl.u32 %v3037, 7
    %v3039 = vsub.s32 %v3036, %v3038
    %v3040 = vrot.slane %v3032, %v3039
    %v3042 = vunpack.c.l.s4 1966171168
    %v3043 = vunpack.c.0.s8 %v3042
    %v3044 = vlaneseq
    %v3045 = vshrl.u32 %v3044, 7
    %v3046 = vsub.s32 %v3043, %v3045
    %v3047 = vrot.slane %v3033, %v3046
    %v3048 = vcombine.low %v3040, %v3047
    %v3049 = vcombine.low %v2728, %v2732
    %v3050 = vcombine.low %v2736, %v2740
    %v3051 = vcombine.low %v2744, %v2748
    %v3052 = vcombine.low %v2752, %v2756
    %v3054 = vunpack.c.l.s4 1966171168
    %v3055 = vunpack.c.0.s8 %v3054
    %v3056 = vlaneseq
    %v3057 = vshrl.u32 %v3056, 7
    %v3058 = vsub.s32 %v3055, %v3057
    %v3059 = vrot.slane %v3049, %v3058
    %v3061 = vunpack.c.l.s4 1966171168
    %v3062 = vunpack.c.0.s8 %v3061
    %v3063 = vlaneseq
    %v3064 = vshrl.u32 %v3063, 7
    %v3065 = vsub.s32 %v3062, %v3064
    %v3066 = vrot.slane %v3050, %v3065
    %v3068 = vunpack.c.l.s4 1966171168
    %v3069 = vunpack.c.0.s8 %v3068
    %v3070 = vlaneseq
    %v3071 = vshrl.u32 %v3070, 7
    %v3072 = vsub.s32 %v3069, %v3071
    %v3073 = vrot.slane %v3051, %v3072
    %v3075 = vunpack.c.l.s4 1966171168
    %v3076 = vunpack.c.0.s8 %v3075
    %v3077 = vlaneseq
    %v3078 = vshrl.u32 %v3077, 7
    %v3079 = vsub.s32 %v3076, %v3078
    %v3080 = vrot.slane %v3052, %v3079
    %v3081 = vcombine.low %v3059, %v3066
    %v3082 = vcombine.low %v3073, %v3080
    %v3084 = vunpack.c.l.s4 1966171168
    %v3085 = vunpack.c.0.s8 %v3084
    %v3086 = vlaneseq
    %v3087 = vshrl.u32 %v3086, 7
    %v3088 = vsub.s32 %v3085, %v3087
    %v3089 = vrot.slane %v3081, %v3088
    %v3091 = vunpack.c.l.s4 1966171168
    %v3092 = vunpack.c.0.s8 %v3091
    %v3093 = vlaneseq
    %v3094 = vshrl.u32 %v3093, 7
    %v3095 = vsub.s32 %v3092, %v3094
    %v3096 = vrot.slane %v3082, %v3095
    %v3097 = vcombine.low %v3089, %v3096
    %v3098 = vcombine.low %v2760, %v2764
    %v3099 = vcombine.low %v2768, %v2772
    %v3100 = vcombine.low %v2776, %v2780
    %v3101 = vcombine.low %v2784, %v2788
    %v3103 = vunpack.c.l.s4 1966171168
    %v3104 = vunpack.c.0.s8 %v3103
    %v3105 = vlaneseq
    %v3106 = vshrl.u32 %v3105, 7
    %v3107 = vsub.s32 %v3104, %v3106
    %v3108 = vrot.slane %v3098, %v3107
    %v3110 = vunpack.c.l.s4 1966171168
    %v3111 = vunpack.c.0.s8 %v3110
    %v3112 = vlaneseq
    %v3113 = vshrl.u32 %v3112, 7
    %v3114 = vsub.s32 %v3111, %v3113
    %v3115 = vrot.slane %v3099, %v3114
    %v3117 = vunpack.c.l.s4 1966171168
    %v3118 = vunpack.c.0.s8 %v3117
    %v3119 = vlaneseq
    %v3120 = vshrl.u32 %v3119, 7
    %v3121 = vsub.s32 %v3118, %v3120
    %v3122 = vrot.slane %v3100, %v3121
    %v3124 = vunpack.c.l.s4 1966171168
    %v3125 = vunpack.c.0.s8 %v3124
    %v3126 = vlaneseq
    %v3127 = vshrl.u32 %v3126, 7
    %v3128 = vsub.s32 %v3125, %v3127
    %v3129 = vrot.slane %v3101, %v3128
    %v3130 = vcombine.low %v3108, %v3115
    %v3131 = vcombine.low %v3122, %v3129
    %v3133 = vunpack.c.l.s4 1966171168
    %v3134 = vunpack.c.0.s8 %v3133
    %v3135 = vlaneseq
    %v3136 = vshrl.u32 %v3135, 7
    %v3137 = vsub.s32 %v3134, %v3136
    %v3138 = vrot.slane %v3130, %v3137
    %v3140 = vunpack.c.l.s4 1966171168
    %v3141 = vunpack.c.0.s8 %v3140
    %v3142 = vlaneseq
    %v3143 = vshrl.u32 %v3142, 7
    %v3144 = vsub.s32 %v3141, %v3143
    %v3145 = vrot.slane %v3131, %v3144
    %v3146 = vcombine.low %v3138, %v3145
    %v3147 = vcombine.low %v2792, %v2796
    %v3148 = vcombine.low %v2800, %v2804
    %v3149 = vcombine.low %v2808, %v2812
    %v3150 = vcombine.low %v2816, %v2820
    %v3152 = vunpack.c.l.s4 1966171168
    %v3153 = vunpack.c.0.s8 %v3152
    %v3154 = vlaneseq
    %v3155 = vshrl.u32 %v3154, 7
    %v3156 = vsub.s32 %v3153, %v3155
    %v3157 = vrot.slane %v3147, %v3156
    %v3159 = vunpack.c.l.s4 1966171168
    %v3160 = vunpack.c.0.s8 %v3159
    %v3161 = vlaneseq
    %v3162 = vshrl.u32 %v3161, 7
    %v3163 = vsub.s32 %v3160, %v3162
    %v3164 = vrot.slane %v3148, %v3163
    %v3166 = vunpack.c.l.s4 1966171168
    %v3167 = vunpack.c.0.s8 %v3166
    %v3168 = vlaneseq
    %v3169 = vshrl.u32 %v3168, 7
    %v3170 = vsub.s32 %v3167, %v3169
    %v3171 = vrot.slane %v3149, %v3170
    %v3173 = vunpack.c.l.s4 1966171168
    %v3174 = vunpack.c.0.s8 %v3173
    %v3175 = vlaneseq
    %v3176 = vshrl.u32 %v3175, 7
    %v3177 = vsub.s32 %v3174, %v3176
    %v3178 = vrot.slane %v3150, %v3177
    %v3179 = vcombine.low %v3157, %v3164
    %v3180 = vcombine.low %v3171, %v3178
    %v3182 = vunpack.c.l.s4 1966171168
    %v3183 = vunpack.c.0.s8 %v3182
    %v3184 = vlaneseq
    %v3185 = vshrl.u32 %v3184, 7
    %v3186 = vsub.s32 %v3183, %v3185
    %v3187 = vrot.slane %v3179, %v3186
    %v3189 = vunpack.c.l.s4 1966171168
    %v3190 = vunpack.c.0.s8 %v3189
    %v3191 = vlaneseq
    %v3192 = vshrl.u32 %v3191, 7
    %v3193 = vsub.s32 %v3190, %v3192
    %v3194 = vrot.slane %v3180, %v3193
    %v3195 = vcombine.low %v3187, %v3194
    %v3196 = vcombine.low %v2824, %v2828
    %v3197 = vcombine.low %v2832, %v2836
    %v3198 = vcombine.low %v2840, %v2844
    %v3199 = vcombine.low %v2848, %v2852
    %v3201 = vunpack.c.l.s4 1966171168
    %v3202 = vunpack.c.0.s8 %v3201
    %v3203 = vlaneseq
    %v3204 = vshrl.u32 %v3203, 7
    %v3205 = vsub.s32 %v3202, %v3204
    %v3206 = vrot.slane %v3196, %v3205
    %v3208 = vunpack.c.l.s4 1966171168
    %v3209 = vunpack.c.0.s8 %v3208
    %v3210 = vlaneseq
    %v3211 = vshrl.u32 %v3210, 7
    %v3212 = vsub.s32 %v3209, %v3211
    %v3213 = vrot.slane %v3197, %v3212
    %v3215 = vunpack.c.l.s4 1966171168
    %v3216 = vunpack.c.0.s8 %v3215
    %v3217 = vlaneseq
    %v3218 = vshrl.u32 %v3217, 7
    %v3219 = vsub.s32 %v3216, %v3218
    %v3220 = vrot.slane %v3198, %v3219
    %v3222 = vunpack.c.l.s4 1966171168
    %v3223 = vunpack.c.0.s8 %v3222
    %v3224 = vlaneseq
    %v3225 = vshrl.u32 %v3224, 7
    %v3226 = vsub.s32 %v3223, %v3225
    %v3227 = vrot.slane %v3199, %v3226
    %v3228 = vcombine.low %v3206, %v3213
    %v3229 = vcombine.low %v3220, %v3227
    %v3231 = vunpack.c.l.s4 1966171168
    %v3232 = vunpack.c.0.s8 %v3231
    %v3233 = vlaneseq
    %v3234 = vshrl.u32 %v3233, 7
    %v3235 = vsub.s32 %v3232, %v3234
    %v3236 = vrot.slane %v3228, %v3235
    %v3238 = vunpack.c.l.s4 1966171168
    %v3239 = vunpack.c.0.s8 %v3238
    %v3240 = vlaneseq
    %v3241 = vshrl.u32 %v3240, 7
    %v3242 = vsub.s32 %v3239, %v3241
    %v3243 = vrot.slane %v3229, %v3242
    %v3244 = vcombine.low %v3236, %v3243
    %3245 = vset.pattern.permute.xlu0 0
    %3246 = vperm.xlu0 %3245, %v2901
    %v3247 = vpop.permute.xlu0 %3246
    %3248 = vset.pattern.permute.xlu0 0
    %3249 = vperm.xlu0 %3248, %v2950
    %v3250 = vpop.permute.xlu0 %3249
    %3251 = vset.pattern.permute.xlu0 0
    %3252 = vperm.xlu0 %3251, %v2999
    %v3253 = vpop.permute.xlu0 %3252
    %3254 = vset.pattern.permute.xlu0 0
    %3255 = vperm.xlu0 %3254, %v3048
    %v3256 = vpop.permute.xlu0 %3255
    %3257 = vset.pattern.permute.xlu0 0
    %3258 = vperm.xlu0 %3257, %v3097
    %v3259 = vpop.permute.xlu0 %3258
    %3260 = vset.pattern.permute.xlu0 0
    %3261 = vperm.xlu0 %3260, %v3146
    %v3262 = vpop.permute.xlu0 %3261
    %3263 = vset.pattern.permute.xlu0 0
    %3264 = vperm.xlu0 %3263, %v3195
    %v3265 = vpop.permute.xlu0 %3264
    %3266 = vset.pattern.permute.xlu0 0
    %3267 = vperm.xlu0 %3266, %v3244
    %v3268 = vpop.permute.xlu0 %3267
    %v3269 = vlaneseq
    %v3270 = vshrl.u32 %v3269, 7
    %v3271 = vsub.s32 %v72, %v3270
    %v3272 = vrot.slane %v3247, %v3271
    %v3273 = vlaneseq
    %v3274 = vshrl.u32 %v3273, 7
    %v3275 = vsub.s32 %v72, %v3274
    %v3276 = vrot.slane %v3250, %v3275
    %v3277 = vlaneseq
    %v3278 = vshrl.u32 %v3277, 7
    %v3279 = vsub.s32 %v72, %v3278
    %v3280 = vrot.slane %v3253, %v3279
    %v3281 = vlaneseq
    %v3282 = vshrl.u32 %v3281, 7
    %v3283 = vsub.s32 %v72, %v3282
    %v3284 = vrot.slane %v3256, %v3283
    %v3285 = vlaneseq
    %v3286 = vshrl.u32 %v3285, 7
    %v3287 = vsub.s32 %v72, %v3286
    %v3288 = vrot.slane %v3259, %v3287
    %v3289 = vlaneseq
    %v3290 = vshrl.u32 %v3289, 7
    %v3291 = vsub.s32 %v72, %v3290
    %v3292 = vrot.slane %v3262, %v3291
    %v3293 = vlaneseq
    %v3294 = vshrl.u32 %v3293, 7
    %v3295 = vsub.s32 %v72, %v3294
    %v3296 = vrot.slane %v3265, %v3295
    %v3297 = vlaneseq
    %v3298 = vshrl.u32 %v3297, 7
    %v3299 = vsub.s32 %v72, %v3298
    %v3300 = vrot.slane %v3268, %v3299
    %v3302 = vunpack.c.l.s4 1966171168
    %v3303 = vunpack.c.0.s8 %v3302
    %v3304 = vlaneseq
    %v3305 = vshrl.u32 %v3304, 7
    %v3306 = vsub.s32 %v3303, %v3305
    %v3307 = vrot.slane %v3272, %v3306
    %v3309 = vunpack.c.l.s4 1966171168
    %v3310 = vunpack.c.0.s8 %v3309
    %v3311 = vlaneseq
    %v3312 = vshrl.u32 %v3311, 7
    %v3313 = vsub.s32 %v3310, %v3312
    %v3314 = vrot.slane %v3307, %v3313
    %v3316 = vunpack.c.l.s4 1966171168
    %v3317 = vunpack.c.0.s8 %v3316
    %v3318 = vlaneseq
    %v3319 = vshrl.u32 %v3318, 7
    %v3320 = vsub.s32 %v3317, %v3319
    %v3321 = vrot.slane %v3276, %v3320
    %v3323 = vunpack.c.l.s4 1966171168
    %v3324 = vunpack.c.0.s8 %v3323
    %v3325 = vlaneseq
    %v3326 = vshrl.u32 %v3325, 7
    %v3327 = vsub.s32 %v3324, %v3326
    %v3328 = vrot.slane %v3321, %v3327
    %v3330 = vunpack.c.l.s4 1966171168
    %v3331 = vunpack.c.0.s8 %v3330
    %v3332 = vlaneseq
    %v3333 = vshrl.u32 %v3332, 7
    %v3334 = vsub.s32 %v3331, %v3333
    %v3335 = vrot.slane %v3280, %v3334
    %v3337 = vunpack.c.l.s4 1966171168
    %v3338 = vunpack.c.0.s8 %v3337
    %v3339 = vlaneseq
    %v3340 = vshrl.u32 %v3339, 7
    %v3341 = vsub.s32 %v3338, %v3340
    %v3342 = vrot.slane %v3335, %v3341
    %v3344 = vunpack.c.l.s4 1966171168
    %v3345 = vunpack.c.0.s8 %v3344
    %v3346 = vlaneseq
    %v3347 = vshrl.u32 %v3346, 7
    %v3348 = vsub.s32 %v3345, %v3347
    %v3349 = vrot.slane %v3284, %v3348
    %v3351 = vunpack.c.l.s4 1966171168
    %v3352 = vunpack.c.0.s8 %v3351
    %v3353 = vlaneseq
    %v3354 = vshrl.u32 %v3353, 7
    %v3355 = vsub.s32 %v3352, %v3354
    %v3356 = vrot.slane %v3349, %v3355
    %v3358 = vunpack.c.l.s4 1966171168
    %v3359 = vunpack.c.0.s8 %v3358
    %v3360 = vlaneseq
    %v3361 = vshrl.u32 %v3360, 7
    %v3362 = vsub.s32 %v3359, %v3361
    %v3363 = vrot.slane %v3288, %v3362
    %v3365 = vunpack.c.l.s4 1966171168
    %v3366 = vunpack.c.0.s8 %v3365
    %v3367 = vlaneseq
    %v3368 = vshrl.u32 %v3367, 7
    %v3369 = vsub.s32 %v3366, %v3368
    %v3370 = vrot.slane %v3363, %v3369
    %v3372 = vunpack.c.l.s4 1966171168
    %v3373 = vunpack.c.0.s8 %v3372
    %v3374 = vlaneseq
    %v3375 = vshrl.u32 %v3374, 7
    %v3376 = vsub.s32 %v3373, %v3375
    %v3377 = vrot.slane %v3292, %v3376
    %v3379 = vunpack.c.l.s4 1966171168
    %v3380 = vunpack.c.0.s8 %v3379
    %v3381 = vlaneseq
    %v3382 = vshrl.u32 %v3381, 7
    %v3383 = vsub.s32 %v3380, %v3382
    %v3384 = vrot.slane %v3377, %v3383
    %v3386 = vunpack.c.l.s4 1966171168
    %v3387 = vunpack.c.0.s8 %v3386
    %v3388 = vlaneseq
    %v3389 = vshrl.u32 %v3388, 7
    %v3390 = vsub.s32 %v3387, %v3389
    %v3391 = vrot.slane %v3296, %v3390
    %v3393 = vunpack.c.l.s4 1966171168
    %v3394 = vunpack.c.0.s8 %v3393
    %v3395 = vlaneseq
    %v3396 = vshrl.u32 %v3395, 7
    %v3397 = vsub.s32 %v3394, %v3396
    %v3398 = vrot.slane %v3391, %v3397
    %v3400 = vunpack.c.l.s4 1966171168
    %v3401 = vunpack.c.0.s8 %v3400
    %v3402 = vlaneseq
    %v3403 = vshrl.u32 %v3402, 7
    %v3404 = vsub.s32 %v3401, %v3403
    %v3405 = vrot.slane %v3300, %v3404
    %v3407 = vunpack.c.l.s4 1966171168
    %v3408 = vunpack.c.0.s8 %v3407
    %v3409 = vlaneseq
    %v3410 = vshrl.u32 %v3409, 7
    %v3411 = vsub.s32 %v3408, %v3410
    %v3412 = vrot.slane %v3405, %v3411
    %v3421 = vmul.f32 %v2574, %v3314
    %v3422 = vmul.f32 %v2576, %v3328
    %v3423 = vmul.f32 %v2578, %v3342
    %v3424 = vmul.f32 %v2580, %v3356
    %v3425 = vmul.f32 %v2582, %v3370
    %v3426 = vmul.f32 %v2584, %v3384
    %v3427 = vmul.f32 %v2586, %v3398
    %v3428 = vmul.f32 %v2588, %v3412
    %v3437 = vcombine.low %v3421, %v3422
    %v3438 = vcombine.low %v3423, %v3424
    %v3439 = vcombine.low %v3425, %v3426
    %v3440 = vcombine.low %v3427, %v3428
    %v3442 = vunpack.c.l.s4 1966171168
    %v3443 = vunpack.c.0.s8 %v3442
    %v3444 = vlaneseq
    %v3445 = vshrl.u32 %v3444, 7
    %v3446 = vsub.s32 %v3443, %v3445
    %v3447 = vrot.slane %v3437, %v3446
    %v3449 = vunpack.c.l.s4 1966171168
    %v3450 = vunpack.c.0.s8 %v3449
    %v3451 = vlaneseq
    %v3452 = vshrl.u32 %v3451, 7
    %v3453 = vsub.s32 %v3450, %v3452
    %v3454 = vrot.slane %v3438, %v3453
    %v3456 = vunpack.c.l.s4 1966171168
    %v3457 = vunpack.c.0.s8 %v3456
    %v3458 = vlaneseq
    %v3459 = vshrl.u32 %v3458, 7
    %v3460 = vsub.s32 %v3457, %v3459
    %v3461 = vrot.slane %v3439, %v3460
    %v3463 = vunpack.c.l.s4 1966171168
    %v3464 = vunpack.c.0.s8 %v3463
    %v3465 = vlaneseq
    %v3466 = vshrl.u32 %v3465, 7
    %v3467 = vsub.s32 %v3464, %v3466
    %v3468 = vrot.slane %v3440, %v3467
    %v3469 = vcombine.low %v3447, %v3454
    %v3470 = vcombine.low %v3461, %v3468
    %v3472 = vunpack.c.l.s4 1966171168
    %v3473 = vunpack.c.0.s8 %v3472
    %v3474 = vlaneseq
    %v3475 = vshrl.u32 %v3474, 7
    %v3476 = vsub.s32 %v3473, %v3475
    %v3477 = vrot.slane %v3469, %v3476
    %v3479 = vunpack.c.l.s4 1966171168
    %v3480 = vunpack.c.0.s8 %v3479
    %v3481 = vlaneseq
    %v3482 = vshrl.u32 %v3481, 7
    %v3483 = vsub.s32 %v3480, %v3482
    %v3484 = vrot.slane %v3470, %v3483
    %v3485 = vcombine.low %v3477, %v3484
    %v3487 = vsel %vm2402, %v3485, 0.0
    %3488 = vadd.xlane.f32.xlu0 %v3487
    %v3489 = vpop.xlane.xlu0 %3488
    %v3490 = vld [vmem:[%s5] sm:$0x1]
    %v3491 = vld [vmem:[%s5 + $0x1] sm:$0x1]
    %v3492 = vld [vmem:[%s5 + $0x2] sm:$0x1]
    %v3493 = vld [vmem:[%s5 + $0x3] sm:$0x1]
    %v3494 = vld [vmem:[%s5 + $0x4] sm:$0x1]
    %v3495 = vld [vmem:[%s5 + $0x5] sm:$0x1]
    %v3496 = vld [vmem:[%s5 + $0x6] sm:$0x1]
    %v3497 = vld [vmem:[%s5 + $0x7] sm:$0x1]
    %s3498 = sld [smem:[#allocation7]]
    %v3499 = vstv %s3498
    %v3500 = vmul.f32 %v3499, %v3489
    %s3501 = sld [smem:[#allocation7 + $0x1]]
    %v3502 = vstv %s3501
    %v3503 = vmul.f32 %v3502, %v3490
    %v3504 = vmul.f32 %v3502, %v3491
    %v3505 = vmul.f32 %v3502, %v3492
    %v3506 = vmul.f32 %v3502, %v3493
    %v3507 = vmul.f32 %v3502, %v3494
    %v3508 = vmul.f32 %v3502, %v3495
    %v3509 = vmul.f32 %v3502, %v3496
    %v3510 = vmul.f32 %v3502, %v3497
    %v3519 = vcombine.low %v3503, %v3504
    %v3520 = vcombine.low %v3505, %v3506
    %v3521 = vcombine.low %v3507, %v3508
    %v3522 = vcombine.low %v3509, %v3510
    %v3524 = vunpack.c.l.s4 1966171168
    %v3525 = vunpack.c.0.s8 %v3524
    %v3526 = vlaneseq
    %v3527 = vshrl.u32 %v3526, 7
    %v3528 = vsub.s32 %v3525, %v3527
    %v3529 = vrot.slane %v3519, %v3528
    %v3531 = vunpack.c.l.s4 1966171168
    %v3532 = vunpack.c.0.s8 %v3531
    %v3533 = vlaneseq
    %v3534 = vshrl.u32 %v3533, 7
    %v3535 = vsub.s32 %v3532, %v3534
    %v3536 = vrot.slane %v3520, %v3535
    %v3538 = vunpack.c.l.s4 1966171168
    %v3539 = vunpack.c.0.s8 %v3538
    %v3540 = vlaneseq
    %v3541 = vshrl.u32 %v3540, 7
    %v3542 = vsub.s32 %v3539, %v3541
    %v3543 = vrot.slane %v3521, %v3542
    %v3545 = vunpack.c.l.s4 1966171168
    %v3546 = vunpack.c.0.s8 %v3545
    %v3547 = vlaneseq
    %v3548 = vshrl.u32 %v3547, 7
    %v3549 = vsub.s32 %v3546, %v3548
    %v3550 = vrot.slane %v3522, %v3549
    %v3551 = vcombine.low %v3529, %v3536
    %v3552 = vcombine.low %v3543, %v3550
    %v3554 = vunpack.c.l.s4 1966171168
    %v3555 = vunpack.c.0.s8 %v3554
    %v3556 = vlaneseq
    %v3557 = vshrl.u32 %v3556, 7
    %v3558 = vsub.s32 %v3555, %v3557
    %v3559 = vrot.slane %v3551, %v3558
    %v3561 = vunpack.c.l.s4 1966171168
    %v3562 = vunpack.c.0.s8 %v3561
    %v3563 = vlaneseq
    %v3564 = vshrl.u32 %v3563, 7
    %v3565 = vsub.s32 %v3562, %v3564
    %v3566 = vrot.slane %v3552, %v3565
    %v3567 = vcombine.low %v3559, %v3566
    %v3569 = vadd.f32 %v3500, %v3567
    %s3570 = sld [smem:[#allocation7 + $0x2]]
    %v3571 = vstv %s3570
    %v3572 = vmul.f32 %v3571, %v3490
    %v3573 = vmul.f32 %v3571, %v3491
    %v3574 = vmul.f32 %v3571, %v3492
    %v3575 = vmul.f32 %v3571, %v3493
    %v3576 = vmul.f32 %v3571, %v3494
    %v3577 = vmul.f32 %v3571, %v3495
    %v3578 = vmul.f32 %v3571, %v3496
    %v3579 = vmul.f32 %v3571, %v3497
    %v3588 = vcombine.low %v3572, %v3573
    %v3589 = vcombine.low %v3574, %v3575
    %v3590 = vcombine.low %v3576, %v3577
    %v3591 = vcombine.low %v3578, %v3579
    %v3593 = vunpack.c.l.s4 1966171168
    %v3594 = vunpack.c.0.s8 %v3593
    %v3595 = vlaneseq
    %v3596 = vshrl.u32 %v3595, 7
    %v3597 = vsub.s32 %v3594, %v3596
    %v3598 = vrot.slane %v3588, %v3597
    %v3600 = vunpack.c.l.s4 1966171168
    %v3601 = vunpack.c.0.s8 %v3600
    %v3602 = vlaneseq
    %v3603 = vshrl.u32 %v3602, 7
    %v3604 = vsub.s32 %v3601, %v3603
    %v3605 = vrot.slane %v3589, %v3604
    %v3607 = vunpack.c.l.s4 1966171168
    %v3608 = vunpack.c.0.s8 %v3607
    %v3609 = vlaneseq
    %v3610 = vshrl.u32 %v3609, 7
    %v3611 = vsub.s32 %v3608, %v3610
    %v3612 = vrot.slane %v3590, %v3611
    %v3614 = vunpack.c.l.s4 1966171168
    %v3615 = vunpack.c.0.s8 %v3614
    %v3616 = vlaneseq
    %v3617 = vshrl.u32 %v3616, 7
    %v3618 = vsub.s32 %v3615, %v3617
    %v3619 = vrot.slane %v3591, %v3618
    %v3620 = vcombine.low %v3598, %v3605
    %v3621 = vcombine.low %v3612, %v3619
    %v3623 = vunpack.c.l.s4 1966171168
    %v3624 = vunpack.c.0.s8 %v3623
    %v3625 = vlaneseq
    %v3626 = vshrl.u32 %v3625, 7
    %v3627 = vsub.s32 %v3624, %v3626
    %v3628 = vrot.slane %v3620, %v3627
    %v3630 = vunpack.c.l.s4 1966171168
    %v3631 = vunpack.c.0.s8 %v3630
    %v3632 = vlaneseq
    %v3633 = vshrl.u32 %v3632, 7
    %v3634 = vsub.s32 %v3631, %v3633
    %v3635 = vrot.slane %v3621, %v3634
    %v3636 = vcombine.low %v3628, %v3635
    %3637 = vrot.lane.b32.xlu0 %v3636, 127
    %v3638 = vpop.permute.xlu0 %3637
    %v3640 = vadd.f32 %v3569, %v3638
    %s3641 = sld [smem:[#allocation7 + $0x3]]
    %v3642 = vstv %s3641
    %v3643 = vmul.f32 %v3642, %v3490
    %v3644 = vmul.f32 %v3642, %v3491
    %v3645 = vmul.f32 %v3642, %v3492
    %v3646 = vmul.f32 %v3642, %v3493
    %v3647 = vmul.f32 %v3642, %v3494
    %v3648 = vmul.f32 %v3642, %v3495
    %v3649 = vmul.f32 %v3642, %v3496
    %v3650 = vmul.f32 %v3642, %v3497
    %v3659 = vcombine.low %v3643, %v3644
    %v3660 = vcombine.low %v3645, %v3646
    %v3661 = vcombine.low %v3647, %v3648
    %v3662 = vcombine.low %v3649, %v3650
    %v3664 = vunpack.c.l.s4 1966171168
    %v3665 = vunpack.c.0.s8 %v3664
    %v3666 = vlaneseq
    %v3667 = vshrl.u32 %v3666, 7
    %v3668 = vsub.s32 %v3665, %v3667
    %v3669 = vrot.slane %v3659, %v3668
    %v3671 = vunpack.c.l.s4 1966171168
    %v3672 = vunpack.c.0.s8 %v3671
    %v3673 = vlaneseq
    %v3674 = vshrl.u32 %v3673, 7
    %v3675 = vsub.s32 %v3672, %v3674
    %v3676 = vrot.slane %v3660, %v3675
    %v3678 = vunpack.c.l.s4 1966171168
    %v3679 = vunpack.c.0.s8 %v3678
    %v3680 = vlaneseq
    %v3681 = vshrl.u32 %v3680, 7
    %v3682 = vsub.s32 %v3679, %v3681
    %v3683 = vrot.slane %v3661, %v3682
    %v3685 = vunpack.c.l.s4 1966171168
    %v3686 = vunpack.c.0.s8 %v3685
    %v3687 = vlaneseq
    %v3688 = vshrl.u32 %v3687, 7
    %v3689 = vsub.s32 %v3686, %v3688
    %v3690 = vrot.slane %v3662, %v3689
    %v3691 = vcombine.low %v3669, %v3676
    %v3692 = vcombine.low %v3683, %v3690
    %v3694 = vunpack.c.l.s4 1966171168
    %v3695 = vunpack.c.0.s8 %v3694
    %v3696 = vlaneseq
    %v3697 = vshrl.u32 %v3696, 7
    %v3698 = vsub.s32 %v3695, %v3697
    %v3699 = vrot.slane %v3691, %v3698
    %v3701 = vunpack.c.l.s4 1966171168
    %v3702 = vunpack.c.0.s8 %v3701
    %v3703 = vlaneseq
    %v3704 = vshrl.u32 %v3703, 7
    %v3705 = vsub.s32 %v3702, %v3704
    %v3706 = vrot.slane %v3692, %v3705
    %v3707 = vcombine.low %v3699, %v3706
    %3708 = vrot.lane.b32.xlu0 %v3707, 126
    %v3709 = vpop.permute.xlu0 %3708
    %v3711 = vadd.f32 %v3640, %v3709
    %s3712 = sld [smem:[#allocation7 + $0x4]]
    %v3713 = vstv %s3712
    %v3714 = vmul.f32 %v3713, %v3490
    %v3715 = vmul.f32 %v3713, %v3491
    %v3716 = vmul.f32 %v3713, %v3492
    %v3717 = vmul.f32 %v3713, %v3493
    %v3718 = vmul.f32 %v3713, %v3494
    %v3719 = vmul.f32 %v3713, %v3495
    %v3720 = vmul.f32 %v3713, %v3496
    %v3721 = vmul.f32 %v3713, %v3497
    %v3730 = vcombine.low %v3714, %v3715
    %v3731 = vcombine.low %v3716, %v3717
    %v3732 = vcombine.low %v3718, %v3719
    %v3733 = vcombine.low %v3720, %v3721
    %v3735 = vunpack.c.l.s4 1966171168
    %v3736 = vunpack.c.0.s8 %v3735
    %v3737 = vlaneseq
    %v3738 = vshrl.u32 %v3737, 7
    %v3739 = vsub.s32 %v3736, %v3738
    %v3740 = vrot.slane %v3730, %v3739
    %v3742 = vunpack.c.l.s4 1966171168
    %v3743 = vunpack.c.0.s8 %v3742
    %v3744 = vlaneseq
    %v3745 = vshrl.u32 %v3744, 7
    %v3746 = vsub.s32 %v3743, %v3745
    %v3747 = vrot.slane %v3731, %v3746
    %v3749 = vunpack.c.l.s4 1966171168
    %v3750 = vunpack.c.0.s8 %v3749
    %v3751 = vlaneseq
    %v3752 = vshrl.u32 %v3751, 7
    %v3753 = vsub.s32 %v3750, %v3752
    %v3754 = vrot.slane %v3732, %v3753
    %v3756 = vunpack.c.l.s4 1966171168
    %v3757 = vunpack.c.0.s8 %v3756
    %v3758 = vlaneseq
    %v3759 = vshrl.u32 %v3758, 7
    %v3760 = vsub.s32 %v3757, %v3759
    %v3761 = vrot.slane %v3733, %v3760
    %v3762 = vcombine.low %v3740, %v3747
    %v3763 = vcombine.low %v3754, %v3761
    %v3765 = vunpack.c.l.s4 1966171168
    %v3766 = vunpack.c.0.s8 %v3765
    %v3767 = vlaneseq
    %v3768 = vshrl.u32 %v3767, 7
    %v3769 = vsub.s32 %v3766, %v3768
    %v3770 = vrot.slane %v3762, %v3769
    %v3772 = vunpack.c.l.s4 1966171168
    %v3773 = vunpack.c.0.s8 %v3772
    %v3774 = vlaneseq
    %v3775 = vshrl.u32 %v3774, 7
    %v3776 = vsub.s32 %v3773, %v3775
    %v3777 = vrot.slane %v3763, %v3776
    %v3778 = vcombine.low %v3770, %v3777
    %3779 = vrot.lane.b32.xlu0 %v3778, 125
    %v3780 = vpop.permute.xlu0 %3779
    %v3782 = vadd.f32 %v3711, %v3780
    %s3783 = sld [smem:[#allocation3]]
    %v3784 = vstv %s3783
    %v3785 = vadd.f32 %v3782, %v3784
    %3786 = vxpose.xlu0.b32.start [1/16] %v3785, 128
    %3787 = vxpose.xlu0.b32.cont [2/16] 0.0, 128
    %3788 = vxpose.xlu0.b32.cont [3/16] 0.0, 128
    %3789 = vxpose.xlu0.b32.cont [4/16] 0.0, 128
    %3790 = vxpose.xlu0.b32.cont [5/16] 0.0, 128
    %3791 = vxpose.xlu0.b32.cont [6/16] 0.0, 128
    %3792 = vxpose.xlu0.b32.cont [7/16] 0.0, 128
    %3793 = vxpose.xlu0.b32.cont [8/16] 0.0, 128
    %3794 = vxpose.xlu0.b32.cont [9/16] 0.0, 128
    %3795 = vxpose.xlu0.b32.cont [10/16] 0.0, 128
    %3796 = vxpose.xlu0.b32.cont [11/16] 0.0, 128
    %3797 = vxpose.xlu0.b32.cont [12/16] 0.0, 128
    %3798 = vxpose.xlu0.b32.cont [13/16] 0.0, 128
    %3799 = vxpose.xlu0.b32.cont [14/16] 0.0, 128
    %3800 = vxpose.xlu0.b32.cont [15/16] 0.0, 128
    %3801 = vxpose.xlu0.b32.end [16/16] 0.0, 128
    %v3802 = vpop.trf.xlu0
    %v3803 = vpop.trf.xlu0
    %v3804 = vpop.trf.xlu0
    %v3805 = vpop.trf.xlu0
    %v3806 = vpop.trf.xlu0
    %v3807 = vpop.trf.xlu0
    %v3808 = vpop.trf.xlu0
    %v3809 = vpop.trf.xlu0
    %v3810 = vpop.trf.xlu0
    %v3811 = vpop.trf.xlu0
    %v3812 = vpop.trf.xlu0
    %v3813 = vpop.trf.xlu0
    %v3814 = vpop.trf.xlu0
    %v3815 = vpop.trf.xlu0
    %v3816 = vpop.trf.xlu0
    %v3817 = vpop.trf.xlu0
    %vm3818 = vcmask 57344
    %3819 = vst.msk [vmem:[#allocation9] sm:$0x1] %vm3818, %v3802
    // Predicated region
    $region50: #{positdrmm_forward.1} parent=1 // pred_check
      _
    $region51: #{positdrmm_forward.1} parent=1 // pred_check_branch
      %3821 = sbr.rel (0) target = $region53
    $region52: #{positdrmm_forward.1} parent=1 // pred_region
      %s3823 = ssub.s32 16, 16
      %3824 = vsyncadd [#allocation5], %s3823
      %s3826 = sshll.u32 [#allocation9], 4
      %s3827 = int_to_ptr.vmem [resolvable:$true] %s3826
      %3829 = dma.vmem_to_hbm [thread:$0]  %s3827, 16, %s10, [#allocation5]
    $region53: #{positdrmm_forward.1} parent=1 // pred_fallthru
      _
    // Predicated region
    $region54: #{positdrmm_forward.1} parent=1 // pred_check
      _
    $region55: #{positdrmm_forward.1} parent=1 // pred_check_branch
      %3831 = sbr.rel (0) target = $region57
    $region56: #{positdrmm_forward.1} parent=1 // pred_region
      %3832 = dma.done [#allocation5], 16
    $region57: #{positdrmm_forward.1} parent=1 // pred_fallthru
      _
    %3833 = vsyncpa [#allocation5], 1
    %3834 = vsyncpa [#allocation6], 1
    %3835 = vsyncpa [#allocation8], 1

</llo_original>
